<compile_context>
chip_gen: v7x
topology: tpu7x:2x2x1
jax: 0.10.0
libtpu: 0.0.40
codegen_flags: <defaults>
</compile_context>

<pallas_src>
import itertools
import numpy as np

import jax
import jax.numpy as jnp
from jax import lax
from jax.experimental import pallas as pl
from jax.experimental.pallas import tpu as pltpu


def _round_up(x, m):
    return (x + m - 1) // m * m


# ---------------------------------------------------------------------------
# Octahedral group machinery (NumPy setup glue, runs once at __init__).
# The original `octahedral_transform` helper is reconstructed as the standard
# octahedral group of the cube realised as signed permutation matrices:
# 24 proper rotations (48 with reflections).
# ---------------------------------------------------------------------------
def octahedral_group(reflection: bool) -> np.ndarray:
    mats = []
    for perm in itertools.permutations(range(3)):
        for signs in itertools.product((1, -1), repeat=3):
            m = np.zeros((3, 3), dtype=np.int64)
            for r in range(3):
                m[r, perm[r]] = signs[r]
            if reflection or int(round(np.linalg.det(m))) == 1:
                mats.append(m)
    return np.stack(mats, axis=0)  # (G, 3, 3)


def group_shifted_indices(mats: np.ndarray) -> np.ndarray:
    G = mats.shape[0]
    idx = np.zeros((G, G), dtype=np.int32)
    for g in range(G):
        g_inv = mats[g].T  # orthogonal -> inverse = transpose
        for h in range(G):
            prod = g_inv @ mats[h]
            hit = [j for j in range(G) if np.array_equal(mats[j], prod)]
            idx[g, h] = hit[0]
    return idx


def rotate_filter_bank(t_weight: np.ndarray, mats: np.ndarray) -> np.ndarray:
    """t_weight (O, 1, k, k, k) -> (O, G, k, k, k): filter rotated by each g."""
    O, _, k, _, _ = t_weight.shape
    G = mats.shape[0]
    c = (k - 1) / 2.0
    coords = np.stack(
        np.meshgrid(np.arange(k), np.arange(k), np.arange(k), indexing="ij"),
        axis=-1,
    ).astype(np.float64)
    centered = coords - c
    bank = np.zeros((O, G, k, k, k), dtype=t_weight.dtype)
    base = t_weight[:, 0]  # (O, k, k, k)
    for g in range(G):
        src = centered @ mats[g] + c            # R^{-1} p for each target p
        src = np.rint(src).astype(np.int64)
        bank[:, g] = base[:, src[..., 0], src[..., 1], src[..., 2]]
    return bank


# ---------------------------------------------------------------------------
# Fused Pallas kernel: (mix matmul + g_bias) -> padded VMEM slab -> 27-tap
# depthwise 3D conv (+ t_bias, optional ReLU), all channels-last (lane-dense).
# ---------------------------------------------------------------------------
def _make_fused_kernel(k, p, H, W, D, Ho, Wo, Do, doff, dext, cblk, activation):
    Hp, Wp = H + 2 * p, W + 2 * p
    k3 = k * k * k
    # W-tile so the live f32 accumulator stays <= ~32 vregs (wt * Do <= 256).
    wt = max(1, min(Wo, max(1, 256 // max(Do, 1))))

    def kernel(x_ref, wmix_ref, ker_ref, gb_ref, tb_ref, o_ref, xq_ref):
        # ---- (0) zero ONLY the halo of the padded slab (aligned tile stores).
        #      The interior [p:p+H, p:p+W, doff:doff+D] is overwritten by the
        #      mix below every grid step, so it needs no memset.
        if p > 0:
            xq_ref[0:p, :, :, :] = jnp.zeros((p, Wp, dext, cblk), jnp.float32)
            xq_ref[p + H:, :, :, :] = jnp.zeros((p, Wp, dext, cblk), jnp.float32)
            xq_ref[:, 0:p, :, :] = jnp.zeros((Hp, p, dext, cblk), jnp.float32)
            xq_ref[:, p + W:, :, :] = jnp.zeros((Hp, p, dext, cblk), jnp.float32)
        if doff > 0:
            xq_ref[:, :, 0:doff, :] = jnp.zeros((Hp, Wp, doff, cblk), jnp.float32)
        if dext > doff + D:
            xq_ref[:, :, doff + D:, :] = jnp.zeros(
                (Hp, Wp, dext - doff - D, cblk), jnp.float32)

        # ---- hoisted, h-invariant loads for the mix loop ----
        wmix = wmix_ref[...]        # (K, cblk)
        gbias = gb_ref[...]         # (1, cblk)

        # ---- (1) fused group/channel mix, written straight into the slab ----
        # MXU is far from binding here; HIGHEST keeps exact f32 semantics.
        # (The (W*D, cblk) -> (W, D, cblk) split is layout-preserving for D % 8 == 0.)
        def mix_row(h, carry):
            xrow = x_ref[0, h]                                   # (W*D, K)
            m = jnp.dot(xrow, wmix,
                        preferred_element_type=jnp.float32,
                        precision=lax.Precision.HIGHEST) + gbias  # (W*D, cblk)
            xq_ref[p + h, p:p + W, doff:doff + D, :] = m.reshape(W, D, cblk)
            return carry

        lax.fori_loop(0, H, mix_row, 0)

        # ---- hoisted, ho-invariant loads for the conv loop ----
        tbias = tb_ref[...]                                      # (1, cblk)
        wtap = [ker_ref[i, :] for i in range(k3)]                # k^3 x (cblk,)

        # Aligned-window + roll replacement of the unaligned sublane slices:
        # tap c needs slab D-range [doff-p+c, doff-p+c+Do).
        def shifted_taps(rowa):
            taps = []
            for c in range(k):
                lo = doff - p + c
                lo0 = (lo // 8) * 8
                hi0 = _round_up(lo + Do, 8)
                L = hi0 - lo0
                win = rowa[:, lo0:hi0, :]                        # aligned pre-slice
                d = lo - lo0
                if d:
                    # result[j] = win[j + d]  (wrapped sublanes fall outside [0, Do))
                    win = pltpu.roll(win, shift=L - d, axis=1)
                taps.append(win[:, 0:Do, :])
            return taps

        # ---- (2) depthwise 3D conv: one output row / W-tile at a time ----
        def conv_row(ho, carry):
            for w0 in range(0, Wo, wt):
                wcur = min(wt, Wo - w0)
                acc = jnp.zeros((wcur, Do, cblk), jnp.float32)
                for a in range(k):
                    # One row load per `a`; W-taps are free major-dim slices of it.
                    rowa = xq_ref[ho + a, w0:w0 + wcur + k - 1, :, :]
                    taps = shifted_taps(rowa)
                    for c in range(k):
                        tap_c = taps[c]
                        for b in range(k):
                            acc = acc + tap_c[b:b + wcur] * wtap[(a * k + b) * k + c]
                res = acc + tbias
                if activation:
                    res = jnp.maximum(res, 0.0)
                o_ref[0, ho, w0:w0 + wcur, :, :] = res
            return carry

        lax.fori_loop(0, Ho, conv_row, 0)

    return kernel


def _vmem_block_bytes(shape, itemsize=4):
    s = list(shape)
    s[-1] = _round_up(s[-1], 128)
    if len(s) >= 2:
        s[-2] = _round_up(s[-2], 8)
    n = 1
    for v in s:
        n *= v
    return n * itemsize


def fused_gconv(a, wmix, ker, gbias, tbias, *, B, H, W, D, k, p, Cp,
                activation, cblk=128):
    """a (B, H, W*D, K) f32; wmix (K, Cp); ker (k^3, Cp); biases (1, Cp).

    Returns channels-last (B, Ho, Wo, Do, Cp) f32.  Grid = (batch, channel-chunk);
    each step mixes one 128-channel chunk directly into a padded VMEM slab and runs
    the 27-tap depthwise conv out of it (no HBM intermediate).
    """
    K = a.shape[-1]
    assert Cp % cblk == 0
    Ho, Wo, Do = H + 2 * p - k + 1, W + 2 * p - k + 1, D + 2 * p - k + 1
    Hp, Wp = H + 2 * p, W + 2 * p
    doff = _round_up(p, 8)                       # tile-aligned D offset of the interior
    dext = _round_up(doff + D + p, 8)            # D extent of the padded slab

    kernel = _make_fused_kernel(k, p, H, W, D, Ho, Wo, Do, doff, dext, cblk,
                                activation)

    est = (2 * _vmem_block_bytes((1, H, W * D, K))
           + 2 * _vmem_block_bytes((1, Ho, Wo, Do, cblk))
           + 2 * _vmem_block_bytes((K, cblk))
           + 2 * _vmem_block_bytes((k ** 3, cblk))
           + 4 * _vmem_block_bytes((1, cblk))
           + _vmem_block_bytes((Hp, Wp, dext, cblk)))
    vmem_limit = int(min(max(2 * est + (8 << 20), 32 << 20), 100 << 20))

    return pl.pallas_call(
        kernel,
        out_shape=jax.ShapeDtypeStruct((B, Ho, Wo, Do, Cp), jnp.float32),
        grid_spec=pltpu.PrefetchScalarGridSpec(
            num_scalar_prefetch=0,
            grid=(B, Cp // cblk),
            in_specs=[
                pl.BlockSpec((1, H, W * D, K), lambda b, cc: (b, 0, 0, 0)),
                pl.BlockSpec((K, cblk), lambda b, cc: (0, cc)),
                pl.BlockSpec((k ** 3, cblk), lambda b, cc: (0, cc)),
                pl.BlockSpec((1, cblk), lambda b, cc: (0, cc)),
                pl.BlockSpec((1, cblk), lambda b, cc: (0, cc)),
            ],
            out_specs=pl.BlockSpec((1, Ho, Wo, Do, cblk),
                                   lambda b, cc: (b, 0, 0, 0, cc)),
            scratch_shapes=[
                pltpu.VMEM((Hp, Wp, dext, cblk), jnp.float32),
            ],
        ),
        compiler_params=pltpu.CompilerParams(
            dimension_semantics=("parallel", "parallel"),
            vmem_limit_bytes=vmem_limit),
    )(a, wmix, ker, gbias, tbias)


# ---------------------------------------------------------------------------
# Module
# ---------------------------------------------------------------------------
class RelaxedOctahedralGroupConv3d:
    def __init__(self, in_channels, out_channels, kernel_size, num_filter_basis,
                 reflection, stride=1, padding=1, upscale=False,
                 activation=False, key=None):
        self.in_channels = in_channels
        self.out_channels = out_channels
        self.kernel_size = kernel_size
        self.num_filter_basis = num_filter_basis
        self.stride = stride
        self.padding = padding
        self.activation = activation
        self.upscale = upscale
        self.reflection = reflection
        self.group_order = 48 if reflection else 24

        self.mats = octahedral_group(reflection)
        self.shifted_indices = group_shifted_indices(self.mats)

        # Deterministic synthetic parameter init (same shapes as the module).
        k0, k1, k2, k3, k4 = jax.random.split(key, 5)
        g_stdv = float(np.sqrt(2.0 / in_channels / self.group_order))
        t_stdv = float(np.sqrt(2.0 / out_channels / self.group_order))
        G, n, O, Ci, k = (self.group_order, num_filter_basis, out_channels,
                          in_channels, kernel_size)
        self.relaxed_weights = 1.0 + 0.1 * jax.random.normal(k0, (n, G), jnp.float32)
        self.g_weight = g_stdv * jax.random.normal(k1, (n, G, O, Ci), jnp.float32)
        self.t_weight = t_stdv * jax.random.normal(k2, (O, 1, k, k, k), jnp.float32)
        self.g_bias = 0.1 * jax.random.normal(k3, (O,), jnp.float32)
        self.t_bias = 0.1 * jax.random.normal(k4, (1,), jnp.float32)

        # --- filter-bank precompute (hoisted out of the forward pass) ---
        C = O * G
        Cp = _round_up(C, 128)          # lane-dense channel count
        self.C, self.Cp = C, Cp

        g_w = np.asarray(self.g_weight)
        g_bank = np.stack(
            [g_w[:, self.shifted_indices[g]] for g in range(G)], axis=1)     # (n,G,G,O,Ci)
        rcw = np.einsum('ng,nhgoi->ghoi',
                        np.asarray(self.relaxed_weights), g_bank)            # (Gz,Gg,O,Ci)
        W2 = np.transpose(rcw, (3, 1, 2, 0)).reshape(Ci * G, C)              # (Ci*G, O*G)
        W2p = np.zeros((Ci * G, Cp), np.float32)
        W2p[:, :C] = W2
        mix_bias = np.zeros((1, Cp), np.float32)
        mix_bias[0, :C] = np.repeat(np.asarray(self.g_bias), G)

        t_bank = rotate_filter_bank(np.asarray(self.t_weight), self.mats)    # (O,G,k,k,k)
        ker = np.zeros((k ** 3, Cp), np.float32)
        ker[:, :C] = t_bank.reshape(C, k ** 3).T
        conv_bias = np.full((1, Cp), float(np.asarray(self.t_bias)[0]), np.float32)

        self.W2p = jnp.asarray(W2p)
        self.mix_bias = jnp.asarray(mix_bias)
        self.ker = jnp.asarray(ker)
        self.conv_bias = jnp.asarray(conv_bias)

    def __call__(self, x):
        # x: (B, Cin, G, H, W, D) -- matches the PyTorch module's input layout
        assert self.stride == 1 and not self.upscale
        B, Ci, G, H, W, D = x.shape
        k, p = self.kernel_size, self.padding
        assert Ci == self.in_channels and G == self.group_order

        # channels-last, (B, H, W*D, K) so the fused kernel's mix dot needs no
        # in-kernel lhs reshape.  (One XLA transpose; see TODO at top of file.)
        a = jnp.transpose(x, (0, 3, 4, 5, 1, 2)).reshape(B, H, W * D, Ci * G)

        out = fused_gconv(a, self.W2p, self.ker, self.mix_bias, self.conv_bias,
                          B=B, H=H, W=W, D=D, k=k, p=p, Cp=self.Cp,
                          activation=self.activation)

        # back to PyTorch output layout (B, O, G, Ho, Wo, Do)
        Ho, Wo, Do = out.shape[1:4]
        out = out[..., :self.C].reshape(B, Ho, Wo, Do, self.out_channels, G)
        return jnp.transpose(out, (0, 4, 5, 1, 2, 3))


# ---------------------------------------------------------------------------
# Pure-JAX reference (mirrors the PyTorch forward exactly) for validation.
# ---------------------------------------------------------------------------
def reference_forward(mod, x):
    G, O, k, p = mod.group_order, mod.out_channels, mod.kernel_size, mod.padding
    g_w = np.asarray(mod.g_weight)
    g_bank = np.stack([g_w[:, mod.shifted_indices[g]] for g in range(G)], axis=1)
    rcw = np.einsum('ng,nhgoi->ghoi', np.asarray(mod.relaxed_weights), g_bank)
    t_bank = rotate_filter_bank(np.asarray(mod.t_weight), mod.mats)

    y = jnp.einsum('bighwd,zgoi->bozhwd', x, jnp.asarray(rcw, jnp.float32),
                   precision=jax.lax.Precision.HIGHEST)
    y = y + mod.g_bias.reshape(1, O, 1, 1, 1, 1)
    B = x.shape[0]
    H, W, D = x.shape[-3:]
    y = y.reshape(B, O * G, H, W, D)
    w = jnp.asarray(t_bank.reshape(O * G, 1, k, k, k), jnp.float32)
    out = lax.conv_general_dilated(
        y, w, window_strides=(1, 1, 1), padding=[(p, p)] * 3,
        dimension_numbers=('NCDHW', 'OIDHW', 'NCDHW'),
        feature_group_count=O * G, precision=jax.lax.Precision.HIGHEST)
    out = out + mod.t_bias[0]
    out = out.reshape(B, O, G, out.shape[-3], out.shape[-2], out.shape[-1])
    if mod.activation:
        out = jnp.maximum(out, 0.0)
    return out


if __name__ == "__main__":
    key = jax.random.PRNGKey(0)
    kp, kx = jax.random.split(key)

    B, Ci, O, ksz, nfb = 2, 2, 2, 3, 2
    H = W = D = 8
    mod = RelaxedOctahedralGroupConv3d(
        in_channels=Ci, out_channels=O, kernel_size=ksz,
        num_filter_basis=nfb, reflection=False,
        stride=1, padding=1, upscale=False, activation=True, key=kp)

    x = jax.random.normal(kx, (B, Ci, mod.group_order, H, W, D), jnp.float32)

    out = jax.block_until_ready(mod(x))
    ref = jax.block_until_ready(reference_forward(mod, x))
    np.testing.assert_allclose(np.asarray(out), np.asarray(ref),
                               rtol=2e-3, atol=2e-3)
    print("KERNEL_OK")
</pallas_src>

<mosaic_0001>
module attributes {stable_mosaic.version = 11 : i64} {
  func.func @kernel(%arg0: i32, %arg1: i32, %arg2: memref<1x8x64x48xf32, #tpu.memory_space<vmem>>, %arg3: memref<48x128xf32, #tpu.memory_space<vmem>>, %arg4: memref<27x128xf32, #tpu.memory_space<vmem>>, %arg5: memref<1x128xf32, #tpu.memory_space<vmem>>, %arg6: memref<1x128xf32, #tpu.memory_space<vmem>>, %arg7: memref<1x8x8x8x128xf32, #tpu.memory_space<vmem>>, %arg8: memref<10x10x24x128xf32, #tpu.memory_space<vmem>>) attributes {dimension_semantics = [#tpu.dimension_semantics<parallel>, #tpu.dimension_semantics<parallel>], iteration_bounds = array<i64: 2, 1>, scalar_prefetch = 0 : i64, scratch_operands = 1 : i64, tpu.core_type = #tpu.core_type<tc>, window_params = [{transform_indices = @transform_0, window_bounds = array<i64: 1, 8, 64, 48>}, {transform_indices = @transform_1, window_bounds = array<i64: 48, 128>}, {transform_indices = @transform_2, window_bounds = array<i64: 27, 128>}, {transform_indices = @transform_3, window_bounds = array<i64: 1, 128>}, {transform_indices = @transform_4, window_bounds = array<i64: 1, 128>}, {transform_indices = @transform_5, window_bounds = array<i64: 1, 8, 8, 8, 128>}]} {
    %cst = arith.constant 0.000000e+00 : f32
    %0 = vector.broadcast %cst : f32 to vector<1x10x24x128xf32>
    %c0 = arith.constant 0 : index
    %c0_0 = arith.constant 0 : index
    %c0_1 = arith.constant 0 : index
    %c0_2 = arith.constant 0 : index
    %1 = vector.load %arg8[%c0, %c0_0, %c0_1, %c0_2] : memref<10x10x24x128xf32, #tpu.memory_space<vmem>>, vector<1x10x24x128xf32>
    tpu.vector_store %arg8[%c0, %c0_0, %c0_1, %c0_2], %0 {strides = array<i32>} : memref<10x10x24x128xf32, #tpu.memory_space<vmem>>, vector<1x10x24x128xf32>,
    %cst_3 = arith.constant 0.000000e+00 : f32
    %2 = vector.broadcast %cst_3 : f32 to vector<1x10x24x128xf32>
    %c9 = arith.constant 9 : index
    %c0_4 = arith.constant 0 : index
    %c0_5 = arith.constant 0 : index
    %c0_6 = arith.constant 0 : index
    %3 = vector.load %arg8[%c9, %c0_4, %c0_5, %c0_6] : memref<10x10x24x128xf32, #tpu.memory_space<vmem>>, vector<1x10x24x128xf32>
    tpu.vector_store %arg8[%c9, %c0_4, %c0_5, %c0_6], %2 {strides = array<i32>} : memref<10x10x24x128xf32, #tpu.memory_space<vmem>>, vector<1x10x24x128xf32>,
    %cst_7 = arith.constant 0.000000e+00 : f32
    %4 = vector.broadcast %cst_7 : f32 to vector<10x1x24x128xf32>
    %c0_8 = arith.constant 0 : index
    %c0_9 = arith.constant 0 : index
    %c0_10 = arith.constant 0 : index
    %c0_11 = arith.constant 0 : index
    %5 = vector.load %arg8[%c0_8, %c0_9, %c0_10, %c0_11] : memref<10x10x24x128xf32, #tpu.memory_space<vmem>>, vector<10x1x24x128xf32>
    tpu.vector_store %arg8[%c0_8, %c0_9, %c0_10, %c0_11], %4 {strides = array<i32>} : memref<10x10x24x128xf32, #tpu.memory_space<vmem>>, vector<10x1x24x128xf32>,
    %cst_12 = arith.constant 0.000000e+00 : f32
    %6 = vector.broadcast %cst_12 : f32 to vector<10x1x24x128xf32>
    %c0_13 = arith.constant 0 : index
    %c9_14 = arith.constant 9 : index
    %c0_15 = arith.constant 0 : index
    %c0_16 = arith.constant 0 : index
    %7 = vector.load %arg8[%c0_13, %c9_14, %c0_15, %c0_16] : memref<10x10x24x128xf32, #tpu.memory_space<vmem>>, vector<10x1x24x128xf32>
    tpu.vector_store %arg8[%c0_13, %c9_14, %c0_15, %c0_16], %6 {strides = array<i32>} : memref<10x10x24x128xf32, #tpu.memory_space<vmem>>, vector<10x1x24x128xf32>,
    %cst_17 = arith.constant 0.000000e+00 : f32
    %8 = vector.broadcast %cst_17 : f32 to vector<10x10x8x128xf32>
    %c0_18 = arith.constant 0 : index
    %c0_19 = arith.constant 0 : index
    %c0_20 = arith.constant 0 : index
    %c0_21 = arith.constant 0 : index
    %9 = vector.load %arg8[%c0_18, %c0_19, %c0_20, %c0_21] : memref<10x10x24x128xf32, #tpu.memory_space<vmem>>, vector<10x10x8x128xf32>
    tpu.vector_store %arg8[%c0_18, %c0_19, %c0_20, %c0_21], %8 {strides = array<i32>} : memref<10x10x24x128xf32, #tpu.memory_space<vmem>>, vector<10x10x8x128xf32>,
    %cst_22 = arith.constant 0.000000e+00 : f32
    %10 = vector.broadcast %cst_22 : f32 to vector<10x10x8x128xf32>
    %c0_23 = arith.constant 0 : index
    %c0_24 = arith.constant 0 : index
    %c16 = arith.constant 16 : index
    %c0_25 = arith.constant 0 : index
    %11 = vector.load %arg8[%c0_23, %c0_24, %c16, %c0_25] : memref<10x10x24x128xf32, #tpu.memory_space<vmem>>, vector<10x10x8x128xf32>
    tpu.vector_store %arg8[%c0_23, %c0_24, %c16, %c0_25], %10 {strides = array<i32>} : memref<10x10x24x128xf32, #tpu.memory_space<vmem>>, vector<10x10x8x128xf32>,
    %c0_26 = arith.constant 0 : index
    %c0_27 = arith.constant 0 : index
    %12 = vector.load %arg3[%c0_26, %c0_27] : memref<48x128xf32, #tpu.memory_space<vmem>>, vector<48x128xf32>
    %c0_28 = arith.constant 0 : index
    %c0_29 = arith.constant 0 : index
    %13 = vector.load %arg5[%c0_28, %c0_29] : memref<1x128xf32, #tpu.memory_space<vmem>>, vector<1x128xf32>
    %c0_i32 = arith.constant 0 : i32
    %c8_i32 = arith.constant 8 : i32
    %14 = arith.addi %c0_i32, %c8_i32 : i32
    %c1_i32 = arith.constant 1 : i32
    scf.for %arg9 = %c0_i32 to %14 step %c1_i32  : i32 {
      %c0_67 = arith.constant 0 : index
      %71 = arith.index_cast %arg9 : i32 to index
      %c0_68 = arith.constant 0 : index
      %c0_69 = arith.constant 0 : index
      %72 = vector.load %arg2[%c0_67, %71, %c0_68, %c0_69] : memref<1x8x64x48xf32, #tpu.memory_space<vmem>>, vector<1x1x64x48xf32>
      %73 = vector.shape_cast %72 : vector<1x1x64x48xf32> to vector<64x48xf32>
      %cst_70 = arith.constant dense<0.000000e+00> : vector<64x128xf32>
      %74 = tpu.matmul %73, %12, %cst_70 {dimension_numbers = #tpu.dot_dimension_numbers<[1], [0], [0], [1], [0, 0, 1, 1], [], []>, precision = #tpu.contract_precision<fp32>} : vector<64x48xf32>, vector<48x128xf32>, vector<64x128xf32> -> vector<64x128xf32>
      %75 = vector.broadcast %13 : vector<1x128xf32> to vector<64x128xf32>
      %76 = arith.addf %74, %75 : vector<64x128xf32>
      %77 = vector.shape_cast %76 : vector<64x128xf32> to vector<8x8x128xf32>
      %c1_i32_71 = arith.constant 1 : i32
      %78 = arith.addi %c1_i32_71, %arg9 : i32
      %79 = arith.index_cast %78 : i32 to index
      %c1_72 = arith.constant 1 : index
      %c8_73 = arith.constant 8 : index
      %c0_74 = arith.constant 0 : index
      %80 = vector.load %arg8[%79, %c1_72, %c8_73, %c0_74] : memref<10x10x24x128xf32, #tpu.memory_space<vmem>>, vector<1x8x8x128xf32>
      %81 = vector.shape_cast %80 : vector<1x8x8x128xf32> to vector<8x8x128xf32>
      %82 = vector.shape_cast %77 : vector<8x8x128xf32> to vector<1x8x8x128xf32>
      tpu.vector_store %arg8[%79, %c1_72, %c8_73, %c0_74], %82 {strides = array<i32>} : memref<10x10x24x128xf32, #tpu.memory_space<vmem>>, vector<1x8x8x128xf32>,
    }
    %c8_i32_30 = arith.constant 8 : i32
    %c0_31 = arith.constant 0 : index
    %c0_32 = arith.constant 0 : index
    %15 = vector.load %arg6[%c0_31, %c0_32] : memref<1x128xf32, #tpu.memory_space<vmem>>, vector<1x128xf32>
    %c0_33 = arith.constant 0 : index
    %c0_34 = arith.constant 0 : index
    %16 = vector.load %arg4[%c0_33, %c0_34] : memref<27x128xf32, #tpu.memory_space<vmem>>, vector<1x128xf32>
    %17 = vector.shape_cast %16 : vector<1x128xf32> to vector<128xf32>
    %c1 = arith.constant 1 : index
    %c0_35 = arith.constant 0 : index
    %18 = vector.load %arg4[%c1, %c0_35] : memref<27x128xf32, #tpu.memory_space<vmem>>, vector<1x128xf32>
    %19 = vector.shape_cast %18 : vector<1x128xf32> to vector<128xf32>
    %c2 = arith.constant 2 : index
    %c0_36 = arith.constant 0 : index
    %20 = vector.load %arg4[%c2, %c0_36] : memref<27x128xf32, #tpu.memory_space<vmem>>, vector<1x128xf32>
    %21 = vector.shape_cast %20 : vector<1x128xf32> to vector<128xf32>
    %c3 = arith.constant 3 : index
    %c0_37 = arith.constant 0 : index
    %22 = vector.load %arg4[%c3, %c0_37] : memref<27x128xf32, #tpu.memory_space<vmem>>, vector<1x128xf32>
    %23 = vector.shape_cast %22 : vector<1x128xf32> to vector<128xf32>
    %c4 = arith.constant 4 : index
    %c0_38 = arith.constant 0 : index
    %24 = vector.load %arg4[%c4, %c0_38] : memref<27x128xf32, #tpu.memory_space<vmem>>, vector<1x128xf32>
    %25 = vector.shape_cast %24 : vector<1x128xf32> to vector<128xf32>
    %c5 = arith.constant 5 : index
    %c0_39 = arith.constant 0 : index
    %26 = vector.load %arg4[%c5, %c0_39] : memref<27x128xf32, #tpu.memory_space<vmem>>, vector<1x128xf32>
    %27 = vector.shape_cast %26 : vector<1x128xf32> to vector<128xf32>
    %c6 = arith.constant 6 : index
    %c0_40 = arith.constant 0 : index
    %28 = vector.load %arg4[%c6, %c0_40] : memref<27x128xf32, #tpu.memory_space<vmem>>, vector<1x128xf32>
    %29 = vector.shape_cast %28 : vector<1x128xf32> to vector<128xf32>
    %c7 = arith.constant 7 : index
    %c0_41 = arith.constant 0 : index
    %30 = vector.load %arg4[%c7, %c0_41] : memref<27x128xf32, #tpu.memory_space<vmem>>, vector<1x128xf32>
    %31 = vector.shape_cast %30 : vector<1x128xf32> to vector<128xf32>
    %c8 = arith.constant 8 : index
    %c0_42 = arith.constant 0 : index
    %32 = vector.load %arg4[%c8, %c0_42] : memref<27x128xf32, #tpu.memory_space<vmem>>, vector<1x128xf32>
    %33 = vector.shape_cast %32 : vector<1x128xf32> to vector<128xf32>
    %c9_43 = arith.constant 9 : index
    %c0_44 = arith.constant 0 : index
    %34 = vector.load %arg4[%c9_43, %c0_44] : memref<27x128xf32, #tpu.memory_space<vmem>>, vector<1x128xf32>
    %35 = vector.shape_cast %34 : vector<1x128xf32> to vector<128xf32>
    %c10 = arith.constant 10 : index
    %c0_45 = arith.constant 0 : index
    %36 = vector.load %arg4[%c10, %c0_45] : memref<27x128xf32, #tpu.memory_space<vmem>>, vector<1x128xf32>
    %37 = vector.shape_cast %36 : vector<1x128xf32> to vector<128xf32>
    %c11 = arith.constant 11 : index
    %c0_46 = arith.constant 0 : index
    %38 = vector.load %arg4[%c11, %c0_46] : memref<27x128xf32, #tpu.memory_space<vmem>>, vector<1x128xf32>
    %39 = vector.shape_cast %38 : vector<1x128xf32> to vector<128xf32>
    %c12 = arith.constant 12 : index
    %c0_47 = arith.constant 0 : index
    %40 = vector.load %arg4[%c12, %c0_47] : memref<27x128xf32, #tpu.memory_space<vmem>>, vector<1x128xf32>
    %41 = vector.shape_cast %40 : vector<1x128xf32> to vector<128xf32>
    %c13 = arith.constant 13 : index
    %c0_48 = arith.constant 0 : index
    %42 = vector.load %arg4[%c13, %c0_48] : memref<27x128xf32, #tpu.memory_space<vmem>>, vector<1x128xf32>
    %43 = vector.shape_cast %42 : vector<1x128xf32> to vector<128xf32>
    %c14 = arith.constant 14 : index
    %c0_49 = arith.constant 0 : index
    %44 = vector.load %arg4[%c14, %c0_49] : memref<27x128xf32, #tpu.memory_space<vmem>>, vector<1x128xf32>
    %45 = vector.shape_cast %44 : vector<1x128xf32> to vector<128xf32>
    %c15 = arith.constant 15 : index
    %c0_50 = arith.constant 0 : index
    %46 = vector.load %arg4[%c15, %c0_50] : memref<27x128xf32, #tpu.memory_space<vmem>>, vector<1x128xf32>
    %47 = vector.shape_cast %46 : vector<1x128xf32> to vector<128xf32>
    %c16_51 = arith.constant 16 : index
    %c0_52 = arith.constant 0 : index
    %48 = vector.load %arg4[%c16_51, %c0_52] : memref<27x128xf32, #tpu.memory_space<vmem>>, vector<1x128xf32>
    %49 = vector.shape_cast %48 : vector<1x128xf32> to vector<128xf32>
    %c17 = arith.constant 17 : index
    %c0_53 = arith.constant 0 : index
    %50 = vector.load %arg4[%c17, %c0_53] : memref<27x128xf32, #tpu.memory_space<vmem>>, vector<1x128xf32>
    %51 = vector.shape_cast %50 : vector<1x128xf32> to vector<128xf32>
    %c18 = arith.constant 18 : index
    %c0_54 = arith.constant 0 : index
    %52 = vector.load %arg4[%c18, %c0_54] : memref<27x128xf32, #tpu.memory_space<vmem>>, vector<1x128xf32>
    %53 = vector.shape_cast %52 : vector<1x128xf32> to vector<128xf32>
    %c19 = arith.constant 19 : index
    %c0_55 = arith.constant 0 : index
    %54 = vector.load %arg4[%c19, %c0_55] : memref<27x128xf32, #tpu.memory_space<vmem>>, vector<1x128xf32>
    %55 = vector.shape_cast %54 : vector<1x128xf32> to vector<128xf32>
    %c20 = arith.constant 20 : index
    %c0_56 = arith.constant 0 : index
    %56 = vector.load %arg4[%c20, %c0_56] : memref<27x128xf32, #tpu.memory_space<vmem>>, vector<1x128xf32>
    %57 = vector.shape_cast %56 : vector<1x128xf32> to vector<128xf32>
    %c21 = arith.constant 21 : index
    %c0_57 = arith.constant 0 : index
    %58 = vector.load %arg4[%c21, %c0_57] : memref<27x128xf32, #tpu.memory_space<vmem>>, vector<1x128xf32>
    %59 = vector.shape_cast %58 : vector<1x128xf32> to vector<128xf32>
    %c22 = arith.constant 22 : index
    %c0_58 = arith.constant 0 : index
    %60 = vector.load %arg4[%c22, %c0_58] : memref<27x128xf32, #tpu.memory_space<vmem>>, vector<1x128xf32>
    %61 = vector.shape_cast %60 : vector<1x128xf32> to vector<128xf32>
    %c23 = arith.constant 23 : index
    %c0_59 = arith.constant 0 : index
    %62 = vector.load %arg4[%c23, %c0_59] : memref<27x128xf32, #tpu.memory_space<vmem>>, vector<1x128xf32>
    %63 = vector.shape_cast %62 : vector<1x128xf32> to vector<128xf32>
    %c24 = arith.constant 24 : index
    %c0_60 = arith.constant 0 : index
    %64 = vector.load %arg4[%c24, %c0_60] : memref<27x128xf32, #tpu.memory_space<vmem>>, vector<1x128xf32>
    %65 = vector.shape_cast %64 : vector<1x128xf32> to vector<128xf32>
    %c25 = arith.constant 25 : index
    %c0_61 = arith.constant 0 : index
    %66 = vector.load %arg4[%c25, %c0_61] : memref<27x128xf32, #tpu.memory_space<vmem>>, vector<1x128xf32>
    %67 = vector.shape_cast %66 : vector<1x128xf32> to vector<128xf32>
    %c26 = arith.constant 26 : index
    %c0_62 = arith.constant 0 : index
    %68 = vector.load %arg4[%c26, %c0_62] : memref<27x128xf32, #tpu.memory_space<vmem>>, vector<1x128xf32>
    %69 = vector.shape_cast %68 : vector<1x128xf32> to vector<128xf32>
    %c0_i32_63 = arith.constant 0 : i32
    %c8_i32_64 = arith.constant 8 : i32
    %70 = arith.addi %c0_i32_63, %c8_i32_64 : i32
    %c1_i32_65 = arith.constant 1 : i32
    scf.for %arg9 = %c0_i32_63 to %70 step %c1_i32_65  : i32 {
      %cst_67 = arith.constant 0.000000e+00 : f32
      %71 = vector.broadcast %cst_67 : f32 to vector<8x8x128xf32>
      %c0_i32_68 = arith.constant 0 : i32
      %72 = arith.addi %arg9, %c0_i32_68 : i32
      %73 = arith.index_cast %72 : i32 to index
      %c0_69 = arith.constant 0 : index
      %c0_70 = arith.constant 0 : index
      %c0_71 = arith.constant 0 : index
      %74 = vector.load %arg8[%73, %c0_69, %c0_70, %c0_71] : memref<10x10x24x128xf32, #tpu.memory_space<vmem>>, vector<1x10x24x128xf32>
      %75 = vector.shape_cast %74 : vector<1x10x24x128xf32> to vector<10x24x128xf32>
      %76 = vector.extract_strided_slice %75 {offsets = [0, 0, 0], sizes = [10, 16, 128], strides = [1, 1, 1]} : vector<10x24x128xf32> to vector<10x16x128xf32>
      %c9_i32 = arith.constant 9 : i32
      %77 = tpu.dynamic_rotate %76 by %c9_i32 dim 1 : vector<10x16x128xf32>, i32 -> vector<10x16x128xf32>
      %78 = vector.extract_strided_slice %77 {offsets = [0, 0, 0], sizes = [10, 8, 128], strides = [1, 1, 1]} : vector<10x16x128xf32> to vector<10x8x128xf32>
      %79 = vector.extract_strided_slice %75 {offsets = [0, 8, 0], sizes = [10, 8, 128], strides = [1, 1, 1]} : vector<10x24x128xf32> to vector<10x8x128xf32>
      %80 = vector.extract_strided_slice %75 {offsets = [0, 8, 0], sizes = [10, 16, 128], strides = [1, 1, 1]} : vector<10x24x128xf32> to vector<10x16x128xf32>
      %c15_i32 = arith.constant 15 : i32
      %81 = tpu.dynamic_rotate %80 by %c15_i32 dim 1 : vector<10x16x128xf32>, i32 -> vector<10x16x128xf32>
      %82 = vector.extract_strided_slice %81 {offsets = [0, 0, 0], sizes = [10, 8, 128], strides = [1, 1, 1]} : vector<10x16x128xf32> to vector<10x8x128xf32>
      %83 = vector.extract_strided_slice %78 {offsets = [0, 0, 0], sizes = [8, 8, 128], strides = [1, 1, 1]} : vector<10x8x128xf32> to vector<8x8x128xf32>
      %84 = vector.shape_cast %17 : vector<128xf32> to vector<1x1x128xf32>
      %85 = vector.broadcast %84 : vector<1x1x128xf32> to vector<8x8x128xf32>
      %86 = arith.mulf %83, %85 : vector<8x8x128xf32>
      %87 = arith.addf %71, %86 : vector<8x8x128xf32>
      %88 = vector.extract_strided_slice %78 {offsets = [1, 0, 0], sizes = [8, 8, 128], strides = [1, 1, 1]} : vector<10x8x128xf32> to vector<8x8x128xf32>
      %89 = vector.shape_cast %23 : vector<128xf32> to vector<1x1x128xf32>
      %90 = vector.broadcast %89 : vector<1x1x128xf32> to vector<8x8x128xf32>
      %91 = arith.mulf %88, %90 : vector<8x8x128xf32>
      %92 = arith.addf %87, %91 : vector<8x8x128xf32>
      %93 = vector.extract_strided_slice %78 {offsets = [2, 0, 0], sizes = [8, 8, 128], strides = [1, 1, 1]} : vector<10x8x128xf32> to vector<8x8x128xf32>
      %94 = vector.shape_cast %29 : vector<128xf32> to vector<1x1x128xf32>
      %95 = vector.broadcast %94 : vector<1x1x128xf32> to vector<8x8x128xf32>
      %96 = arith.mulf %93, %95 : vector<8x8x128xf32>
      %97 = arith.addf %92, %96 : vector<8x8x128xf32>
      %98 = vector.extract_strided_slice %79 {offsets = [0, 0, 0], sizes = [8, 8, 128], strides = [1, 1, 1]} : vector<10x8x128xf32> to vector<8x8x128xf32>
      %99 = vector.shape_cast %19 : vector<128xf32> to vector<1x1x128xf32>
      %100 = vector.broadcast %99 : vector<1x1x128xf32> to vector<8x8x128xf32>
      %101 = arith.mulf %98, %100 : vector<8x8x128xf32>
      %102 = arith.addf %97, %101 : vector<8x8x128xf32>
      %103 = vector.extract_strided_slice %79 {offsets = [1, 0, 0], sizes = [8, 8, 128], strides = [1, 1, 1]} : vector<10x8x128xf32> to vector<8x8x128xf32>
      %104 = vector.shape_cast %25 : vector<128xf32> to vector<1x1x128xf32>
      %105 = vector.broadcast %104 : vector<1x1x128xf32> to vector<8x8x128xf32>
      %106 = arith.mulf %103, %105 : vector<8x8x128xf32>
      %107 = arith.addf %102, %106 : vector<8x8x128xf32>
      %108 = vector.extract_strided_slice %79 {offsets = [2, 0, 0], sizes = [8, 8, 128], strides = [1, 1, 1]} : vector<10x8x128xf32> to vector<8x8x128xf32>
      %109 = vector.shape_cast %31 : vector<128xf32> to vector<1x1x128xf32>
      %110 = vector.broadcast %109 : vector<1x1x128xf32> to vector<8x8x128xf32>
      %111 = arith.mulf %108, %110 : vector<8x8x128xf32>
      %112 = arith.addf %107, %111 : vector<8x8x128xf32>
      %113 = vector.extract_strided_slice %82 {offsets = [0, 0, 0], sizes = [8, 8, 128], strides = [1, 1, 1]} : vector<10x8x128xf32> to vector<8x8x128xf32>
      %114 = vector.shape_cast %21 : vector<128xf32> to vector<1x1x128xf32>
      %115 = vector.broadcast %114 : vector<1x1x128xf32> to vector<8x8x128xf32>
      %116 = arith.mulf %113, %115 : vector<8x8x128xf32>
      %117 = arith.addf %112, %116 : vector<8x8x128xf32>
      %118 = vector.extract_strided_slice %82 {offsets = [1, 0, 0], sizes = [8, 8, 128], strides = [1, 1, 1]} : vector<10x8x128xf32> to vector<8x8x128xf32>
      %119 = vector.shape_cast %27 : vector<128xf32> to vector<1x1x128xf32>
      %120 = vector.broadcast %119 : vector<1x1x128xf32> to vector<8x8x128xf32>
      %121 = arith.mulf %118, %120 : vector<8x8x128xf32>
      %122 = arith.addf %117, %121 : vector<8x8x128xf32>
      %123 = vector.extract_strided_slice %82 {offsets = [2, 0, 0], sizes = [8, 8, 128], strides = [1, 1, 1]} : vector<10x8x128xf32> to vector<8x8x128xf32>
      %124 = vector.shape_cast %33 : vector<128xf32> to vector<1x1x128xf32>
      %125 = vector.broadcast %124 : vector<1x1x128xf32> to vector<8x8x128xf32>
      %126 = arith.mulf %123, %125 : vector<8x8x128xf32>
      %127 = arith.addf %122, %126 : vector<8x8x128xf32>
      %c1_i32_72 = arith.constant 1 : i32
      %128 = arith.addi %arg9, %c1_i32_72 : i32
      %129 = arith.index_cast %128 : i32 to index
      %c0_73 = arith.constant 0 : index
      %c0_74 = arith.constant 0 : index
      %c0_75 = arith.constant 0 : index
      %130 = vector.load %arg8[%129, %c0_73, %c0_74, %c0_75] : memref<10x10x24x128xf32, #tpu.memory_space<vmem>>, vector<1x10x24x128xf32>
      %131 = vector.shape_cast %130 : vector<1x10x24x128xf32> to vector<10x24x128xf32>
      %132 = vector.extract_strided_slice %131 {offsets = [0, 0, 0], sizes = [10, 16, 128], strides = [1, 1, 1]} : vector<10x24x128xf32> to vector<10x16x128xf32>
      %c9_i32_76 = arith.constant 9 : i32
      %133 = tpu.dynamic_rotate %132 by %c9_i32_76 dim 1 : vector<10x16x128xf32>, i32 -> vector<10x16x128xf32>
      %134 = vector.extract_strided_slice %133 {offsets = [0, 0, 0], sizes = [10, 8, 128], strides = [1, 1, 1]} : vector<10x16x128xf32> to vector<10x8x128xf32>
      %135 = vector.extract_strided_slice %131 {offsets = [0, 8, 0], sizes = [10, 8, 128], strides = [1, 1, 1]} : vector<10x24x128xf32> to vector<10x8x128xf32>
      %136 = vector.extract_strided_slice %131 {offsets = [0, 8, 0], sizes = [10, 16, 128], strides = [1, 1, 1]} : vector<10x24x128xf32> to vector<10x16x128xf32>
      %c15_i32_77 = arith.constant 15 : i32
      %137 = tpu.dynamic_rotate %136 by %c15_i32_77 dim 1 : vector<10x16x128xf32>, i32 -> vector<10x16x128xf32>
      %138 = vector.extract_strided_slice %137 {offsets = [0, 0, 0], sizes = [10, 8, 128], strides = [1, 1, 1]} : vector<10x16x128xf32> to vector<10x8x128xf32>
      %139 = vector.extract_strided_slice %134 {offsets = [0, 0, 0], sizes = [8, 8, 128], strides = [1, 1, 1]} : vector<10x8x128xf32> to vector<8x8x128xf32>
      %140 = vector.shape_cast %35 : vector<128xf32> to vector<1x1x128xf32>
      %141 = vector.broadcast %140 : vector<1x1x128xf32> to vector<8x8x128xf32>
      %142 = arith.mulf %139, %141 : vector<8x8x128xf32>
      %143 = arith.addf %127, %142 : vector<8x8x128xf32>
      %144 = vector.extract_strided_slice %134 {offsets = [1, 0, 0], sizes = [8, 8, 128], strides = [1, 1, 1]} : vector<10x8x128xf32> to vector<8x8x128xf32>
      %145 = vector.shape_cast %41 : vector<128xf32> to vector<1x1x128xf32>
      %146 = vector.broadcast %145 : vector<1x1x128xf32> to vector<8x8x128xf32>
      %147 = arith.mulf %144, %146 : vector<8x8x128xf32>
      %148 = arith.addf %143, %147 : vector<8x8x128xf32>
      %149 = vector.extract_strided_slice %134 {offsets = [2, 0, 0], sizes = [8, 8, 128], strides = [1, 1, 1]} : vector<10x8x128xf32> to vector<8x8x128xf32>
      %150 = vector.shape_cast %47 : vector<128xf32> to vector<1x1x128xf32>
      %151 = vector.broadcast %150 : vector<1x1x128xf32> to vector<8x8x128xf32>
      %152 = arith.mulf %149, %151 : vector<8x8x128xf32>
      %153 = arith.addf %148, %152 : vector<8x8x128xf32>
      %154 = vector.extract_strided_slice %135 {offsets = [0, 0, 0], sizes = [8, 8, 128], strides = [1, 1, 1]} : vector<10x8x128xf32> to vector<8x8x128xf32>
      %155 = vector.shape_cast %37 : vector<128xf32> to vector<1x1x128xf32>
      %156 = vector.broadcast %155 : vector<1x1x128xf32> to vector<8x8x128xf32>
      %157 = arith.mulf %154, %156 : vector<8x8x128xf32>
      %158 = arith.addf %153, %157 : vector<8x8x128xf32>
      %159 = vector.extract_strided_slice %135 {offsets = [1, 0, 0], sizes = [8, 8, 128], strides = [1, 1, 1]} : vector<10x8x128xf32> to vector<8x8x128xf32>
      %160 = vector.shape_cast %43 : vector<128xf32> to vector<1x1x128xf32>
      %161 = vector.broadcast %160 : vector<1x1x128xf32> to vector<8x8x128xf32>
      %162 = arith.mulf %159, %161 : vector<8x8x128xf32>
      %163 = arith.addf %158, %162 : vector<8x8x128xf32>
      %164 = vector.extract_strided_slice %135 {offsets = [2, 0, 0], sizes = [8, 8, 128], strides = [1, 1, 1]} : vector<10x8x128xf32> to vector<8x8x128xf32>
      %165 = vector.shape_cast %49 : vector<128xf32> to vector<1x1x128xf32>
      %166 = vector.broadcast %165 : vector<1x1x128xf32> to vector<8x8x128xf32>
      %167 = arith.mulf %164, %166 : vector<8x8x128xf32>
      %168 = arith.addf %163, %167 : vector<8x8x128xf32>
      %169 = vector.extract_strided_slice %138 {offsets = [0, 0, 0], sizes = [8, 8, 128], strides = [1, 1, 1]} : vector<10x8x128xf32> to vector<8x8x128xf32>
      %170 = vector.shape_cast %39 : vector<128xf32> to vector<1x1x128xf32>
      %171 = vector.broadcast %170 : vector<1x1x128xf32> to vector<8x8x128xf32>
      %172 = arith.mulf %169, %171 : vector<8x8x128xf32>
      %173 = arith.addf %168, %172 : vector<8x8x128xf32>
      %174 = vector.extract_strided_slice %138 {offsets = [1, 0, 0], sizes = [8, 8, 128], strides = [1, 1, 1]} : vector<10x8x128xf32> to vector<8x8x128xf32>
      %175 = vector.shape_cast %45 : vector<128xf32> to vector<1x1x128xf32>
      %176 = vector.broadcast %175 : vector<1x1x128xf32> to vector<8x8x128xf32>
      %177 = arith.mulf %174, %176 : vector<8x8x128xf32>
      %178 = arith.addf %173, %177 : vector<8x8x128xf32>
      %179 = vector.extract_strided_slice %138 {offsets = [2, 0, 0], sizes = [8, 8, 128], strides = [1, 1, 1]} : vector<10x8x128xf32> to vector<8x8x128xf32>
      %180 = vector.shape_cast %51 : vector<128xf32> to vector<1x1x128xf32>
      %181 = vector.broadcast %180 : vector<1x1x128xf32> to vector<8x8x128xf32>
      %182 = arith.mulf %179, %181 : vector<8x8x128xf32>
      %183 = arith.addf %178, %182 : vector<8x8x128xf32>
      %c2_i32 = arith.constant 2 : i32
      %184 = arith.addi %arg9, %c2_i32 : i32
      %185 = arith.index_cast %184 : i32 to index
      %c0_78 = arith.constant 0 : index
      %c0_79 = arith.constant 0 : index
      %c0_80 = arith.constant 0 : index
      %186 = vector.load %arg8[%185, %c0_78, %c0_79, %c0_80] : memref<10x10x24x128xf32, #tpu.memory_space<vmem>>, vector<1x10x24x128xf32>
      %187 = vector.shape_cast %186 : vector<1x10x24x128xf32> to vector<10x24x128xf32>
      %188 = vector.extract_strided_slice %187 {offsets = [0, 0, 0], sizes = [10, 16, 128], strides = [1, 1, 1]} : vector<10x24x128xf32> to vector<10x16x128xf32>
      %c9_i32_81 = arith.constant 9 : i32
      %189 = tpu.dynamic_rotate %188 by %c9_i32_81 dim 1 : vector<10x16x128xf32>, i32 -> vector<10x16x128xf32>
      %190 = vector.extract_strided_slice %189 {offsets = [0, 0, 0], sizes = [10, 8, 128], strides = [1, 1, 1]} : vector<10x16x128xf32> to vector<10x8x128xf32>
      %191 = vector.extract_strided_slice %187 {offsets = [0, 8, 0], sizes = [10, 8, 128], strides = [1, 1, 1]} : vector<10x24x128xf32> to vector<10x8x128xf32>
      %192 = vector.extract_strided_slice %187 {offsets = [0, 8, 0], sizes = [10, 16, 128], strides = [1, 1, 1]} : vector<10x24x128xf32> to vector<10x16x128xf32>
      %c15_i32_82 = arith.constant 15 : i32
      %193 = tpu.dynamic_rotate %192 by %c15_i32_82 dim 1 : vector<10x16x128xf32>, i32 -> vector<10x16x128xf32>
      %194 = vector.extract_strided_slice %193 {offsets = [0, 0, 0], sizes = [10, 8, 128], strides = [1, 1, 1]} : vector<10x16x128xf32> to vector<10x8x128xf32>
      %195 = vector.extract_strided_slice %190 {offsets = [0, 0, 0], sizes = [8, 8, 128], strides = [1, 1, 1]} : vector<10x8x128xf32> to vector<8x8x128xf32>
      %196 = vector.shape_cast %53 : vector<128xf32> to vector<1x1x128xf32>
      %197 = vector.broadcast %196 : vector<1x1x128xf32> to vector<8x8x128xf32>
      %198 = arith.mulf %195, %197 : vector<8x8x128xf32>
      %199 = arith.addf %183, %198 : vector<8x8x128xf32>
      %200 = vector.extract_strided_slice %190 {offsets = [1, 0, 0], sizes = [8, 8, 128], strides = [1, 1, 1]} : vector<10x8x128xf32> to vector<8x8x128xf32>
      %201 = vector.shape_cast %59 : vector<128xf32> to vector<1x1x128xf32>
      %202 = vector.broadcast %201 : vector<1x1x128xf32> to vector<8x8x128xf32>
      %203 = arith.mulf %200, %202 : vector<8x8x128xf32>
      %204 = arith.addf %199, %203 : vector<8x8x128xf32>
      %205 = vector.extract_strided_slice %190 {offsets = [2, 0, 0], sizes = [8, 8, 128], strides = [1, 1, 1]} : vector<10x8x128xf32> to vector<8x8x128xf32>
      %206 = vector.shape_cast %65 : vector<128xf32> to vector<1x1x128xf32>
      %207 = vector.broadcast %206 : vector<1x1x128xf32> to vector<8x8x128xf32>
      %208 = arith.mulf %205, %207 : vector<8x8x128xf32>
      %209 = arith.addf %204, %208 : vector<8x8x128xf32>
      %210 = vector.extract_strided_slice %191 {offsets = [0, 0, 0], sizes = [8, 8, 128], strides = [1, 1, 1]} : vector<10x8x128xf32> to vector<8x8x128xf32>
      %211 = vector.shape_cast %55 : vector<128xf32> to vector<1x1x128xf32>
      %212 = vector.broadcast %211 : vector<1x1x128xf32> to vector<8x8x128xf32>
      %213 = arith.mulf %210, %212 : vector<8x8x128xf32>
      %214 = arith.addf %209, %213 : vector<8x8x128xf32>
      %215 = vector.extract_strided_slice %191 {offsets = [1, 0, 0], sizes = [8, 8, 128], strides = [1, 1, 1]} : vector<10x8x128xf32> to vector<8x8x128xf32>
      %216 = vector.shape_cast %61 : vector<128xf32> to vector<1x1x128xf32>
      %217 = vector.broadcast %216 : vector<1x1x128xf32> to vector<8x8x128xf32>
      %218 = arith.mulf %215, %217 : vector<8x8x128xf32>
      %219 = arith.addf %214, %218 : vector<8x8x128xf32>
      %220 = vector.extract_strided_slice %191 {offsets = [2, 0, 0], sizes = [8, 8, 128], strides = [1, 1, 1]} : vector<10x8x128xf32> to vector<8x8x128xf32>
      %221 = vector.shape_cast %67 : vector<128xf32> to vector<1x1x128xf32>
      %222 = vector.broadcast %221 : vector<1x1x128xf32> to vector<8x8x128xf32>
      %223 = arith.mulf %220, %222 : vector<8x8x128xf32>
      %224 = arith.addf %219, %223 : vector<8x8x128xf32>
      %225 = vector.extract_strided_slice %194 {offsets = [0, 0, 0], sizes = [8, 8, 128], strides = [1, 1, 1]} : vector<10x8x128xf32> to vector<8x8x128xf32>
      %226 = vector.shape_cast %57 : vector<128xf32> to vector<1x1x128xf32>
      %227 = vector.broadcast %226 : vector<1x1x128xf32> to vector<8x8x128xf32>
      %228 = arith.mulf %225, %227 : vector<8x8x128xf32>
      %229 = arith.addf %224, %228 : vector<8x8x128xf32>
      %230 = vector.extract_strided_slice %194 {offsets = [1, 0, 0], sizes = [8, 8, 128], strides = [1, 1, 1]} : vector<10x8x128xf32> to vector<8x8x128xf32>
      %231 = vector.shape_cast %63 : vector<128xf32> to vector<1x1x128xf32>
      %232 = vector.broadcast %231 : vector<1x1x128xf32> to vector<8x8x128xf32>
      %233 = arith.mulf %230, %232 : vector<8x8x128xf32>
      %234 = arith.addf %229, %233 : vector<8x8x128xf32>
      %235 = vector.extract_strided_slice %194 {offsets = [2, 0, 0], sizes = [8, 8, 128], strides = [1, 1, 1]} : vector<10x8x128xf32> to vector<8x8x128xf32>
      %236 = vector.shape_cast %69 : vector<128xf32> to vector<1x1x128xf32>
      %237 = vector.broadcast %236 : vector<1x1x128xf32> to vector<8x8x128xf32>
      %238 = arith.mulf %235, %237 : vector<8x8x128xf32>
      %239 = arith.addf %234, %238 : vector<8x8x128xf32>
      %240 = vector.shape_cast %15 : vector<1x128xf32> to vector<1x1x128xf32>
      %241 = vector.broadcast %240 : vector<1x1x128xf32> to vector<8x8x128xf32>
      %242 = arith.addf %239, %241 : vector<8x8x128xf32>
      %cst_83 = arith.constant 0.000000e+00 : f32
      %243 = vector.broadcast %cst_83 : f32 to vector<8x8x128xf32>
      %244 = arith.maximumf %242, %243 : vector<8x8x128xf32>
      %c0_84 = arith.constant 0 : index
      %245 = arith.index_cast %arg9 : i32 to index
      %c0_85 = arith.constant 0 : index
      %c0_86 = arith.constant 0 : index
      %c0_87 = arith.constant 0 : index
      %246 = vector.load %arg7[%c0_84, %245, %c0_85, %c0_86, %c0_87] : memref<1x8x8x8x128xf32, #tpu.memory_space<vmem>>, vector<1x1x8x8x128xf32>
      %247 = vector.shape_cast %246 : vector<1x1x8x8x128xf32> to vector<8x8x128xf32>
      %248 = vector.shape_cast %244 : vector<8x8x128xf32> to vector<1x1x8x8x128xf32>
      tpu.vector_store %arg7[%c0_84, %245, %c0_85, %c0_86, %c0_87], %248 {strides = array<i32>} : memref<1x8x8x8x128xf32, #tpu.memory_space<vmem>>, vector<1x1x8x8x128xf32>,
    }
    %c8_i32_66 = arith.constant 8 : i32
    return
  }
  func.func @transform_0(%arg0: i32, %arg1: i32) -> (i32, i32, i32, i32) {
    %c0_i32 = arith.constant 0 : i32
    %c0_i32_0 = arith.constant 0 : i32
    %c0_i32_1 = arith.constant 0 : i32
    %c0_i32_2 = arith.constant 0 : i32
    return %arg0, %c0_i32, %c0_i32_0, %c0_i32_1 : i32, i32, i32, i32
  }
  func.func @transform_1(%arg0: i32, %arg1: i32) -> (i32, i32) {
    %c0_i32 = arith.constant 0 : i32
    %c0_i32_0 = arith.constant 0 : i32
    return %c0_i32, %arg1 : i32, i32
  }
  func.func @transform_2(%arg0: i32, %arg1: i32) -> (i32, i32) {
    %c0_i32 = arith.constant 0 : i32
    %c0_i32_0 = arith.constant 0 : i32
    return %c0_i32, %arg1 : i32, i32
  }
  func.func @transform_3(%arg0: i32, %arg1: i32) -> (i32, i32) {
    %c0_i32 = arith.constant 0 : i32
    %c0_i32_0 = arith.constant 0 : i32
    return %c0_i32, %arg1 : i32, i32
  }
  func.func @transform_4(%arg0: i32, %arg1: i32) -> (i32, i32) {
    %c0_i32 = arith.constant 0 : i32
    %c0_i32_0 = arith.constant 0 : i32
    return %c0_i32, %arg1 : i32, i32
  }
  func.func @transform_5(%arg0: i32, %arg1: i32) -> (i32, i32, i32, i32, i32) {
    %c0_i32 = arith.constant 0 : i32
    %c0_i32_0 = arith.constant 0 : i32
    %c0_i32_1 = arith.constant 0 : i32
    %c0_i32_2 = arith.constant 0 : i32
    return %arg0, %c0_i32, %c0_i32_0, %c0_i32_1, %arg1 : i32, i32, i32, i32, i32
  }
}

</mosaic_0001>

<llo_original>
// kernel: tpu_custom_call.1
$region0: #{tpu_custom_call.1}
  #allocation0 [shape = 'u32[]', space=smem, size = 0x4, offset = 0x4, fixed_abs, tag = 'smem constant byte address 0x4 - core index']
  #allocation1 [shape = 'u32[144,128]{1,0:T(1,128)}', space=vmem, size = 0x12000, scoped, tag = 'internal scratch']
  #allocation2 [shape = 'f32[10,10,24,128]{3,2,1,0:T(8,128)}', space=vmem, size = 0x12c000, scoped, tag = 'scratch operand']
  %s0 = inlined_call_operand.vmem [shape: f32[2,8,64,48], index: 0, kind: input, shape index: {}]
  %s1 = inlined_call_operand.vmem [shape: f32[48,128], index: 1, kind: input, shape index: {}]
  %s2 = inlined_call_operand.vmem [shape: f32[27,128], index: 2, kind: input, shape index: {}]
  %s3 = inlined_call_operand.vmem [shape: f32[1,128], index: 3, kind: input, shape index: {}]
  %s4 = inlined_call_operand.vmem [shape: f32[1,128], index: 4, kind: input, shape index: {}]
  %s5 = inlined_call_operand.hbm [shape: f32[2,8,8,8,128], index: 5, kind: output, shape index: {}]
  %s6 = sld [smem:[#allocation0]]
  $region67: #{tpu_custom_call.1} parent=0
    _
  %s8 = ssub.s32 1, %s6
  %s9 = scalar_select 0, %s8, %s6
  $region1: #{tpu_custom_call.1} parent=0
    #allocation3 [shape = 'u8[524288]{0}', space=vmem, size = 0x80000, scoped, tag = 'output window, operand 0']
    #allocation4 [shape = 's32[2]{0}', space=sflag, size = 0x8, scoped, tag = 'scoped memory for tpu_custom_call.1']
    %10 = vsyncpa [#allocation4], 0
    %s11 = scalar_lea.sflag [#allocation4], 1
    %12 = vsyncpa %s11, 0
    loop: start=0, step=1, limit=4
    $region2: #{tpu_custom_call.1} parent=1 // loop_pre_header
      _
    $region3: #{tpu_custom_call.1} parent=1 // loop_header
      %s14 = sphi 0, %s18
      %p15 = scmp.ge.s32.totalorder %s14, 4
      %s21 = sphi 0, %s33
      %s22 = sphi 0, %s29
      %s23 = sphi 0, %s21
      %s24 = sphi 0, %s22
      %s25 = sphi 0, %s23
      %s26 = sphi 0, %s24
      %s36 = sphi 0, %s38
      %s39 = sphi 0, %s36
      %s40 = sphi 0, %s39
      %s56 = sphi 0, %s40
      %s62 = sphi 0, %s64
      %s65 = sphi 0, %s62
      %s66 = sphi 0, %s65
      %s82 = sphi 0, %s66
      %s88 = sphi 0, %s90
      %s91 = sphi 0, %s88
      %s92 = sphi 0, %s91
      %s108 = sphi 0, %s92
      %s114 = sphi 0, %s116
      %s117 = sphi 0, %s114
      %s118 = sphi 0, %s117
      %s134 = sphi 0, %s118
      %s140 = sphi 0, %s142
      %s143 = sphi 0, %s140
      %s144 = sphi 0, %s143
      %s160 = sphi 0, %s144
      %s168 = sphi 0, %s170
      %s171 = sphi 0, %s168
      %s172 = sphi 0, %s171
      %s188 = sphi 0, %s172
    $region4: #{tpu_custom_call.1} parent=1 // loop_header_branch
      %17 = sbr.rel (%p15) target = $region8
    $region5: #{tpu_custom_call.1} parent=1 // loop_body
      %s19 = ssub.s32 %s14, 1
      %s20 = ssub.s32 %s14, 2
      %s27 = sadd.s32 1, %s22
      %p28 = scmp.ge.s32.totalorder %s27, 1
      %s29 = scalar_select %p28, 0, %s27
      %s30 = sadd.s32 1, %s21
      %s31 = scalar_select %p28, %s30, %s21
      %p32 = scmp.ge.s32.totalorder %s31, 2
      %s33 = scalar_select %p32, 0, %s31
      %s34 = ssub.s32 %s21, %s33
      %p35 = scmp.eq.s32.totalorder %s34, 0
      %s37 = sadd.s32 %s36, 1
      %s38 = scalar_select %p35, %s36, %s37
      %p41 = pneg %p35
      %p42 = scmp.eq.s32.totalorder %s14, 1
      %p43 = por %p41, %p42
      %p44 = scmp.ne.s32.totalorder %s36, %s39
      %p45 = scmp.eq.s32.totalorder %s14, 0
      %p46 = por %p44, %p45
      %p47 = scmp.ne.s32.totalorder %s36, %s39
      %p48 = scmp.eq.s32.totalorder %s19, 1
      %p49 = por %p47, %p48
      %p50 = scmp.ne.s32.totalorder %s39, %s40
      %p51 = scmp.eq.s32.totalorder %s19, 0
      %p52 = por %p50, %p51
      %p53 = scmp.ne.s32.totalorder %s39, %s40
      %p54 = scmp.eq.s32.totalorder %s20, 1
      %p55 = por %p53, %p54
      %p57 = scmp.ne.s32.totalorder %s40, %s56
      %p58 = scmp.eq.s32.totalorder %s20, 0
      %p59 = por %p57, %p58
      %s60 = ssub.s32 %s22, %s29
      %p61 = scmp.eq.s32.totalorder %s60, 0
      %s63 = sadd.s32 %s62, 1
      %s64 = scalar_select %p61, %s62, %s63
      %p67 = pneg %p61
      %p68 = scmp.eq.s32.totalorder %s14, 1
      %p69 = por %p67, %p68
      %p70 = scmp.ne.s32.totalorder %s62, %s65
      %p71 = scmp.eq.s32.totalorder %s14, 0
      %p72 = por %p70, %p71
      %p73 = scmp.ne.s32.totalorder %s62, %s65
      %p74 = scmp.eq.s32.totalorder %s19, 1
      %p75 = por %p73, %p74
      %p76 = scmp.ne.s32.totalorder %s65, %s66
      %p77 = scmp.eq.s32.totalorder %s19, 0
      %p78 = por %p76, %p77
      %p79 = scmp.ne.s32.totalorder %s65, %s66
      %p80 = scmp.eq.s32.totalorder %s20, 1
      %p81 = por %p79, %p80
      %p83 = scmp.ne.s32.totalorder %s66, %s82
      %p84 = scmp.eq.s32.totalorder %s20, 0
      %p85 = por %p83, %p84
      %s86 = ssub.s32 %s22, %s29
      %p87 = scmp.eq.s32.totalorder %s86, 0
      %s89 = sadd.s32 %s88, 1
      %s90 = scalar_select %p87, %s88, %s89
      %p93 = pneg %p87
      %p94 = scmp.eq.s32.totalorder %s14, 1
      %p95 = por %p93, %p94
      %p96 = scmp.ne.s32.totalorder %s88, %s91
      %p97 = scmp.eq.s32.totalorder %s14, 0
      %p98 = por %p96, %p97
      %p99 = scmp.ne.s32.totalorder %s88, %s91
      %p100 = scmp.eq.s32.totalorder %s19, 1
      %p101 = por %p99, %p100
      %p102 = scmp.ne.s32.totalorder %s91, %s92
      %p103 = scmp.eq.s32.totalorder %s19, 0
      %p104 = por %p102, %p103
      %p105 = scmp.ne.s32.totalorder %s91, %s92
      %p106 = scmp.eq.s32.totalorder %s20, 1
      %p107 = por %p105, %p106
      %p109 = scmp.ne.s32.totalorder %s92, %s108
      %p110 = scmp.eq.s32.totalorder %s20, 0
      %p111 = por %p109, %p110
      %s112 = ssub.s32 %s22, %s29
      %p113 = scmp.eq.s32.totalorder %s112, 0
      %s115 = sadd.s32 %s114, 1
      %s116 = scalar_select %p113, %s114, %s115
      %p119 = pneg %p113
      %p120 = scmp.eq.s32.totalorder %s14, 1
      %p121 = por %p119, %p120
      %p122 = scmp.ne.s32.totalorder %s114, %s117
      %p123 = scmp.eq.s32.totalorder %s14, 0
      %p124 = por %p122, %p123
      %p125 = scmp.ne.s32.totalorder %s114, %s117
      %p126 = scmp.eq.s32.totalorder %s19, 1
      %p127 = por %p125, %p126
      %p128 = scmp.ne.s32.totalorder %s117, %s118
      %p129 = scmp.eq.s32.totalorder %s19, 0
      %p130 = por %p128, %p129
      %p131 = scmp.ne.s32.totalorder %s117, %s118
      %p132 = scmp.eq.s32.totalorder %s20, 1
      %p133 = por %p131, %p132
      %p135 = scmp.ne.s32.totalorder %s118, %s134
      %p136 = scmp.eq.s32.totalorder %s20, 0
      %p137 = por %p135, %p136
      %s138 = ssub.s32 %s22, %s29
      %p139 = scmp.eq.s32.totalorder %s138, 0
      %s141 = sadd.s32 %s140, 1
      %s142 = scalar_select %p139, %s140, %s141
      %p145 = pneg %p139
      %p146 = scmp.eq.s32.totalorder %s14, 1
      %p147 = por %p145, %p146
      %p148 = scmp.ne.s32.totalorder %s140, %s143
      %p149 = scmp.eq.s32.totalorder %s14, 0
      %p150 = por %p148, %p149
      %p151 = scmp.ne.s32.totalorder %s140, %s143
      %p152 = scmp.eq.s32.totalorder %s19, 1
      %p153 = por %p151, %p152
      %p154 = scmp.ne.s32.totalorder %s143, %s144
      %p155 = scmp.eq.s32.totalorder %s19, 0
      %p156 = por %p154, %p155
      %p157 = scmp.ne.s32.totalorder %s143, %s144
      %p158 = scmp.eq.s32.totalorder %s20, 1
      %p159 = por %p157, %p158
      %p161 = scmp.ne.s32.totalorder %s144, %s160
      %p162 = scmp.eq.s32.totalorder %s20, 0
      %p163 = por %p161, %p162
      %s164 = ssub.s32 %s21, %s33
      %s165 = ssub.s32 %s22, %s29
      %s166 = sor.u32 %s164, %s165
      %p167 = scmp.eq.s32.totalorder %s166, 0
      %s169 = sadd.s32 %s168, 1
      %s170 = scalar_select %p167, %s168, %s169
      %p173 = pneg %p167
      %p174 = scmp.eq.s32.totalorder %s14, 1
      %p175 = por %p173, %p174
      %p176 = scmp.ne.s32.totalorder %s168, %s171
      %p177 = scmp.eq.s32.totalorder %s14, 0
      %p178 = por %p176, %p177
      %p179 = scmp.ne.s32.totalorder %s168, %s171
      %p180 = scmp.eq.s32.totalorder %s19, 1
      %p181 = por %p179, %p180
      %p182 = scmp.ne.s32.totalorder %s171, %s172
      %p183 = scmp.eq.s32.totalorder %s19, 0
      %p184 = por %p182, %p183
      %p185 = scmp.ne.s32.totalorder %s171, %s172
      %p186 = scmp.eq.s32.totalorder %s20, 1
      %p187 = por %p185, %p186
      %p189 = scmp.ne.s32.totalorder %s172, %s188
      %p190 = scmp.eq.s32.totalorder %s20, 0
      %p191 = por %p189, %p190
      %p192 = scmp.le.s32.totalorder 1, %s14
      %p193 = scmp.lt.s32.totalorder %s14, 3
      %p194 = pnand %p192, %p193
      %p195 = pneg %p194
      // Predicated region
      $region9: #{tpu_custom_call.1} parent=5 // pred_check
        _
      $region10: #{tpu_custom_call.1} parent=5 // pred_check_branch
        %197 = sbr.rel (%p194) target = $region12
      $region11: #{tpu_custom_call.1} parent=5 // pred_region
        %s198 = ssub.s32 %s14, 1
        // Predicated region
        $region13: #{tpu_custom_call.1} parent=11 // pred_check
          %p199 = pneg %p78
        $region14: #{tpu_custom_call.1} parent=11 // pred_check_branch
          %201 = sbr.rel (%p199) target = $region16
        $region15: #{tpu_custom_call.1} parent=11 // pred_region
          %p202 = scmp.lt.s32.totalorder %s24, 0
          %s203 = scalar_select %p202, %s24, 0
          %s204 = smul.addr %s203, 8
          %s205 = scalar_lea.vmem %s1, %s204
        $region16: #{tpu_custom_call.1} parent=11 // pred_fallthru
          _
        // Predicated region
        $region17: #{tpu_custom_call.1} parent=11 // pred_check
          %p206 = pneg %p104
        $region18: #{tpu_custom_call.1} parent=11 // pred_check_branch
          %208 = sbr.rel (%p206) target = $region20
        $region19: #{tpu_custom_call.1} parent=11 // pred_region
          %p209 = scmp.lt.s32.totalorder %s24, 0
          %s210 = scalar_select %p209, %s24, 0
          %s211 = smul.addr %s210, 8
          %s212 = scalar_lea.vmem %s2, %s211
        $region20: #{tpu_custom_call.1} parent=11 // pred_fallthru
          _
        // Predicated region
        $region21: #{tpu_custom_call.1} parent=11 // pred_check
          %p213 = pneg %p130
        $region22: #{tpu_custom_call.1} parent=11 // pred_check_branch
          %215 = sbr.rel (%p213) target = $region24
        $region23: #{tpu_custom_call.1} parent=11 // pred_region
          %p216 = scmp.lt.s32.totalorder %s24, 0
          %s217 = scalar_select %p216, %s24, 0
          %s218 = scalar_lea.vmem %s3, %s217
        $region24: #{tpu_custom_call.1} parent=11 // pred_fallthru
          _
        // Predicated region
        $region25: #{tpu_custom_call.1} parent=11 // pred_check
          %p219 = pneg %p156
        $region26: #{tpu_custom_call.1} parent=11 // pred_check_branch
          %221 = sbr.rel (%p219) target = $region28
        $region27: #{tpu_custom_call.1} parent=11 // pred_region
          %p222 = scmp.lt.s32.totalorder %s24, 0
          %s223 = scalar_select %p222, %s24, 0
          %s224 = scalar_lea.vmem %s4, %s223
        $region28: #{tpu_custom_call.1} parent=11 // pred_fallthru
          _
      $region12: #{tpu_custom_call.1} parent=5 // pred_fallthru
        _
      %p225 = scmp.lt.s32.totalorder %s14, 2
      // Predicated region
      $region29: #{tpu_custom_call.1} parent=5 // pred_check
        %p226 = pneg %p225
      $region30: #{tpu_custom_call.1} parent=5 // pred_check_branch
        %228 = sbr.rel (%p226) target = $region32
      $region31: #{tpu_custom_call.1} parent=5 // pred_region
        // Predicated region
        $region33: #{tpu_custom_call.1} parent=31 // pred_check
          %p229 = pneg %p46
        $region34: #{tpu_custom_call.1} parent=31 // pred_check_branch
          %231 = sbr.rel (%p229) target = $region36
        $region35: #{tpu_custom_call.1} parent=31 // pred_region
          %p232 = scmp.lt.s32.totalorder %s21, 1
          %s233 = scalar_select %p232, %s21, 1
          %s234 = smul.addr %s233, 64
          %s235 = smul.addr %s234, 8
          %s236 = scalar_lea.vmem %s0, %s235
        $region36: #{tpu_custom_call.1} parent=31 // pred_fallthru
          _
      $region32: #{tpu_custom_call.1} parent=5 // pred_fallthru
        _
      %p237 = scmp.le.s32.totalorder 1, %s14
      %p238 = scmp.lt.s32.totalorder %s14, 3
      %p239 = pnand %p237, %p238
      %p240 = pneg %p239
      // Predicated region
      $region37: #{tpu_custom_call.1} parent=5 // pred_check
        _
      $region38: #{tpu_custom_call.1} parent=5 // pred_check_branch
        %242 = sbr.rel (%p239) target = $region40
      $region39: #{tpu_custom_call.1} parent=5 // pred_region
        %s243 = ssub.s32 %s14, 1
        %p244 = scmp.lt.s32.totalorder %s23, 1
        %s245 = scalar_select %p244, %s23, 1
        %s246 = smul.addr %s245, 64
        %s247 = smul.addr %s246, 8
        %s248 = scalar_lea.vmem %s0, %s247
        %p249 = pneg %p52
        %p250 = pneg %p49
        %p251 = scmp.lt.s32.totalorder %s24, 0
        %s252 = scalar_select %p251, %s24, 0
        %s253 = smul.addr %s252, 8
        %s254 = scalar_lea.vmem %s1, %s253
        %p255 = pneg %p78
        %p256 = pneg %p75
        %p257 = scmp.lt.s32.totalorder %s24, 0
        %s258 = scalar_select %p257, %s24, 0
        %s259 = smul.addr %s258, 8
        %s260 = scalar_lea.vmem %s2, %s259
        %p261 = pneg %p104
        %p262 = pneg %p101
        %p263 = scmp.lt.s32.totalorder %s24, 0
        %s264 = scalar_select %p263, %s24, 0
        %s265 = scalar_lea.vmem %s3, %s264
        %p266 = pneg %p130
        %p267 = pneg %p127
        %p268 = scmp.lt.s32.totalorder %s24, 0
        %s269 = scalar_select %p268, %s24, 0
        %s270 = scalar_lea.vmem %s4, %s269
        %p271 = pneg %p156
        %p272 = pneg %p153
        %p273 = pneg %p184
        %p274 = pneg %p181
        %s275 = sand.u32 %s171, 1
        %s276 = scalar_lea.sflag [#allocation4], %s275
        %s277 = sand.u32 %s171, 1
        %s278 = smul.addr %s277, 512
        %s279 = scalar_lea.vmem [#allocation3], %s278
        %p280 = scmp.lt.s32.totalorder %s23, 1
        %s281 = scalar_select %p280, %s23, 1
        %s282 = smul.addr %s281, 64
        %s283 = smul.addr %s282, 8
        %s284 = scalar_lea.vmem %s0, %s283
        %p285 = scmp.lt.s32.totalorder %s24, 0
        %s286 = scalar_select %p285, %s24, 0
        %s287 = smul.addr %s286, 8
        %s288 = scalar_lea.vmem %s1, %s287
        %p289 = scmp.lt.s32.totalorder %s24, 0
        %s290 = scalar_select %p289, %s24, 0
        %s291 = smul.addr %s290, 8
        %s292 = scalar_lea.vmem %s2, %s291
        %p293 = scmp.lt.s32.totalorder %s24, 0
        %s294 = scalar_select %p293, %s24, 0
        %s295 = scalar_lea.vmem %s3, %s294
        %p296 = scmp.lt.s32.totalorder %s24, 0
        %s297 = scalar_select %p296, %s24, 0
        %s298 = scalar_lea.vmem %s4, %s297
        %299 = vst [vmem:[#allocation2] sm:$0xff] 0.0
        %300 = vst [vmem:[#allocation2 + $0x8] sm:$0xff] 0.0
        %301 = vst [vmem:[#allocation2 + $0x10] sm:$0xff] 0.0
        %302 = vst [vmem:[#allocation2 + $0x18] sm:$0xff] 0.0
        %303 = vst [vmem:[#allocation2 + $0x20] sm:$0xff] 0.0
        %304 = vst [vmem:[#allocation2 + $0x28] sm:$0xff] 0.0
        %305 = vst [vmem:[#allocation2 + $0x30] sm:$0xff] 0.0
        %306 = vst [vmem:[#allocation2 + $0x38] sm:$0xff] 0.0
        %307 = vst [vmem:[#allocation2 + $0x40] sm:$0xff] 0.0
        %308 = vst [vmem:[#allocation2 + $0x48] sm:$0xff] 0.0
        %309 = vst [vmem:[#allocation2 + $0x50] sm:$0xff] 0.0
        %310 = vst [vmem:[#allocation2 + $0x58] sm:$0xff] 0.0
        %311 = vst [vmem:[#allocation2 + $0x60] sm:$0xff] 0.0
        %312 = vst [vmem:[#allocation2 + $0x68] sm:$0xff] 0.0
        %313 = vst [vmem:[#allocation2 + $0x70] sm:$0xff] 0.0
        %314 = vst [vmem:[#allocation2 + $0x78] sm:$0xff] 0.0
        %315 = vst [vmem:[#allocation2 + $0x80] sm:$0xff] 0.0
        %316 = vst [vmem:[#allocation2 + $0x88] sm:$0xff] 0.0
        %317 = vst [vmem:[#allocation2 + $0x90] sm:$0xff] 0.0
        %318 = vst [vmem:[#allocation2 + $0x98] sm:$0xff] 0.0
        %319 = vst [vmem:[#allocation2 + $0xa0] sm:$0xff] 0.0
        %320 = vst [vmem:[#allocation2 + $0xa8] sm:$0xff] 0.0
        %321 = vst [vmem:[#allocation2 + $0xb0] sm:$0xff] 0.0
        %322 = vst [vmem:[#allocation2 + $0xb8] sm:$0xff] 0.0
        %323 = vst [vmem:[#allocation2 + $0xc0] sm:$0xff] 0.0
        %324 = vst [vmem:[#allocation2 + $0xc8] sm:$0xff] 0.0
        %325 = vst [vmem:[#allocation2 + $0xd0] sm:$0xff] 0.0
        %326 = vst [vmem:[#allocation2 + $0xd8] sm:$0xff] 0.0
        %327 = vst [vmem:[#allocation2 + $0xe0] sm:$0xff] 0.0
        %328 = vst [vmem:[#allocation2 + $0xe8] sm:$0xff] 0.0
        %s329 = scalar_lea.vmem [#allocation2], 2160
        %330 = vst [vmem:[%s329] sm:$0xff] 0.0
        %331 = vst [vmem:[%s329 + $0x8] sm:$0xff] 0.0
        %332 = vst [vmem:[%s329 + $0x10] sm:$0xff] 0.0
        %333 = vst [vmem:[%s329 + $0x18] sm:$0xff] 0.0
        %334 = vst [vmem:[%s329 + $0x20] sm:$0xff] 0.0
        %335 = vst [vmem:[%s329 + $0x28] sm:$0xff] 0.0
        %336 = vst [vmem:[%s329 + $0x30] sm:$0xff] 0.0
        %337 = vst [vmem:[%s329 + $0x38] sm:$0xff] 0.0
        %338 = vst [vmem:[%s329 + $0x40] sm:$0xff] 0.0
        %339 = vst [vmem:[%s329 + $0x48] sm:$0xff] 0.0
        %340 = vst [vmem:[%s329 + $0x50] sm:$0xff] 0.0
        %341 = vst [vmem:[%s329 + $0x58] sm:$0xff] 0.0
        %342 = vst [vmem:[%s329 + $0x60] sm:$0xff] 0.0
        %343 = vst [vmem:[%s329 + $0x68] sm:$0xff] 0.0
        %344 = vst [vmem:[%s329 + $0x70] sm:$0xff] 0.0
        %345 = vst [vmem:[%s329 + $0x78] sm:$0xff] 0.0
        %346 = vst [vmem:[%s329 + $0x80] sm:$0xff] 0.0
        %347 = vst [vmem:[%s329 + $0x88] sm:$0xff] 0.0
        %348 = vst [vmem:[%s329 + $0x90] sm:$0xff] 0.0
        %349 = vst [vmem:[%s329 + $0x98] sm:$0xff] 0.0
        %350 = vst [vmem:[%s329 + $0xa0] sm:$0xff] 0.0
        %351 = vst [vmem:[%s329 + $0xa8] sm:$0xff] 0.0
        %352 = vst [vmem:[%s329 + $0xb0] sm:$0xff] 0.0
        %353 = vst [vmem:[%s329 + $0xb8] sm:$0xff] 0.0
        %354 = vst [vmem:[%s329 + $0xc0] sm:$0xff] 0.0
        %355 = vst [vmem:[%s329 + $0xc8] sm:$0xff] 0.0
        %356 = vst [vmem:[%s329 + $0xd0] sm:$0xff] 0.0
        %357 = vst [vmem:[%s329 + $0xd8] sm:$0xff] 0.0
        %358 = vst [vmem:[%s329 + $0xe0] sm:$0xff] 0.0
        %359 = vst [vmem:[%s329 + $0xe8] sm:$0xff] 0.0
        %360 = vst [vmem:[#allocation2] sm:$0xff] 0.0
        %361 = vst [vmem:[#allocation2 + $0x8] sm:$0xff] 0.0
        %362 = vst [vmem:[#allocation2 + $0x10] sm:$0xff] 0.0
        %363 = vst [vmem:[#allocation2 + $0xf0] sm:$0xff] 0.0
        %364 = vst [vmem:[#allocation2 + $0xf8] sm:$0xff] 0.0
        %365 = vst [vmem:[#allocation2 + $0x100] sm:$0xff] 0.0
        %366 = vst [vmem:[#allocation2 + $0x1e0] sm:$0xff] 0.0
        %367 = vst [vmem:[#allocation2 + $0x1e8] sm:$0xff] 0.0
        %368 = vst [vmem:[#allocation2 + $0x1f0] sm:$0xff] 0.0
        %369 = vst [vmem:[#allocation2 + $0x2d0] sm:$0xff] 0.0
        %370 = vst [vmem:[#allocation2 + $0x2d8] sm:$0xff] 0.0
        %371 = vst [vmem:[#allocation2 + $0x2e0] sm:$0xff] 0.0
        %372 = vst [vmem:[#allocation2 + $0x3c0] sm:$0xff] 0.0
        %373 = vst [vmem:[#allocation2 + $0x3c8] sm:$0xff] 0.0
        %374 = vst [vmem:[#allocation2 + $0x3d0] sm:$0xff] 0.0
        %375 = vst [vmem:[#allocation2 + $0x4b0] sm:$0xff] 0.0
        %376 = vst [vmem:[#allocation2 + $0x4b8] sm:$0xff] 0.0
        %377 = vst [vmem:[#allocation2 + $0x4c0] sm:$0xff] 0.0
        %378 = vst [vmem:[#allocation2 + $0x5a0] sm:$0xff] 0.0
        %379 = vst [vmem:[#allocation2 + $0x5a8] sm:$0xff] 0.0
        %380 = vst [vmem:[#allocation2 + $0x5b0] sm:$0xff] 0.0
        %381 = vst [vmem:[#allocation2 + $0x690] sm:$0xff] 0.0
        %382 = vst [vmem:[#allocation2 + $0x698] sm:$0xff] 0.0
        %383 = vst [vmem:[#allocation2 + $0x6a0] sm:$0xff] 0.0
        %384 = vst [vmem:[#allocation2 + $0x780] sm:$0xff] 0.0
        %385 = vst [vmem:[#allocation2 + $0x788] sm:$0xff] 0.0
        %386 = vst [vmem:[#allocation2 + $0x790] sm:$0xff] 0.0
        %387 = vst [vmem:[#allocation2 + $0x870] sm:$0xff] 0.0
        %388 = vst [vmem:[#allocation2 + $0x878] sm:$0xff] 0.0
        %389 = vst [vmem:[#allocation2 + $0x880] sm:$0xff] 0.0
        %s390 = scalar_lea.vmem [#allocation2], 216
        %391 = vst [vmem:[%s390] sm:$0xff] 0.0
        %392 = vst [vmem:[%s390 + $0x8] sm:$0xff] 0.0
        %393 = vst [vmem:[%s390 + $0x10] sm:$0xff] 0.0
        %394 = vst [vmem:[%s390 + $0xf0] sm:$0xff] 0.0
        %395 = vst [vmem:[%s390 + $0xf8] sm:$0xff] 0.0
        %396 = vst [vmem:[%s390 + $0x100] sm:$0xff] 0.0
        %397 = vst [vmem:[%s390 + $0x1e0] sm:$0xff] 0.0
        %398 = vst [vmem:[%s390 + $0x1e8] sm:$0xff] 0.0
        %399 = vst [vmem:[%s390 + $0x1f0] sm:$0xff] 0.0
        %400 = vst [vmem:[%s390 + $0x2d0] sm:$0xff] 0.0
        %401 = vst [vmem:[%s390 + $0x2d8] sm:$0xff] 0.0
        %402 = vst [vmem:[%s390 + $0x2e0] sm:$0xff] 0.0
        %403 = vst [vmem:[%s390 + $0x3c0] sm:$0xff] 0.0
        %404 = vst [vmem:[%s390 + $0x3c8] sm:$0xff] 0.0
        %405 = vst [vmem:[%s390 + $0x3d0] sm:$0xff] 0.0
        %406 = vst [vmem:[%s390 + $0x4b0] sm:$0xff] 0.0
        %407 = vst [vmem:[%s390 + $0x4b8] sm:$0xff] 0.0
        %408 = vst [vmem:[%s390 + $0x4c0] sm:$0xff] 0.0
        %409 = vst [vmem:[%s390 + $0x5a0] sm:$0xff] 0.0
        %410 = vst [vmem:[%s390 + $0x5a8] sm:$0xff] 0.0
        %411 = vst [vmem:[%s390 + $0x5b0] sm:$0xff] 0.0
        %412 = vst [vmem:[%s390 + $0x690] sm:$0xff] 0.0
        %413 = vst [vmem:[%s390 + $0x698] sm:$0xff] 0.0
        %414 = vst [vmem:[%s390 + $0x6a0] sm:$0xff] 0.0
        %415 = vst [vmem:[%s390 + $0x780] sm:$0xff] 0.0
        %416 = vst [vmem:[%s390 + $0x788] sm:$0xff] 0.0
        %417 = vst [vmem:[%s390 + $0x790] sm:$0xff] 0.0
        %418 = vst [vmem:[%s390 + $0x870] sm:$0xff] 0.0
        %419 = vst [vmem:[%s390 + $0x878] sm:$0xff] 0.0
        %420 = vst [vmem:[%s390 + $0x880] sm:$0xff] 0.0
        %421 = vst [vmem:[#allocation2] sm:$0xff] 0.0
        %422 = vst [vmem:[#allocation2 + $0x18] sm:$0xff] 0.0
        %423 = vst [vmem:[#allocation2 + $0x30] sm:$0xff] 0.0
        %424 = vst [vmem:[#allocation2 + $0x48] sm:$0xff] 0.0
        %425 = vst [vmem:[#allocation2 + $0x60] sm:$0xff] 0.0
        %426 = vst [vmem:[#allocation2 + $0x78] sm:$0xff] 0.0
        %427 = vst [vmem:[#allocation2 + $0x90] sm:$0xff] 0.0
        %428 = vst [vmem:[#allocation2 + $0xa8] sm:$0xff] 0.0
        %429 = vst [vmem:[#allocation2 + $0xc0] sm:$0xff] 0.0
        %430 = vst [vmem:[#allocation2 + $0xd8] sm:$0xff] 0.0
        %431 = vst [vmem:[#allocation2 + $0xf0] sm:$0xff] 0.0
        %432 = vst [vmem:[#allocation2 + $0x108] sm:$0xff] 0.0
        %433 = vst [vmem:[#allocation2 + $0x120] sm:$0xff] 0.0
        %434 = vst [vmem:[#allocation2 + $0x138] sm:$0xff] 0.0
        %435 = vst [vmem:[#allocation2 + $0x150] sm:$0xff] 0.0
        %436 = vst [vmem:[#allocation2 + $0x168] sm:$0xff] 0.0
        %437 = vst [vmem:[#allocation2 + $0x180] sm:$0xff] 0.0
        %438 = vst [vmem:[#allocation2 + $0x198] sm:$0xff] 0.0
        %439 = vst [vmem:[#allocation2 + $0x1b0] sm:$0xff] 0.0
        %440 = vst [vmem:[#allocation2 + $0x1c8] sm:$0xff] 0.0
        %441 = vst [vmem:[#allocation2 + $0x1e0] sm:$0xff] 0.0
        %442 = vst [vmem:[#allocation2 + $0x1f8] sm:$0xff] 0.0
        %443 = vst [vmem:[#allocation2 + $0x210] sm:$0xff] 0.0
        %444 = vst [vmem:[#allocation2 + $0x228] sm:$0xff] 0.0
        %445 = vst [vmem:[#allocation2 + $0x240] sm:$0xff] 0.0
        %446 = vst [vmem:[#allocation2 + $0x258] sm:$0xff] 0.0
        %447 = vst [vmem:[#allocation2 + $0x270] sm:$0xff] 0.0
        %448 = vst [vmem:[#allocation2 + $0x288] sm:$0xff] 0.0
        %449 = vst [vmem:[#allocation2 + $0x2a0] sm:$0xff] 0.0
        %450 = vst [vmem:[#allocation2 + $0x2b8] sm:$0xff] 0.0
        %451 = vst [vmem:[#allocation2 + $0x2d0] sm:$0xff] 0.0
        %452 = vst [vmem:[#allocation2 + $0x2e8] sm:$0xff] 0.0
        %453 = vst [vmem:[#allocation2 + $0x300] sm:$0xff] 0.0
        %454 = vst [vmem:[#allocation2 + $0x318] sm:$0xff] 0.0
        %455 = vst [vmem:[#allocation2 + $0x330] sm:$0xff] 0.0
        %456 = vst [vmem:[#allocation2 + $0x348] sm:$0xff] 0.0
        %457 = vst [vmem:[#allocation2 + $0x360] sm:$0xff] 0.0
        %458 = vst [vmem:[#allocation2 + $0x378] sm:$0xff] 0.0
        %459 = vst [vmem:[#allocation2 + $0x390] sm:$0xff] 0.0
        %460 = vst [vmem:[#allocation2 + $0x3a8] sm:$0xff] 0.0
        %461 = vst [vmem:[#allocation2 + $0x3c0] sm:$0xff] 0.0
        %462 = vst [vmem:[#allocation2 + $0x3d8] sm:$0xff] 0.0
        %463 = vst [vmem:[#allocation2 + $0x3f0] sm:$0xff] 0.0
        %464 = vst [vmem:[#allocation2 + $0x408] sm:$0xff] 0.0
        %465 = vst [vmem:[#allocation2 + $0x420] sm:$0xff] 0.0
        %466 = vst [vmem:[#allocation2 + $0x438] sm:$0xff] 0.0
        %467 = vst [vmem:[#allocation2 + $0x450] sm:$0xff] 0.0
        %468 = vst [vmem:[#allocation2 + $0x468] sm:$0xff] 0.0
        %469 = vst [vmem:[#allocation2 + $0x480] sm:$0xff] 0.0
        %470 = vst [vmem:[#allocation2 + $0x498] sm:$0xff] 0.0
        %471 = vst [vmem:[#allocation2 + $0x4b0] sm:$0xff] 0.0
        %472 = vst [vmem:[#allocation2 + $0x4c8] sm:$0xff] 0.0
        %473 = vst [vmem:[#allocation2 + $0x4e0] sm:$0xff] 0.0
        %474 = vst [vmem:[#allocation2 + $0x4f8] sm:$0xff] 0.0
        %475 = vst [vmem:[#allocation2 + $0x510] sm:$0xff] 0.0
        %476 = vst [vmem:[#allocation2 + $0x528] sm:$0xff] 0.0
        %477 = vst [vmem:[#allocation2 + $0x540] sm:$0xff] 0.0
        %478 = vst [vmem:[#allocation2 + $0x558] sm:$0xff] 0.0
        %479 = vst [vmem:[#allocation2 + $0x570] sm:$0xff] 0.0
        %480 = vst [vmem:[#allocation2 + $0x588] sm:$0xff] 0.0
        %481 = vst [vmem:[#allocation2 + $0x5a0] sm:$0xff] 0.0
        %482 = vst [vmem:[#allocation2 + $0x5b8] sm:$0xff] 0.0
        %483 = vst [vmem:[#allocation2 + $0x5d0] sm:$0xff] 0.0
        %484 = vst [vmem:[#allocation2 + $0x5e8] sm:$0xff] 0.0
        %485 = vst [vmem:[#allocation2 + $0x600] sm:$0xff] 0.0
        %486 = vst [vmem:[#allocation2 + $0x618] sm:$0xff] 0.0
        %487 = vst [vmem:[#allocation2 + $0x630] sm:$0xff] 0.0
        %488 = vst [vmem:[#allocation2 + $0x648] sm:$0xff] 0.0
        %489 = vst [vmem:[#allocation2 + $0x660] sm:$0xff] 0.0
        %490 = vst [vmem:[#allocation2 + $0x678] sm:$0xff] 0.0
        %491 = vst [vmem:[#allocation2 + $0x690] sm:$0xff] 0.0
        %492 = vst [vmem:[#allocation2 + $0x6a8] sm:$0xff] 0.0
        %493 = vst [vmem:[#allocation2 + $0x6c0] sm:$0xff] 0.0
        %494 = vst [vmem:[#allocation2 + $0x6d8] sm:$0xff] 0.0
        %495 = vst [vmem:[#allocation2 + $0x6f0] sm:$0xff] 0.0
        %496 = vst [vmem:[#allocation2 + $0x708] sm:$0xff] 0.0
        %497 = vst [vmem:[#allocation2 + $0x720] sm:$0xff] 0.0
        %498 = vst [vmem:[#allocation2 + $0x738] sm:$0xff] 0.0
        %499 = vst [vmem:[#allocation2 + $0x750] sm:$0xff] 0.0
        %500 = vst [vmem:[#allocation2 + $0x768] sm:$0xff] 0.0
        %501 = vst [vmem:[#allocation2 + $0x780] sm:$0xff] 0.0
        %502 = vst [vmem:[#allocation2 + $0x798] sm:$0xff] 0.0
        %503 = vst [vmem:[#allocation2 + $0x7b0] sm:$0xff] 0.0
        %504 = vst [vmem:[#allocation2 + $0x7c8] sm:$0xff] 0.0
        %505 = vst [vmem:[#allocation2 + $0x7e0] sm:$0xff] 0.0
        %506 = vst [vmem:[#allocation2 + $0x7f8] sm:$0xff] 0.0
        %507 = vst [vmem:[#allocation2 + $0x810] sm:$0xff] 0.0
        %508 = vst [vmem:[#allocation2 + $0x828] sm:$0xff] 0.0
        %509 = vst [vmem:[#allocation2 + $0x840] sm:$0xff] 0.0
        %510 = vst [vmem:[#allocation2 + $0x858] sm:$0xff] 0.0
        %511 = vst [vmem:[#allocation2 + $0x870] sm:$0xff] 0.0
        %512 = vst [vmem:[#allocation2 + $0x888] sm:$0xff] 0.0
        %513 = vst [vmem:[#allocation2 + $0x8a0] sm:$0xff] 0.0
        %514 = vst [vmem:[#allocation2 + $0x8b8] sm:$0xff] 0.0
        %515 = vst [vmem:[#allocation2 + $0x8d0] sm:$0xff] 0.0
        %516 = vst [vmem:[#allocation2 + $0x8e8] sm:$0xff] 0.0
        %517 = vst [vmem:[#allocation2 + $0x900] sm:$0xff] 0.0
        %518 = vst [vmem:[#allocation2 + $0x918] sm:$0xff] 0.0
        %519 = vst [vmem:[#allocation2 + $0x930] sm:$0xff] 0.0
        %520 = vst [vmem:[#allocation2 + $0x948] sm:$0xff] 0.0
        %521 = vst [vmem:[#allocation2 + $0x10] sm:$0xff] 0.0
        %522 = vst [vmem:[#allocation2 + $0x28] sm:$0xff] 0.0
        %523 = vst [vmem:[#allocation2 + $0x40] sm:$0xff] 0.0
        %524 = vst [vmem:[#allocation2 + $0x58] sm:$0xff] 0.0
        %525 = vst [vmem:[#allocation2 + $0x70] sm:$0xff] 0.0
        %526 = vst [vmem:[#allocation2 + $0x88] sm:$0xff] 0.0
        %527 = vst [vmem:[#allocation2 + $0xa0] sm:$0xff] 0.0
        %528 = vst [vmem:[#allocation2 + $0xb8] sm:$0xff] 0.0
        %529 = vst [vmem:[#allocation2 + $0xd0] sm:$0xff] 0.0
        %530 = vst [vmem:[#allocation2 + $0xe8] sm:$0xff] 0.0
        %531 = vst [vmem:[#allocation2 + $0x100] sm:$0xff] 0.0
        %532 = vst [vmem:[#allocation2 + $0x118] sm:$0xff] 0.0
        %533 = vst [vmem:[#allocation2 + $0x130] sm:$0xff] 0.0
        %534 = vst [vmem:[#allocation2 + $0x148] sm:$0xff] 0.0
        %535 = vst [vmem:[#allocation2 + $0x160] sm:$0xff] 0.0
        %536 = vst [vmem:[#allocation2 + $0x178] sm:$0xff] 0.0
        %537 = vst [vmem:[#allocation2 + $0x190] sm:$0xff] 0.0
        %538 = vst [vmem:[#allocation2 + $0x1a8] sm:$0xff] 0.0
        %539 = vst [vmem:[#allocation2 + $0x1c0] sm:$0xff] 0.0
        %540 = vst [vmem:[#allocation2 + $0x1d8] sm:$0xff] 0.0
        %541 = vst [vmem:[#allocation2 + $0x1f0] sm:$0xff] 0.0
        %542 = vst [vmem:[#allocation2 + $0x208] sm:$0xff] 0.0
        %543 = vst [vmem:[#allocation2 + $0x220] sm:$0xff] 0.0
        %544 = vst [vmem:[#allocation2 + $0x238] sm:$0xff] 0.0
        %545 = vst [vmem:[#allocation2 + $0x250] sm:$0xff] 0.0
        %546 = vst [vmem:[#allocation2 + $0x268] sm:$0xff] 0.0
        %547 = vst [vmem:[#allocation2 + $0x280] sm:$0xff] 0.0
        %548 = vst [vmem:[#allocation2 + $0x298] sm:$0xff] 0.0
        %549 = vst [vmem:[#allocation2 + $0x2b0] sm:$0xff] 0.0
        %550 = vst [vmem:[#allocation2 + $0x2c8] sm:$0xff] 0.0
        %551 = vst [vmem:[#allocation2 + $0x2e0] sm:$0xff] 0.0
        %552 = vst [vmem:[#allocation2 + $0x2f8] sm:$0xff] 0.0
        %553 = vst [vmem:[#allocation2 + $0x310] sm:$0xff] 0.0
        %554 = vst [vmem:[#allocation2 + $0x328] sm:$0xff] 0.0
        %555 = vst [vmem:[#allocation2 + $0x340] sm:$0xff] 0.0
        %556 = vst [vmem:[#allocation2 + $0x358] sm:$0xff] 0.0
        %557 = vst [vmem:[#allocation2 + $0x370] sm:$0xff] 0.0
        %558 = vst [vmem:[#allocation2 + $0x388] sm:$0xff] 0.0
        %559 = vst [vmem:[#allocation2 + $0x3a0] sm:$0xff] 0.0
        %560 = vst [vmem:[#allocation2 + $0x3b8] sm:$0xff] 0.0
        %561 = vst [vmem:[#allocation2 + $0x3d0] sm:$0xff] 0.0
        %562 = vst [vmem:[#allocation2 + $0x3e8] sm:$0xff] 0.0
        %563 = vst [vmem:[#allocation2 + $0x400] sm:$0xff] 0.0
        %564 = vst [vmem:[#allocation2 + $0x418] sm:$0xff] 0.0
        %565 = vst [vmem:[#allocation2 + $0x430] sm:$0xff] 0.0
        %566 = vst [vmem:[#allocation2 + $0x448] sm:$0xff] 0.0
        %567 = vst [vmem:[#allocation2 + $0x460] sm:$0xff] 0.0
        %568 = vst [vmem:[#allocation2 + $0x478] sm:$0xff] 0.0
        %569 = vst [vmem:[#allocation2 + $0x490] sm:$0xff] 0.0
        %570 = vst [vmem:[#allocation2 + $0x4a8] sm:$0xff] 0.0
        %571 = vst [vmem:[#allocation2 + $0x4c0] sm:$0xff] 0.0
        %572 = vst [vmem:[#allocation2 + $0x4d8] sm:$0xff] 0.0
        %573 = vst [vmem:[#allocation2 + $0x4f0] sm:$0xff] 0.0
        %574 = vst [vmem:[#allocation2 + $0x508] sm:$0xff] 0.0
        %575 = vst [vmem:[#allocation2 + $0x520] sm:$0xff] 0.0
        %576 = vst [vmem:[#allocation2 + $0x538] sm:$0xff] 0.0
        %577 = vst [vmem:[#allocation2 + $0x550] sm:$0xff] 0.0
        %578 = vst [vmem:[#allocation2 + $0x568] sm:$0xff] 0.0
        %579 = vst [vmem:[#allocation2 + $0x580] sm:$0xff] 0.0
        %580 = vst [vmem:[#allocation2 + $0x598] sm:$0xff] 0.0
        %581 = vst [vmem:[#allocation2 + $0x5b0] sm:$0xff] 0.0
        %582 = vst [vmem:[#allocation2 + $0x5c8] sm:$0xff] 0.0
        %583 = vst [vmem:[#allocation2 + $0x5e0] sm:$0xff] 0.0
        %584 = vst [vmem:[#allocation2 + $0x5f8] sm:$0xff] 0.0
        %585 = vst [vmem:[#allocation2 + $0x610] sm:$0xff] 0.0
        %586 = vst [vmem:[#allocation2 + $0x628] sm:$0xff] 0.0
        %587 = vst [vmem:[#allocation2 + $0x640] sm:$0xff] 0.0
        %588 = vst [vmem:[#allocation2 + $0x658] sm:$0xff] 0.0
        %589 = vst [vmem:[#allocation2 + $0x670] sm:$0xff] 0.0
        %590 = vst [vmem:[#allocation2 + $0x688] sm:$0xff] 0.0
        %591 = vst [vmem:[#allocation2 + $0x6a0] sm:$0xff] 0.0
        %592 = vst [vmem:[#allocation2 + $0x6b8] sm:$0xff] 0.0
        %593 = vst [vmem:[#allocation2 + $0x6d0] sm:$0xff] 0.0
        %594 = vst [vmem:[#allocation2 + $0x6e8] sm:$0xff] 0.0
        %595 = vst [vmem:[#allocation2 + $0x700] sm:$0xff] 0.0
        %596 = vst [vmem:[#allocation2 + $0x718] sm:$0xff] 0.0
        %597 = vst [vmem:[#allocation2 + $0x730] sm:$0xff] 0.0
        %598 = vst [vmem:[#allocation2 + $0x748] sm:$0xff] 0.0
        %599 = vst [vmem:[#allocation2 + $0x760] sm:$0xff] 0.0
        %600 = vst [vmem:[#allocation2 + $0x778] sm:$0xff] 0.0
        %601 = vst [vmem:[#allocation2 + $0x790] sm:$0xff] 0.0
        %602 = vst [vmem:[#allocation2 + $0x7a8] sm:$0xff] 0.0
        %603 = vst [vmem:[#allocation2 + $0x7c0] sm:$0xff] 0.0
        %604 = vst [vmem:[#allocation2 + $0x7d8] sm:$0xff] 0.0
        %605 = vst [vmem:[#allocation2 + $0x7f0] sm:$0xff] 0.0
        %606 = vst [vmem:[#allocation2 + $0x808] sm:$0xff] 0.0
        %607 = vst [vmem:[#allocation2 + $0x820] sm:$0xff] 0.0
        %608 = vst [vmem:[#allocation2 + $0x838] sm:$0xff] 0.0
        %609 = vst [vmem:[#allocation2 + $0x850] sm:$0xff] 0.0
        %610 = vst [vmem:[#allocation2 + $0x868] sm:$0xff] 0.0
        %611 = vst [vmem:[#allocation2 + $0x880] sm:$0xff] 0.0
        %612 = vst [vmem:[#allocation2 + $0x898] sm:$0xff] 0.0
        %613 = vst [vmem:[#allocation2 + $0x8b0] sm:$0xff] 0.0
        %614 = vst [vmem:[#allocation2 + $0x8c8] sm:$0xff] 0.0
        %615 = vst [vmem:[#allocation2 + $0x8e0] sm:$0xff] 0.0
        %616 = vst [vmem:[#allocation2 + $0x8f8] sm:$0xff] 0.0
        %617 = vst [vmem:[#allocation2 + $0x910] sm:$0xff] 0.0
        %618 = vst [vmem:[#allocation2 + $0x928] sm:$0xff] 0.0
        %619 = vst [vmem:[#allocation2 + $0x940] sm:$0xff] 0.0
        %620 = vst [vmem:[#allocation2 + $0x958] sm:$0xff] 0.0
        %v621 = vld [vmem:[%s288] sm:$0xff]
        %v622 = vld [vmem:[%s288 + $0x8] sm:$0xff]
        %v623 = vld [vmem:[%s288 + $0x10] sm:$0xff]
        %v624 = vld [vmem:[%s288 + $0x18] sm:$0xff]
        %v625 = vld [vmem:[%s288 + $0x20] sm:$0xff]
        %v626 = vld [vmem:[%s288 + $0x28] sm:$0xff]
        %v627 = vld [vmem:[%s295] sm:$0x1]
        loop: start=0, step=1, limit=8
        $region41: #{tpu_custom_call.1} parent=39 // loop_pre_header
          _
        $region42: #{tpu_custom_call.1} parent=39 // loop_header
          %s629 = sphi 0, %s633
          %p630 = scmp.ge.s32.totalorder %s629, 8
        $region43: #{tpu_custom_call.1} parent=39 // loop_header_branch
          %632 = sbr.rel (%p630) target = $region47
        $region44: #{tpu_custom_call.1} parent=39 // loop_body
          %s634 = smul.u32 %s629, 64
          %s635 = scalar_lea.vmem %s284, %s634
          %v636 = vld [vmem:[%s635] sm:$0xff]
          %v637 = vld [vmem:[%s635 + $0x8] sm:$0xff]
          %v638 = vld [vmem:[%s635 + $0x10] sm:$0xff]
          %v639 = vld [vmem:[%s635 + $0x18] sm:$0xff]
          %v640 = vld [vmem:[%s635 + $0x20] sm:$0xff]
          %v641 = vld [vmem:[%s635 + $0x28] sm:$0xff]
          %v642 = vld [vmem:[%s635 + $0x30] sm:$0xff]
          %v643 = vld [vmem:[%s635 + $0x38] sm:$0xff]
          %v645 = vlaneseq
          %v646 = vshrl.u32 %v645, 7
          %v647 = vsub.s32 0, %v646
          %v648 = vrot.slane %v627, %v647
          %vm650 = vcmask 392192
          %v652 = vsel %vm650, %v636, 0
          %v655 = vsel %vm650, %v637, 0
          %v658 = vsel %vm650, %v638, 0
          %v661 = vsel %vm650, %v639, 0
          %v664 = vsel %vm650, %v640, 0
          %v667 = vsel %vm650, %v641, 0
          %v670 = vsel %vm650, %v642, 0
          %v673 = vsel %vm650, %v643, 0
          %675 = vmatprep.subr.mxu0 0.0
          %v676 = vand.u32 %v621, 4294901760
          %677 = vmatpush1.msra.mxu0 %v676
          %678 = vmatprep.subr.mxu0 0.0
          %v679 = vand.u32 %v622, 4294901760
          %680 = vmatpush1.msra.mxu0 %v679
          %681 = vmatprep.subr.mxu0 0.0
          %v682 = vand.u32 %v623, 4294901760
          %683 = vmatpush1.msra.mxu0 %v682
          %684 = vmatprep.subr.mxu0 0.0
          %v685 = vand.u32 %v624, 4294901760
          %686 = vmatpush1.msra.mxu0 %v685
          %687 = vmatprep.subr.mxu0 0.0
          %v688 = vand.u32 %v625, 4294901760
          %689 = vmatpush1.msra.mxu0 %v688
          %690 = vmatprep.subr.mxu0 0.0
          %v691 = vand.u32 %v626, 4294901760
          %692 = vmatpush1.msra.mxu0 %v691
          %693 = vmatprep.subr.mxu0 0.0
          %694 = vmatpush1.msra.mxu0 0.0
          %695 = vmatprep.subr.mxu0 0.0
          %696 = vmatpush1.msra.mxu0 0.0
          %697 = vmatprep.subr.mxu0 0.0
          %698 = vmatpush1.msra.mxu0 0.0
          %699 = vmatprep.subr.mxu0 0.0
          %700 = vmatpush1.msra.mxu0 0.0
          %701 = vmatprep.subr.mxu0 0.0
          %702 = vmatpush1.msra.mxu0 0.0
          %703 = vmatprep.subr.mxu0 0.0
          %704 = vmatpush1.msra.mxu0 0.0
          %705 = vmatprep.subr.mxu0 0.0
          %706 = vmatpush1.msra.mxu0 0.0
          %707 = vmatprep.subr.mxu0 0.0
          %708 = vmatpush1.msra.mxu0 0.0
          %709 = vmatprep.subr.mxu0 0.0
          %710 = vmatpush1.msra.mxu0 0.0
          %711 = vmatprep.subr.mxu0 0.0
          %712 = vmatpush1.msra.mxu0 0.0
          %713 = vmatprep.subr.mxu0 0.0
          %714 = vmatpush1.msra.mxu0 0.0
          %715 = vmatprep.subr.mxu0 0.0
          %716 = vmatpush1.msra.mxu0 0.0
          %717 = vmatprep.subr.mxu0 0.0
          %718 = vmatpush1.msra.mxu0 0.0
          %719 = vmatprep.subr.mxu0 0.0
          %720 = vmatpush1.msra.mxu0 0.0
          %721 = vmatprep.subr.mxu0 0.0
          %722 = vmatpush1.msra.mxu0 0.0
          %723 = vmatprep.subr.mxu0 0.0
          %724 = vmatpush1.msra.mxu0 0.0
          %725 = vmatprep.subr.mxu0 0.0
          %726 = vmatpush1.msra.mxu0 0.0
          %727 = vmatprep.subr.mxu0 0.0
          %728 = vmatpush1.msra.mxu0 0.0
          %729 = vmatprep.subr.mxu0 0.0
          %730 = vmatpush1.msra.mxu0 0.0
          %731 = vmatprep.subr.mxu0 0.0
          %732 = vmatpush1.msra.mxu0 0.0
          %733 = vmatprep.subr.mxu0 0.0
          %734 = vmatpush1.msra.mxu0 0.0
          %735 = vmatprep.subr.mxu0 0.0
          %736 = vmatpush1.msra.mxu0 0.0
          %737 = vmatprep.subr.mxu0 0.0
          %738 = vmatpush1.msra.mxu0 0.0
          %739 = vmatprep.subr.mxu0 0.0
          %740 = vmatpush1.msra.mxu0 0.0
          %741 = vmatprep.subr.mxu0 0.0
          %742 = vmatpush1.msra.mxu0 0.0
          %743 = vmatprep.subr.mxu0 0.0
          %744 = vmatpush1.msra.mxu0 0.0
          %745 = vmatprep.mubr.f32.mxu0 0.0
          %v746 = vand.u32 %v652, 4294901760
          %v747 = vsub.f32 %v652, %v746
          %v748 = vand.u32 %v747, 4294901760
          %v749 = vsub.f32 %v747, %v748
          %v750 = vand.u32 %v749, 4294901760
          %751 = vmatmul.mubr.f32.gmra.mrb[0].mxu0 %v750
          %v752 = vpop.f32.mrb[0].mxu0
          %v753 = vadd.f32 %v648, %v752
          %v754 = vpop.f32.mrb[0].mxu0
          %755 = vmatprep.mubr.f32.mxu0 0.0
          %v756 = vand.u32 %v655, 4294901760
          %v757 = vsub.f32 %v655, %v756
          %v758 = vand.u32 %v757, 4294901760
          %v759 = vsub.f32 %v757, %v758
          %v760 = vand.u32 %v759, 4294901760
          %761 = vmatmul.mubr.f32.gmra.mrb[0].mxu0 %v760
          %v762 = vpop.f32.mrb[0].mxu0
          %v763 = vadd.f32 %v648, %v762
          %v764 = vpop.f32.mrb[0].mxu0
          %765 = vmatprep.mubr.f32.mxu0 0.0
          %v766 = vand.u32 %v658, 4294901760
          %v767 = vsub.f32 %v658, %v766
          %v768 = vand.u32 %v767, 4294901760
          %v769 = vsub.f32 %v767, %v768
          %v770 = vand.u32 %v769, 4294901760
          %771 = vmatmul.mubr.f32.gmra.mrb[0].mxu0 %v770
          %v772 = vpop.f32.mrb[0].mxu0
          %v773 = vadd.f32 %v648, %v772
          %v774 = vpop.f32.mrb[0].mxu0
          %775 = vmatprep.mubr.f32.mxu0 0.0
          %v776 = vand.u32 %v661, 4294901760
          %v777 = vsub.f32 %v661, %v776
          %v778 = vand.u32 %v777, 4294901760
          %v779 = vsub.f32 %v777, %v778
          %v780 = vand.u32 %v779, 4294901760
          %781 = vmatmul.mubr.f32.gmra.mrb[0].mxu0 %v780
          %v782 = vpop.f32.mrb[0].mxu0
          %v783 = vadd.f32 %v648, %v782
          %v784 = vpop.f32.mrb[0].mxu0
          %785 = vmatprep.mubr.f32.mxu0 0.0
          %v786 = vand.u32 %v664, 4294901760
          %v787 = vsub.f32 %v664, %v786
          %v788 = vand.u32 %v787, 4294901760
          %v789 = vsub.f32 %v787, %v788
          %v790 = vand.u32 %v789, 4294901760
          %791 = vmatmul.mubr.f32.gmra.mrb[0].mxu0 %v790
          %v792 = vpop.f32.mrb[0].mxu0
          %v793 = vadd.f32 %v648, %v792
          %v794 = vpop.f32.mrb[0].mxu0
          %795 = vmatprep.mubr.f32.mxu0 0.0
          %v796 = vand.u32 %v667, 4294901760
          %v797 = vsub.f32 %v667, %v796
          %v798 = vand.u32 %v797, 4294901760
          %v799 = vsub.f32 %v797, %v798
          %v800 = vand.u32 %v799, 4294901760
          %801 = vmatmul.mubr.f32.gmra.mrb[0].mxu0 %v800
          %v802 = vpop.f32.mrb[0].mxu0
          %v803 = vadd.f32 %v648, %v802
          %v804 = vpop.f32.mrb[0].mxu0
          %805 = vmatprep.mubr.f32.mxu0 0.0
          %v806 = vand.u32 %v670, 4294901760
          %v807 = vsub.f32 %v670, %v806
          %v808 = vand.u32 %v807, 4294901760
          %v809 = vsub.f32 %v807, %v808
          %v810 = vand.u32 %v809, 4294901760
          %811 = vmatmul.mubr.f32.gmra.mrb[0].mxu0 %v810
          %v812 = vpop.f32.mrb[0].mxu0
          %v813 = vadd.f32 %v648, %v812
          %v814 = vpop.f32.mrb[0].mxu0
          %815 = vmatprep.mubr.f32.mxu0 0.0
          %v816 = vand.u32 %v673, 4294901760
          %v817 = vsub.f32 %v673, %v816
          %v818 = vand.u32 %v817, 4294901760
          %v819 = vsub.f32 %v817, %v818
          %v820 = vand.u32 %v819, 4294901760
          %821 = vmatmul.mubr.f32.gmra.mrb[0].mxu0 %v820
          %v822 = vpop.f32.mrb[0].mxu0
          %v823 = vadd.f32 %v648, %v822
          %v824 = vpop.f32.mrb[0].mxu0
          %825 = vdwg.mxu0
          %826 = vmatprep.subr.mxu0 0.0
          %v827 = vand.u32 %v621, 4294901760
          %v828 = vsub.f32 %v621, %v827
          %v829 = vand.u32 %v828, 4294901760
          %v830 = vsub.f32 %v828, %v829
          %v831 = vand.u32 %v830, 4294901760
          %832 = vmatpush1.msra.mxu0 %v831
          %833 = vmatprep.subr.mxu0 0.0
          %v834 = vand.u32 %v622, 4294901760
          %v835 = vsub.f32 %v622, %v834
          %v836 = vand.u32 %v835, 4294901760
          %v837 = vsub.f32 %v835, %v836
          %v838 = vand.u32 %v837, 4294901760
          %839 = vmatpush1.msra.mxu0 %v838
          %840 = vmatprep.subr.mxu0 0.0
          %v841 = vand.u32 %v623, 4294901760
          %v842 = vsub.f32 %v623, %v841
          %v843 = vand.u32 %v842, 4294901760
          %v844 = vsub.f32 %v842, %v843
          %v845 = vand.u32 %v844, 4294901760
          %846 = vmatpush1.msra.mxu0 %v845
          %847 = vmatprep.subr.mxu0 0.0
          %v848 = vand.u32 %v624, 4294901760
          %v849 = vsub.f32 %v624, %v848
          %v850 = vand.u32 %v849, 4294901760
          %v851 = vsub.f32 %v849, %v850
          %v852 = vand.u32 %v851, 4294901760
          %853 = vmatpush1.msra.mxu0 %v852
          %854 = vmatprep.subr.mxu0 0.0
          %v855 = vand.u32 %v625, 4294901760
          %v856 = vsub.f32 %v625, %v855
          %v857 = vand.u32 %v856, 4294901760
          %v858 = vsub.f32 %v856, %v857
          %v859 = vand.u32 %v858, 4294901760
          %860 = vmatpush1.msra.mxu0 %v859
          %861 = vmatprep.subr.mxu0 0.0
          %v862 = vand.u32 %v626, 4294901760
          %v863 = vsub.f32 %v626, %v862
          %v864 = vand.u32 %v863, 4294901760
          %v865 = vsub.f32 %v863, %v864
          %v866 = vand.u32 %v865, 4294901760
          %867 = vmatpush1.msra.mxu0 %v866
          %868 = vmatprep.subr.mxu0 0.0
          %869 = vmatpush1.msra.mxu0 0.0
          %870 = vmatprep.subr.mxu0 0.0
          %871 = vmatpush1.msra.mxu0 0.0
          %872 = vmatprep.subr.mxu0 0.0
          %873 = vmatpush1.msra.mxu0 0.0
          %874 = vmatprep.subr.mxu0 0.0
          %875 = vmatpush1.msra.mxu0 0.0
          %876 = vmatprep.subr.mxu0 0.0
          %877 = vmatpush1.msra.mxu0 0.0
          %878 = vmatprep.subr.mxu0 0.0
          %879 = vmatpush1.msra.mxu0 0.0
          %880 = vmatprep.subr.mxu0 0.0
          %881 = vmatpush1.msra.mxu0 0.0
          %882 = vmatprep.subr.mxu0 0.0
          %883 = vmatpush1.msra.mxu0 0.0
          %884 = vmatprep.subr.mxu0 0.0
          %885 = vmatpush1.msra.mxu0 0.0
          %886 = vmatprep.subr.mxu0 0.0
          %887 = vmatpush1.msra.mxu0 0.0
          %888 = vmatprep.subr.mxu0 0.0
          %889 = vmatpush1.msra.mxu0 0.0
          %890 = vmatprep.subr.mxu0 0.0
          %891 = vmatpush1.msra.mxu0 0.0
          %892 = vmatprep.subr.mxu0 0.0
          %893 = vmatpush1.msra.mxu0 0.0
          %894 = vmatprep.subr.mxu0 0.0
          %895 = vmatpush1.msra.mxu0 0.0
          %896 = vmatprep.subr.mxu0 0.0
          %897 = vmatpush1.msra.mxu0 0.0
          %898 = vmatprep.subr.mxu0 0.0
          %899 = vmatpush1.msra.mxu0 0.0
          %900 = vmatprep.subr.mxu0 0.0
          %901 = vmatpush1.msra.mxu0 0.0
          %902 = vmatprep.subr.mxu0 0.0
          %903 = vmatpush1.msra.mxu0 0.0
          %904 = vmatprep.subr.mxu0 0.0
          %905 = vmatpush1.msra.mxu0 0.0
          %906 = vmatprep.subr.mxu0 0.0
          %907 = vmatpush1.msra.mxu0 0.0
          %908 = vmatprep.subr.mxu0 0.0
          %909 = vmatpush1.msra.mxu0 0.0
          %910 = vmatprep.subr.mxu0 0.0
          %911 = vmatpush1.msra.mxu0 0.0
          %912 = vmatprep.subr.mxu0 0.0
          %913 = vmatpush1.msra.mxu0 0.0
          %914 = vmatprep.subr.mxu0 0.0
          %915 = vmatpush1.msra.mxu0 0.0
          %916 = vmatprep.subr.mxu0 0.0
          %917 = vmatpush1.msra.mxu0 0.0
          %918 = vmatprep.subr.mxu0 0.0
          %919 = vmatpush1.msra.mxu0 0.0
          %920 = vmatprep.mubr.f32.mxu0 0.0
          %v921 = vand.u32 %v652, 4294901760
          %922 = vmatmul.mubr.f32.gmra.mrb[0].mxu0 %v921
          %v923 = vpop.f32.mrb[0].mxu0
          %v924 = vadd.f32 %v753, %v923
          %v925 = vpop.f32.mrb[0].mxu0
          %926 = vmatprep.mubr.f32.mxu0 0.0
          %v927 = vand.u32 %v655, 4294901760
          %928 = vmatmul.mubr.f32.gmra.mrb[0].mxu0 %v927
          %v929 = vpop.f32.mrb[0].mxu0
          %v930 = vadd.f32 %v763, %v929
          %v931 = vpop.f32.mrb[0].mxu0
          %932 = vmatprep.mubr.f32.mxu0 0.0
          %v933 = vand.u32 %v658, 4294901760
          %934 = vmatmul.mubr.f32.gmra.mrb[0].mxu0 %v933
          %v935 = vpop.f32.mrb[0].mxu0
          %v936 = vadd.f32 %v773, %v935
          %v937 = vpop.f32.mrb[0].mxu0
          %938 = vmatprep.mubr.f32.mxu0 0.0
          %v939 = vand.u32 %v661, 4294901760
          %940 = vmatmul.mubr.f32.gmra.mrb[0].mxu0 %v939
          %v941 = vpop.f32.mrb[0].mxu0
          %v942 = vadd.f32 %v783, %v941
          %v943 = vpop.f32.mrb[0].mxu0
          %944 = vmatprep.mubr.f32.mxu0 0.0
          %v945 = vand.u32 %v664, 4294901760
          %946 = vmatmul.mubr.f32.gmra.mrb[0].mxu0 %v945
          %v947 = vpop.f32.mrb[0].mxu0
          %v948 = vadd.f32 %v793, %v947
          %v949 = vpop.f32.mrb[0].mxu0
          %950 = vmatprep.mubr.f32.mxu0 0.0
          %v951 = vand.u32 %v667, 4294901760
          %952 = vmatmul.mubr.f32.gmra.mrb[0].mxu0 %v951
          %v953 = vpop.f32.mrb[0].mxu0
          %v954 = vadd.f32 %v803, %v953
          %v955 = vpop.f32.mrb[0].mxu0
          %956 = vmatprep.mubr.f32.mxu0 0.0
          %v957 = vand.u32 %v670, 4294901760
          %958 = vmatmul.mubr.f32.gmra.mrb[0].mxu0 %v957
          %v959 = vpop.f32.mrb[0].mxu0
          %v960 = vadd.f32 %v813, %v959
          %v961 = vpop.f32.mrb[0].mxu0
          %962 = vmatprep.mubr.f32.mxu0 0.0
          %v963 = vand.u32 %v673, 4294901760
          %964 = vmatmul.mubr.f32.gmra.mrb[0].mxu0 %v963
          %v965 = vpop.f32.mrb[0].mxu0
          %v966 = vadd.f32 %v823, %v965
          %v967 = vpop.f32.mrb[0].mxu0
          %968 = vdwg.mxu0
          %969 = vmatprep.subr.mxu0 0.0
          %v970 = vand.u32 %v621, 4294901760
          %v971 = vsub.f32 %v621, %v970
          %972 = vmatpush1.msra.mxu0 %v971
          %973 = vmatprep.subr.mxu0 0.0
          %v974 = vand.u32 %v622, 4294901760
          %v975 = vsub.f32 %v622, %v974
          %976 = vmatpush1.msra.mxu0 %v975
          %977 = vmatprep.subr.mxu0 0.0
          %v978 = vand.u32 %v623, 4294901760
          %v979 = vsub.f32 %v623, %v978
          %980 = vmatpush1.msra.mxu0 %v979
          %981 = vmatprep.subr.mxu0 0.0
          %v982 = vand.u32 %v624, 4294901760
          %v983 = vsub.f32 %v624, %v982
          %984 = vmatpush1.msra.mxu0 %v983
          %985 = vmatprep.subr.mxu0 0.0
          %v986 = vand.u32 %v625, 4294901760
          %v987 = vsub.f32 %v625, %v986
          %988 = vmatpush1.msra.mxu0 %v987
          %989 = vmatprep.subr.mxu0 0.0
          %v990 = vand.u32 %v626, 4294901760
          %v991 = vsub.f32 %v626, %v990
          %992 = vmatpush1.msra.mxu0 %v991
          %993 = vmatprep.subr.mxu0 0.0
          %994 = vmatpush1.msra.mxu0 0.0
          %995 = vmatprep.subr.mxu0 0.0
          %996 = vmatpush1.msra.mxu0 0.0
          %997 = vmatprep.subr.mxu0 0.0
          %998 = vmatpush1.msra.mxu0 0.0
          %999 = vmatprep.subr.mxu0 0.0
          %1000 = vmatpush1.msra.mxu0 0.0
          %1001 = vmatprep.subr.mxu0 0.0
          %1002 = vmatpush1.msra.mxu0 0.0
          %1003 = vmatprep.subr.mxu0 0.0
          %1004 = vmatpush1.msra.mxu0 0.0
          %1005 = vmatprep.subr.mxu0 0.0
          %1006 = vmatpush1.msra.mxu0 0.0
          %1007 = vmatprep.subr.mxu0 0.0
          %1008 = vmatpush1.msra.mxu0 0.0
          %1009 = vmatprep.subr.mxu0 0.0
          %1010 = vmatpush1.msra.mxu0 0.0
          %1011 = vmatprep.subr.mxu0 0.0
          %1012 = vmatpush1.msra.mxu0 0.0
          %1013 = vmatprep.subr.mxu0 0.0
          %1014 = vmatpush1.msra.mxu0 0.0
          %1015 = vmatprep.subr.mxu0 0.0
          %1016 = vmatpush1.msra.mxu0 0.0
          %1017 = vmatprep.subr.mxu0 0.0
          %1018 = vmatpush1.msra.mxu0 0.0
          %1019 = vmatprep.subr.mxu0 0.0
          %1020 = vmatpush1.msra.mxu0 0.0
          %1021 = vmatprep.subr.mxu0 0.0
          %1022 = vmatpush1.msra.mxu0 0.0
          %1023 = vmatprep.subr.mxu0 0.0
          %1024 = vmatpush1.msra.mxu0 0.0
          %1025 = vmatprep.subr.mxu0 0.0
          %1026 = vmatpush1.msra.mxu0 0.0
          %1027 = vmatprep.subr.mxu0 0.0
          %1028 = vmatpush1.msra.mxu0 0.0
          %1029 = vmatprep.subr.mxu0 0.0
          %1030 = vmatpush1.msra.mxu0 0.0
          %1031 = vmatprep.subr.mxu0 0.0
          %1032 = vmatpush1.msra.mxu0 0.0
          %1033 = vmatprep.subr.mxu0 0.0
          %1034 = vmatpush1.msra.mxu0 0.0
          %1035 = vmatprep.subr.mxu0 0.0
          %1036 = vmatpush1.msra.mxu0 0.0
          %1037 = vmatprep.subr.mxu0 0.0
          %1038 = vmatpush1.msra.mxu0 0.0
          %1039 = vmatprep.subr.mxu0 0.0
          %1040 = vmatpush1.msra.mxu0 0.0
          %1041 = vmatprep.subr.mxu0 0.0
          %1042 = vmatpush1.msra.mxu0 0.0
          %1043 = vmatprep.subr.mxu0 0.0
          %1044 = vmatpush1.msra.mxu0 0.0
          %1045 = vmatprep.mubr.f32.mxu0 0.0
          %v1046 = vand.u32 %v652, 4294901760
          %v1047 = vsub.f32 %v652, %v1046
          %1048 = vmatmul.mubr.f32.gmra.mrb[0].mxu0 %v1047
          %v1049 = vpop.f32.mrb[0].mxu0
          %v1050 = vadd.f32 %v924, %v1049
          %v1051 = vpop.f32.mrb[0].mxu0
          %1052 = vmatprep.mubr.f32.mxu0 0.0
          %v1053 = vand.u32 %v655, 4294901760
          %v1054 = vsub.f32 %v655, %v1053
          %1055 = vmatmul.mubr.f32.gmra.mrb[0].mxu0 %v1054
          %v1056 = vpop.f32.mrb[0].mxu0
          %v1057 = vadd.f32 %v930, %v1056
          %v1058 = vpop.f32.mrb[0].mxu0
          %1059 = vmatprep.mubr.f32.mxu0 0.0
          %v1060 = vand.u32 %v658, 4294901760
          %v1061 = vsub.f32 %v658, %v1060
          %1062 = vmatmul.mubr.f32.gmra.mrb[0].mxu0 %v1061
          %v1063 = vpop.f32.mrb[0].mxu0
          %v1064 = vadd.f32 %v936, %v1063
          %v1065 = vpop.f32.mrb[0].mxu0
          %1066 = vmatprep.mubr.f32.mxu0 0.0
          %v1067 = vand.u32 %v661, 4294901760
          %v1068 = vsub.f32 %v661, %v1067
          %1069 = vmatmul.mubr.f32.gmra.mrb[0].mxu0 %v1068
          %v1070 = vpop.f32.mrb[0].mxu0
          %v1071 = vadd.f32 %v942, %v1070
          %v1072 = vpop.f32.mrb[0].mxu0
          %1073 = vmatprep.mubr.f32.mxu0 0.0
          %v1074 = vand.u32 %v664, 4294901760
          %v1075 = vsub.f32 %v664, %v1074
          %1076 = vmatmul.mubr.f32.gmra.mrb[0].mxu0 %v1075
          %v1077 = vpop.f32.mrb[0].mxu0
          %v1078 = vadd.f32 %v948, %v1077
          %v1079 = vpop.f32.mrb[0].mxu0
          %1080 = vmatprep.mubr.f32.mxu0 0.0
          %v1081 = vand.u32 %v667, 4294901760
          %v1082 = vsub.f32 %v667, %v1081
          %1083 = vmatmul.mubr.f32.gmra.mrb[0].mxu0 %v1082
          %v1084 = vpop.f32.mrb[0].mxu0
          %v1085 = vadd.f32 %v954, %v1084
          %v1086 = vpop.f32.mrb[0].mxu0
          %1087 = vmatprep.mubr.f32.mxu0 0.0
          %v1088 = vand.u32 %v670, 4294901760
          %v1089 = vsub.f32 %v670, %v1088
          %1090 = vmatmul.mubr.f32.gmra.mrb[0].mxu0 %v1089
          %v1091 = vpop.f32.mrb[0].mxu0
          %v1092 = vadd.f32 %v960, %v1091
          %v1093 = vpop.f32.mrb[0].mxu0
          %1094 = vmatprep.mubr.f32.mxu0 0.0
          %v1095 = vand.u32 %v673, 4294901760
          %v1096 = vsub.f32 %v673, %v1095
          %1097 = vmatmul.mubr.f32.gmra.mrb[0].mxu0 %v1096
          %v1098 = vpop.f32.mrb[0].mxu0
          %v1099 = vadd.f32 %v966, %v1098
          %v1100 = vpop.f32.mrb[0].mxu0
          %1101 = vdwg.mxu0
          %1102 = vmatprep.subr.mxu0 0.0
          %v1103 = vand.u32 %v621, 4294901760
          %1104 = vmatpush1.msra.mxu0 %v1103
          %1105 = vmatprep.subr.mxu0 0.0
          %v1106 = vand.u32 %v622, 4294901760
          %1107 = vmatpush1.msra.mxu0 %v1106
          %1108 = vmatprep.subr.mxu0 0.0
          %v1109 = vand.u32 %v623, 4294901760
          %1110 = vmatpush1.msra.mxu0 %v1109
          %1111 = vmatprep.subr.mxu0 0.0
          %v1112 = vand.u32 %v624, 4294901760
          %1113 = vmatpush1.msra.mxu0 %v1112
          %1114 = vmatprep.subr.mxu0 0.0
          %v1115 = vand.u32 %v625, 4294901760
          %1116 = vmatpush1.msra.mxu0 %v1115
          %1117 = vmatprep.subr.mxu0 0.0
          %v1118 = vand.u32 %v626, 4294901760
          %1119 = vmatpush1.msra.mxu0 %v1118
          %1120 = vmatprep.subr.mxu0 0.0
          %1121 = vmatpush1.msra.mxu0 0.0
          %1122 = vmatprep.subr.mxu0 0.0
          %1123 = vmatpush1.msra.mxu0 0.0
          %1124 = vmatprep.subr.mxu0 0.0
          %1125 = vmatpush1.msra.mxu0 0.0
          %1126 = vmatprep.subr.mxu0 0.0
          %1127 = vmatpush1.msra.mxu0 0.0
          %1128 = vmatprep.subr.mxu0 0.0
          %1129 = vmatpush1.msra.mxu0 0.0
          %1130 = vmatprep.subr.mxu0 0.0
          %1131 = vmatpush1.msra.mxu0 0.0
          %1132 = vmatprep.subr.mxu0 0.0
          %1133 = vmatpush1.msra.mxu0 0.0
          %1134 = vmatprep.subr.mxu0 0.0
          %1135 = vmatpush1.msra.mxu0 0.0
          %1136 = vmatprep.subr.mxu0 0.0
          %1137 = vmatpush1.msra.mxu0 0.0
          %1138 = vmatprep.subr.mxu0 0.0
          %1139 = vmatpush1.msra.mxu0 0.0
          %1140 = vmatprep.subr.mxu0 0.0
          %1141 = vmatpush1.msra.mxu0 0.0
          %1142 = vmatprep.subr.mxu0 0.0
          %1143 = vmatpush1.msra.mxu0 0.0
          %1144 = vmatprep.subr.mxu0 0.0
          %1145 = vmatpush1.msra.mxu0 0.0
          %1146 = vmatprep.subr.mxu0 0.0
          %1147 = vmatpush1.msra.mxu0 0.0
          %1148 = vmatprep.subr.mxu0 0.0
          %1149 = vmatpush1.msra.mxu0 0.0
          %1150 = vmatprep.subr.mxu0 0.0
          %1151 = vmatpush1.msra.mxu0 0.0
          %1152 = vmatprep.subr.mxu0 0.0
          %1153 = vmatpush1.msra.mxu0 0.0
          %1154 = vmatprep.subr.mxu0 0.0
          %1155 = vmatpush1.msra.mxu0 0.0
          %1156 = vmatprep.subr.mxu0 0.0
          %1157 = vmatpush1.msra.mxu0 0.0
          %1158 = vmatprep.subr.mxu0 0.0
          %1159 = vmatpush1.msra.mxu0 0.0
          %1160 = vmatprep.subr.mxu0 0.0
          %1161 = vmatpush1.msra.mxu0 0.0
          %1162 = vmatprep.subr.mxu0 0.0
          %1163 = vmatpush1.msra.mxu0 0.0
          %1164 = vmatprep.subr.mxu0 0.0
          %1165 = vmatpush1.msra.mxu0 0.0
          %1166 = vmatprep.subr.mxu0 0.0
          %1167 = vmatpush1.msra.mxu0 0.0
          %1168 = vmatprep.subr.mxu0 0.0
          %1169 = vmatpush1.msra.mxu0 0.0
          %1170 = vmatprep.subr.mxu0 0.0
          %1171 = vmatpush1.msra.mxu0 0.0
          %1172 = vmatprep.mubr.f32.mxu0 0.0
          %v1173 = vand.u32 %v652, 4294901760
          %v1174 = vsub.f32 %v652, %v1173
          %v1175 = vand.u32 %v1174, 4294901760
          %1176 = vmatmul.mubr.f32.gmra.mrb[0].mxu0 %v1175
          %v1177 = vpop.f32.mrb[0].mxu0
          %v1178 = vadd.f32 %v1050, %v1177
          %v1179 = vpop.f32.mrb[0].mxu0
          %1180 = vmatprep.mubr.f32.mxu0 0.0
          %v1181 = vand.u32 %v655, 4294901760
          %v1182 = vsub.f32 %v655, %v1181
          %v1183 = vand.u32 %v1182, 4294901760
          %1184 = vmatmul.mubr.f32.gmra.mrb[0].mxu0 %v1183
          %v1185 = vpop.f32.mrb[0].mxu0
          %v1186 = vadd.f32 %v1057, %v1185
          %v1187 = vpop.f32.mrb[0].mxu0
          %1188 = vmatprep.mubr.f32.mxu0 0.0
          %v1189 = vand.u32 %v658, 4294901760
          %v1190 = vsub.f32 %v658, %v1189
          %v1191 = vand.u32 %v1190, 4294901760
          %1192 = vmatmul.mubr.f32.gmra.mrb[0].mxu0 %v1191
          %v1193 = vpop.f32.mrb[0].mxu0
          %v1194 = vadd.f32 %v1064, %v1193
          %v1195 = vpop.f32.mrb[0].mxu0
          %1196 = vmatprep.mubr.f32.mxu0 0.0
          %v1197 = vand.u32 %v661, 4294901760
          %v1198 = vsub.f32 %v661, %v1197
          %v1199 = vand.u32 %v1198, 4294901760
          %1200 = vmatmul.mubr.f32.gmra.mrb[0].mxu0 %v1199
          %v1201 = vpop.f32.mrb[0].mxu0
          %v1202 = vadd.f32 %v1071, %v1201
          %v1203 = vpop.f32.mrb[0].mxu0
          %1204 = vmatprep.mubr.f32.mxu0 0.0
          %v1205 = vand.u32 %v664, 4294901760
          %v1206 = vsub.f32 %v664, %v1205
          %v1207 = vand.u32 %v1206, 4294901760
          %1208 = vmatmul.mubr.f32.gmra.mrb[0].mxu0 %v1207
          %v1209 = vpop.f32.mrb[0].mxu0
          %v1210 = vadd.f32 %v1078, %v1209
          %v1211 = vpop.f32.mrb[0].mxu0
          %1212 = vmatprep.mubr.f32.mxu0 0.0
          %v1213 = vand.u32 %v667, 4294901760
          %v1214 = vsub.f32 %v667, %v1213
          %v1215 = vand.u32 %v1214, 4294901760
          %1216 = vmatmul.mubr.f32.gmra.mrb[0].mxu0 %v1215
          %v1217 = vpop.f32.mrb[0].mxu0
          %v1218 = vadd.f32 %v1085, %v1217
          %v1219 = vpop.f32.mrb[0].mxu0
          %1220 = vmatprep.mubr.f32.mxu0 0.0
          %v1221 = vand.u32 %v670, 4294901760
          %v1222 = vsub.f32 %v670, %v1221
          %v1223 = vand.u32 %v1222, 4294901760
          %1224 = vmatmul.mubr.f32.gmra.mrb[0].mxu0 %v1223
          %v1225 = vpop.f32.mrb[0].mxu0
          %v1226 = vadd.f32 %v1092, %v1225
          %v1227 = vpop.f32.mrb[0].mxu0
          %1228 = vmatprep.mubr.f32.mxu0 0.0
          %v1229 = vand.u32 %v673, 4294901760
          %v1230 = vsub.f32 %v673, %v1229
          %v1231 = vand.u32 %v1230, 4294901760
          %1232 = vmatmul.mubr.f32.gmra.mrb[0].mxu0 %v1231
          %v1233 = vpop.f32.mrb[0].mxu0
          %v1234 = vadd.f32 %v1099, %v1233
          %v1235 = vpop.f32.mrb[0].mxu0
          %1236 = vdwg.mxu0
          %1237 = vmatprep.subr.mxu0 0.0
          %v1238 = vand.u32 %v621, 4294901760
          %v1239 = vsub.f32 %v621, %v1238
          %v1240 = vand.u32 %v1239, 4294901760
          %1241 = vmatpush1.msra.mxu0 %v1240
          %1242 = vmatprep.subr.mxu0 0.0
          %v1243 = vand.u32 %v622, 4294901760
          %v1244 = vsub.f32 %v622, %v1243
          %v1245 = vand.u32 %v1244, 4294901760
          %1246 = vmatpush1.msra.mxu0 %v1245
          %1247 = vmatprep.subr.mxu0 0.0
          %v1248 = vand.u32 %v623, 4294901760
          %v1249 = vsub.f32 %v623, %v1248
          %v1250 = vand.u32 %v1249, 4294901760
          %1251 = vmatpush1.msra.mxu0 %v1250
          %1252 = vmatprep.subr.mxu0 0.0
          %v1253 = vand.u32 %v624, 4294901760
          %v1254 = vsub.f32 %v624, %v1253
          %v1255 = vand.u32 %v1254, 4294901760
          %1256 = vmatpush1.msra.mxu0 %v1255
          %1257 = vmatprep.subr.mxu0 0.0
          %v1258 = vand.u32 %v625, 4294901760
          %v1259 = vsub.f32 %v625, %v1258
          %v1260 = vand.u32 %v1259, 4294901760
          %1261 = vmatpush1.msra.mxu0 %v1260
          %1262 = vmatprep.subr.mxu0 0.0
          %v1263 = vand.u32 %v626, 4294901760
          %v1264 = vsub.f32 %v626, %v1263
          %v1265 = vand.u32 %v1264, 4294901760
          %1266 = vmatpush1.msra.mxu0 %v1265
          %1267 = vmatprep.subr.mxu0 0.0
          %1268 = vmatpush1.msra.mxu0 0.0
          %1269 = vmatprep.subr.mxu0 0.0
          %1270 = vmatpush1.msra.mxu0 0.0
          %1271 = vmatprep.subr.mxu0 0.0
          %1272 = vmatpush1.msra.mxu0 0.0
          %1273 = vmatprep.subr.mxu0 0.0
          %1274 = vmatpush1.msra.mxu0 0.0
          %1275 = vmatprep.subr.mxu0 0.0
          %1276 = vmatpush1.msra.mxu0 0.0
          %1277 = vmatprep.subr.mxu0 0.0
          %1278 = vmatpush1.msra.mxu0 0.0
          %1279 = vmatprep.subr.mxu0 0.0
          %1280 = vmatpush1.msra.mxu0 0.0
          %1281 = vmatprep.subr.mxu0 0.0
          %1282 = vmatpush1.msra.mxu0 0.0
          %1283 = vmatprep.subr.mxu0 0.0
          %1284 = vmatpush1.msra.mxu0 0.0
          %1285 = vmatprep.subr.mxu0 0.0
          %1286 = vmatpush1.msra.mxu0 0.0
          %1287 = vmatprep.subr.mxu0 0.0
          %1288 = vmatpush1.msra.mxu0 0.0
          %1289 = vmatprep.subr.mxu0 0.0
          %1290 = vmatpush1.msra.mxu0 0.0
          %1291 = vmatprep.subr.mxu0 0.0
          %1292 = vmatpush1.msra.mxu0 0.0
          %1293 = vmatprep.subr.mxu0 0.0
          %1294 = vmatpush1.msra.mxu0 0.0
          %1295 = vmatprep.subr.mxu0 0.0
          %1296 = vmatpush1.msra.mxu0 0.0
          %1297 = vmatprep.subr.mxu0 0.0
          %1298 = vmatpush1.msra.mxu0 0.0
          %1299 = vmatprep.subr.mxu0 0.0
          %1300 = vmatpush1.msra.mxu0 0.0
          %1301 = vmatprep.subr.mxu0 0.0
          %1302 = vmatpush1.msra.mxu0 0.0
          %1303 = vmatprep.subr.mxu0 0.0
          %1304 = vmatpush1.msra.mxu0 0.0
          %1305 = vmatprep.subr.mxu0 0.0
          %1306 = vmatpush1.msra.mxu0 0.0
          %1307 = vmatprep.subr.mxu0 0.0
          %1308 = vmatpush1.msra.mxu0 0.0
          %1309 = vmatprep.subr.mxu0 0.0
          %1310 = vmatpush1.msra.mxu0 0.0
          %1311 = vmatprep.subr.mxu0 0.0
          %1312 = vmatpush1.msra.mxu0 0.0
          %1313 = vmatprep.subr.mxu0 0.0
          %1314 = vmatpush1.msra.mxu0 0.0
          %1315 = vmatprep.subr.mxu0 0.0
          %1316 = vmatpush1.msra.mxu0 0.0
          %1317 = vmatprep.subr.mxu0 0.0
          %1318 = vmatpush1.msra.mxu0 0.0
          %1319 = vmatprep.mubr.f32.mxu0 0.0
          %v1320 = vand.u32 %v652, 4294901760
          %1321 = vmatmul.mubr.f32.gmra.mrb[0].mxu0 %v1320
          %v1322 = vpop.f32.mrb[0].mxu0
          %v1323 = vadd.f32 %v1178, %v1322
          %v1324 = vpop.f32.mrb[0].mxu0
          %1325 = vmatprep.mubr.f32.mxu0 0.0
          %v1326 = vand.u32 %v655, 4294901760
          %1327 = vmatmul.mubr.f32.gmra.mrb[0].mxu0 %v1326
          %v1328 = vpop.f32.mrb[0].mxu0
          %v1329 = vadd.f32 %v1186, %v1328
          %v1330 = vpop.f32.mrb[0].mxu0
          %1331 = vmatprep.mubr.f32.mxu0 0.0
          %v1332 = vand.u32 %v658, 4294901760
          %1333 = vmatmul.mubr.f32.gmra.mrb[0].mxu0 %v1332
          %v1334 = vpop.f32.mrb[0].mxu0
          %v1335 = vadd.f32 %v1194, %v1334
          %v1336 = vpop.f32.mrb[0].mxu0
          %1337 = vmatprep.mubr.f32.mxu0 0.0
          %v1338 = vand.u32 %v661, 4294901760
          %1339 = vmatmul.mubr.f32.gmra.mrb[0].mxu0 %v1338
          %v1340 = vpop.f32.mrb[0].mxu0
          %v1341 = vadd.f32 %v1202, %v1340
          %v1342 = vpop.f32.mrb[0].mxu0
          %1343 = vmatprep.mubr.f32.mxu0 0.0
          %v1344 = vand.u32 %v664, 4294901760
          %1345 = vmatmul.mubr.f32.gmra.mrb[0].mxu0 %v1344
          %v1346 = vpop.f32.mrb[0].mxu0
          %v1347 = vadd.f32 %v1210, %v1346
          %v1348 = vpop.f32.mrb[0].mxu0
          %1349 = vmatprep.mubr.f32.mxu0 0.0
          %v1350 = vand.u32 %v667, 4294901760
          %1351 = vmatmul.mubr.f32.gmra.mrb[0].mxu0 %v1350
          %v1352 = vpop.f32.mrb[0].mxu0
          %v1353 = vadd.f32 %v1218, %v1352
          %v1354 = vpop.f32.mrb[0].mxu0
          %1355 = vmatprep.mubr.f32.mxu0 0.0
          %v1356 = vand.u32 %v670, 4294901760
          %1357 = vmatmul.mubr.f32.gmra.mrb[0].mxu0 %v1356
          %v1358 = vpop.f32.mrb[0].mxu0
          %v1359 = vadd.f32 %v1226, %v1358
          %v1360 = vpop.f32.mrb[0].mxu0
          %1361 = vmatprep.mubr.f32.mxu0 0.0
          %v1362 = vand.u32 %v673, 4294901760
          %1363 = vmatmul.mubr.f32.gmra.mrb[0].mxu0 %v1362
          %v1364 = vpop.f32.mrb[0].mxu0
          %v1365 = vadd.f32 %v1234, %v1364
          %v1366 = vpop.f32.mrb[0].mxu0
          %1367 = vdwg.mxu0
          %1368 = vmatprep.subr.mxu0 0.0
          %v1369 = vand.u32 %v621, 4294901760
          %1370 = vmatpush1.msra.mxu0 %v1369
          %1371 = vmatprep.subr.mxu0 0.0
          %v1372 = vand.u32 %v622, 4294901760
          %1373 = vmatpush1.msra.mxu0 %v1372
          %1374 = vmatprep.subr.mxu0 0.0
          %v1375 = vand.u32 %v623, 4294901760
          %1376 = vmatpush1.msra.mxu0 %v1375
          %1377 = vmatprep.subr.mxu0 0.0
          %v1378 = vand.u32 %v624, 4294901760
          %1379 = vmatpush1.msra.mxu0 %v1378
          %1380 = vmatprep.subr.mxu0 0.0
          %v1381 = vand.u32 %v625, 4294901760
          %1382 = vmatpush1.msra.mxu0 %v1381
          %1383 = vmatprep.subr.mxu0 0.0
          %v1384 = vand.u32 %v626, 4294901760
          %1385 = vmatpush1.msra.mxu0 %v1384
          %1386 = vmatprep.subr.mxu0 0.0
          %1387 = vmatpush1.msra.mxu0 0.0
          %1388 = vmatprep.subr.mxu0 0.0
          %1389 = vmatpush1.msra.mxu0 0.0
          %1390 = vmatprep.subr.mxu0 0.0
          %1391 = vmatpush1.msra.mxu0 0.0
          %1392 = vmatprep.subr.mxu0 0.0
          %1393 = vmatpush1.msra.mxu0 0.0
          %1394 = vmatprep.subr.mxu0 0.0
          %1395 = vmatpush1.msra.mxu0 0.0
          %1396 = vmatprep.subr.mxu0 0.0
          %1397 = vmatpush1.msra.mxu0 0.0
          %1398 = vmatprep.subr.mxu0 0.0
          %1399 = vmatpush1.msra.mxu0 0.0
          %1400 = vmatprep.subr.mxu0 0.0
          %1401 = vmatpush1.msra.mxu0 0.0
          %1402 = vmatprep.subr.mxu0 0.0
          %1403 = vmatpush1.msra.mxu0 0.0
          %1404 = vmatprep.subr.mxu0 0.0
          %1405 = vmatpush1.msra.mxu0 0.0
          %1406 = vmatprep.subr.mxu0 0.0
          %1407 = vmatpush1.msra.mxu0 0.0
          %1408 = vmatprep.subr.mxu0 0.0
          %1409 = vmatpush1.msra.mxu0 0.0
          %1410 = vmatprep.subr.mxu0 0.0
          %1411 = vmatpush1.msra.mxu0 0.0
          %1412 = vmatprep.subr.mxu0 0.0
          %1413 = vmatpush1.msra.mxu0 0.0
          %1414 = vmatprep.subr.mxu0 0.0
          %1415 = vmatpush1.msra.mxu0 0.0
          %1416 = vmatprep.subr.mxu0 0.0
          %1417 = vmatpush1.msra.mxu0 0.0
          %1418 = vmatprep.subr.mxu0 0.0
          %1419 = vmatpush1.msra.mxu0 0.0
          %1420 = vmatprep.subr.mxu0 0.0
          %1421 = vmatpush1.msra.mxu0 0.0
          %1422 = vmatprep.subr.mxu0 0.0
          %1423 = vmatpush1.msra.mxu0 0.0
          %1424 = vmatprep.subr.mxu0 0.0
          %1425 = vmatpush1.msra.mxu0 0.0
          %1426 = vmatprep.subr.mxu0 0.0
          %1427 = vmatpush1.msra.mxu0 0.0
          %1428 = vmatprep.subr.mxu0 0.0
          %1429 = vmatpush1.msra.mxu0 0.0
          %1430 = vmatprep.subr.mxu0 0.0
          %1431 = vmatpush1.msra.mxu0 0.0
          %1432 = vmatprep.subr.mxu0 0.0
          %1433 = vmatpush1.msra.mxu0 0.0
          %1434 = vmatprep.subr.mxu0 0.0
          %1435 = vmatpush1.msra.mxu0 0.0
          %1436 = vmatprep.subr.mxu0 0.0
          %1437 = vmatpush1.msra.mxu0 0.0
          %1438 = vmatprep.mubr.f32.mxu0 0.0
          %v1439 = vand.u32 %v652, 4294901760
          %1440 = vmatmul.mubr.f32.gmra.mrb[0].mxu0 %v1439
          %v1441 = vpop.f32.mrb[0].mxu0
          %v1442 = vadd.f32 %v1323, %v1441
          %v1443 = vpop.f32.mrb[0].mxu0
          %1444 = vmatprep.mubr.f32.mxu0 0.0
          %v1445 = vand.u32 %v655, 4294901760
          %1446 = vmatmul.mubr.f32.gmra.mrb[0].mxu0 %v1445
          %v1447 = vpop.f32.mrb[0].mxu0
          %v1448 = vadd.f32 %v1329, %v1447
          %v1449 = vpop.f32.mrb[0].mxu0
          %1450 = vmatprep.mubr.f32.mxu0 0.0
          %v1451 = vand.u32 %v658, 4294901760
          %1452 = vmatmul.mubr.f32.gmra.mrb[0].mxu0 %v1451
          %v1453 = vpop.f32.mrb[0].mxu0
          %v1454 = vadd.f32 %v1335, %v1453
          %v1455 = vpop.f32.mrb[0].mxu0
          %1456 = vmatprep.mubr.f32.mxu0 0.0
          %v1457 = vand.u32 %v661, 4294901760
          %1458 = vmatmul.mubr.f32.gmra.mrb[0].mxu0 %v1457
          %v1459 = vpop.f32.mrb[0].mxu0
          %v1460 = vadd.f32 %v1341, %v1459
          %v1461 = vpop.f32.mrb[0].mxu0
          %1462 = vmatprep.mubr.f32.mxu0 0.0
          %v1463 = vand.u32 %v664, 4294901760
          %1464 = vmatmul.mubr.f32.gmra.mrb[0].mxu0 %v1463
          %v1465 = vpop.f32.mrb[0].mxu0
          %v1466 = vadd.f32 %v1347, %v1465
          %v1467 = vpop.f32.mrb[0].mxu0
          %1468 = vmatprep.mubr.f32.mxu0 0.0
          %v1469 = vand.u32 %v667, 4294901760
          %1470 = vmatmul.mubr.f32.gmra.mrb[0].mxu0 %v1469
          %v1471 = vpop.f32.mrb[0].mxu0
          %v1472 = vadd.f32 %v1353, %v1471
          %v1473 = vpop.f32.mrb[0].mxu0
          %1474 = vmatprep.mubr.f32.mxu0 0.0
          %v1475 = vand.u32 %v670, 4294901760
          %1476 = vmatmul.mubr.f32.gmra.mrb[0].mxu0 %v1475
          %v1477 = vpop.f32.mrb[0].mxu0
          %v1478 = vadd.f32 %v1359, %v1477
          %v1479 = vpop.f32.mrb[0].mxu0
          %1480 = vmatprep.mubr.f32.mxu0 0.0
          %v1481 = vand.u32 %v673, 4294901760
          %1482 = vmatmul.mubr.f32.gmra.mrb[0].mxu0 %v1481
          %v1483 = vpop.f32.mrb[0].mxu0
          %v1484 = vadd.f32 %v1365, %v1483
          %v1485 = vpop.f32.mrb[0].mxu0
          %1486 = vdwg.mxu0
          %s1487 = sadd.s32 %s629, 1
          %s1488 = smul.u32 %s1487, 240
          %s1489 = sadd.s32 24, %s1488
          %s1490 = scalar_lea.vmem [#allocation2], %s1489
          %1491 = vst [vmem:[%s1490 + $0x8] sm:$0xff] %v1442
          %1492 = vst [vmem:[%s1490 + $0x20] sm:$0xff] %v1448
          %1493 = vst [vmem:[%s1490 + $0x38] sm:$0xff] %v1454
          %1494 = vst [vmem:[%s1490 + $0x50] sm:$0xff] %v1460
          %1495 = vst [vmem:[%s1490 + $0x68] sm:$0xff] %v1466
          %1496 = vst [vmem:[%s1490 + $0x80] sm:$0xff] %v1472
          %1497 = vst [vmem:[%s1490 + $0x98] sm:$0xff] %v1478
          %1498 = vst [vmem:[%s1490 + $0xb0] sm:$0xff] %v1484
        $region45: #{tpu_custom_call.1} parent=39 // loop_footer
          %s633 = sadd.s32 1, %s629
        $region46: #{tpu_custom_call.1} parent=39 // loop_footer_branch
          %628 = sbr.rel target = $region42
        $region47: #{tpu_custom_call.1} parent=39 // loop_exit
          _
        %v1499 = vld [vmem:[%s298] sm:$0x1]
        %v1500 = vld [vmem:[%s292] sm:$0x1]
        %v1501 = vld [vmem:[%s292 + $0x1] sm:$0x1]
        %v1502 = vld [vmem:[%s292 + $0x2] sm:$0x1]
        %v1503 = vld [vmem:[%s292 + $0x3] sm:$0x1]
        %v1504 = vld [vmem:[%s292 + $0x4] sm:$0x1]
        %v1505 = vld [vmem:[%s292 + $0x5] sm:$0x1]
        %v1506 = vld [vmem:[%s292 + $0x6] sm:$0x1]
        %v1507 = vld [vmem:[%s292 + $0x7] sm:$0x1]
        %v1508 = vld [vmem:[%s292 + $0x8] sm:$0x1]
        %v1509 = vld [vmem:[%s292 + $0x9] sm:$0x1]
        %v1510 = vld [vmem:[%s292 + $0xa] sm:$0x1]
        %v1511 = vld [vmem:[%s292 + $0xb] sm:$0x1]
        %v1512 = vld [vmem:[%s292 + $0xc] sm:$0x1]
        %v1513 = vld [vmem:[%s292 + $0xd] sm:$0x1]
        %v1514 = vld [vmem:[%s292 + $0xe] sm:$0x1]
        %v1515 = vld [vmem:[%s292 + $0xf] sm:$0x1]
        %v1516 = vld [vmem:[%s292 + $0x10] sm:$0x1]
        %v1517 = vld [vmem:[%s292 + $0x11] sm:$0x1]
        %v1518 = vld [vmem:[%s292 + $0x12] sm:$0x1]
        %v1519 = vld [vmem:[%s292 + $0x13] sm:$0x1]
        %v1520 = vld [vmem:[%s292 + $0x14] sm:$0x1]
        %v1521 = vld [vmem:[%s292 + $0x15] sm:$0x1]
        %v1522 = vld [vmem:[%s292 + $0x16] sm:$0x1]
        %v1523 = vld [vmem:[%s292 + $0x17] sm:$0x1]
        %v1524 = vld [vmem:[%s292 + $0x18] sm:$0x1]
        %v1525 = vld [vmem:[%s292 + $0x19] sm:$0x1]
        %v1526 = vld [vmem:[%s292 + $0x1a] sm:$0x1]
        loop: start=0, step=1, limit=8
        $region48: #{tpu_custom_call.1} parent=39 // loop_pre_header
          _
        $region49: #{tpu_custom_call.1} parent=39 // loop_header
          %s1528 = sphi 0, %s1532
          %p1529 = scmp.ge.s32.totalorder %s1528, 8
        $region50: #{tpu_custom_call.1} parent=39 // loop_header_branch
          %1531 = sbr.rel (%p1529) target = $region54
        $region51: #{tpu_custom_call.1} parent=39 // loop_body
          %s1533 = smul.u32 %s1528, 240
          %s1534 = scalar_lea.vmem [#allocation2], %s1533
          %v1535 = vld [vmem:[%s1534] sm:$0xff]
          %v1536 = vld [vmem:[%s1534 + $0x8] sm:$0xff]
          %v1537 = vld [vmem:[%s1534 + $0x10] sm:$0xff]
          %v1538 = vld [vmem:[%s1534 + $0x18] sm:$0xff]
          %v1539 = vld [vmem:[%s1534 + $0x20] sm:$0xff]
          %v1540 = vld [vmem:[%s1534 + $0x28] sm:$0xff]
          %v1541 = vld [vmem:[%s1534 + $0x30] sm:$0xff]
          %v1542 = vld [vmem:[%s1534 + $0x38] sm:$0xff]
          %v1543 = vld [vmem:[%s1534 + $0x40] sm:$0xff]
          %v1544 = vld [vmem:[%s1534 + $0x48] sm:$0xff]
          %v1545 = vld [vmem:[%s1534 + $0x50] sm:$0xff]
          %v1546 = vld [vmem:[%s1534 + $0x58] sm:$0xff]
          %v1547 = vld [vmem:[%s1534 + $0x60] sm:$0xff]
          %v1548 = vld [vmem:[%s1534 + $0x68] sm:$0xff]
          %v1549 = vld [vmem:[%s1534 + $0x70] sm:$0xff]
          %v1550 = vld [vmem:[%s1534 + $0x78] sm:$0xff]
          %v1551 = vld [vmem:[%s1534 + $0x80] sm:$0xff]
          %v1552 = vld [vmem:[%s1534 + $0x88] sm:$0xff]
          %v1553 = vld [vmem:[%s1534 + $0x90] sm:$0xff]
          %v1554 = vld [vmem:[%s1534 + $0x98] sm:$0xff]
          %v1555 = vld [vmem:[%s1534 + $0xa0] sm:$0xff]
          %v1556 = vld [vmem:[%s1534 + $0xa8] sm:$0xff]
          %v1557 = vld [vmem:[%s1534 + $0xb0] sm:$0xff]
          %v1558 = vld [vmem:[%s1534 + $0xb8] sm:$0xff]
          %v1559 = vld [vmem:[%s1534 + $0xc0] sm:$0xff]
          %v1560 = vld [vmem:[%s1534 + $0xc8] sm:$0xff]
          %v1561 = vld [vmem:[%s1534 + $0xd0] sm:$0xff]
          %v1562 = vld [vmem:[%s1534 + $0xd8] sm:$0xff]
          %v1563 = vld [vmem:[%s1534 + $0xe0] sm:$0xff]
          %v1564 = vld [vmem:[%s1534 + $0xe8] sm:$0xff]
          %v1565 = vrot.slane %v1535, 7
          %v1566 = vrot.slane %v1538, 7
          %v1567 = vrot.slane %v1541, 7
          %v1568 = vrot.slane %v1544, 7
          %v1569 = vrot.slane %v1547, 7
          %v1570 = vrot.slane %v1550, 7
          %v1571 = vrot.slane %v1553, 7
          %v1572 = vrot.slane %v1556, 7
          %v1573 = vrot.slane %v1559, 7
          %v1574 = vrot.slane %v1562, 7
          %v1575 = vrot.slane %v1536, 7
          %v1576 = vrot.slane %v1539, 7
          %v1577 = vrot.slane %v1542, 7
          %v1578 = vrot.slane %v1545, 7
          %v1579 = vrot.slane %v1548, 7
          %v1580 = vrot.slane %v1551, 7
          %v1581 = vrot.slane %v1554, 7
          %v1582 = vrot.slane %v1557, 7
          %v1583 = vrot.slane %v1560, 7
          %v1584 = vrot.slane %v1563, 7
          %v1585 = vlaneseq
          %v1586 = vshrl.u32 %v1585, 7
          %vm1587 = vcmp.lt.s32.totalorder %v1586, 1
          %v1588 = vsel %vm1587, %v1565, %v1575
          %v1589 = vsel %vm1587, %v1566, %v1576
          %v1590 = vsel %vm1587, %v1567, %v1577
          %v1591 = vsel %vm1587, %v1568, %v1578
          %v1592 = vsel %vm1587, %v1569, %v1579
          %v1593 = vsel %vm1587, %v1570, %v1580
          %v1594 = vsel %vm1587, %v1571, %v1581
          %v1595 = vsel %vm1587, %v1572, %v1582
          %v1596 = vsel %vm1587, %v1573, %v1583
          %v1597 = vsel %vm1587, %v1574, %v1584
          %v1598 = vrot.slane %v1536, 1
          %v1599 = vrot.slane %v1539, 1
          %v1600 = vrot.slane %v1542, 1
          %v1601 = vrot.slane %v1545, 1
          %v1602 = vrot.slane %v1548, 1
          %v1603 = vrot.slane %v1551, 1
          %v1604 = vrot.slane %v1554, 1
          %v1605 = vrot.slane %v1557, 1
          %v1606 = vrot.slane %v1560, 1
          %v1607 = vrot.slane %v1563, 1
          %v1608 = vrot.slane %v1537, 1
          %v1609 = vrot.slane %v1540, 1
          %v1610 = vrot.slane %v1543, 1
          %v1611 = vrot.slane %v1546, 1
          %v1612 = vrot.slane %v1549, 1
          %v1613 = vrot.slane %v1552, 1
          %v1614 = vrot.slane %v1555, 1
          %v1615 = vrot.slane %v1558, 1
          %v1616 = vrot.slane %v1561, 1
          %v1617 = vrot.slane %v1564, 1
          %vm1618 = vcmp.lt.s32.totalorder %v1586, 7
          %v1619 = vsel %vm1618, %v1598, %v1608
          %v1620 = vsel %vm1618, %v1599, %v1609
          %v1621 = vsel %vm1618, %v1600, %v1610
          %v1622 = vsel %vm1618, %v1601, %v1611
          %v1623 = vsel %vm1618, %v1602, %v1612
          %v1624 = vsel %vm1618, %v1603, %v1613
          %v1625 = vsel %vm1618, %v1604, %v1614
          %v1626 = vsel %vm1618, %v1605, %v1615
          %v1627 = vsel %vm1618, %v1606, %v1616
          %v1628 = vsel %vm1618, %v1607, %v1617
          %v1629 = vlaneseq
          %v1630 = vshrl.u32 %v1629, 7
          %v1631 = vsub.s32 0, %v1630
          %v1632 = vrot.slane %v1500, %v1631
          %v1633 = vmul.f32 %v1588, %v1632
          %v1634 = vmul.f32 %v1589, %v1632
          %v1635 = vmul.f32 %v1590, %v1632
          %v1636 = vmul.f32 %v1591, %v1632
          %v1637 = vmul.f32 %v1592, %v1632
          %v1638 = vmul.f32 %v1593, %v1632
          %v1639 = vmul.f32 %v1594, %v1632
          %v1640 = vmul.f32 %v1595, %v1632
          %v1641 = vadd.f32 %v1633, 0.0
          %v1642 = vadd.f32 %v1634, 0.0
          %v1643 = vadd.f32 %v1635, 0.0
          %v1644 = vadd.f32 %v1636, 0.0
          %v1645 = vadd.f32 %v1637, 0.0
          %v1646 = vadd.f32 %v1638, 0.0
          %v1647 = vadd.f32 %v1639, 0.0
          %v1648 = vadd.f32 %v1640, 0.0
          %v1649 = vlaneseq
          %v1650 = vshrl.u32 %v1649, 7
          %v1651 = vsub.s32 0, %v1650
          %v1652 = vrot.slane %v1503, %v1651
          %v1653 = vmul.f32 %v1589, %v1652
          %v1654 = vmul.f32 %v1590, %v1652
          %v1655 = vmul.f32 %v1591, %v1652
          %v1656 = vmul.f32 %v1592, %v1652
          %v1657 = vmul.f32 %v1593, %v1652
          %v1658 = vmul.f32 %v1594, %v1652
          %v1659 = vmul.f32 %v1595, %v1652
          %v1660 = vmul.f32 %v1596, %v1652
          %v1661 = vadd.f32 %v1641, %v1653
          %v1662 = vadd.f32 %v1642, %v1654
          %v1663 = vadd.f32 %v1643, %v1655
          %v1664 = vadd.f32 %v1644, %v1656
          %v1665 = vadd.f32 %v1645, %v1657
          %v1666 = vadd.f32 %v1646, %v1658
          %v1667 = vadd.f32 %v1647, %v1659
          %v1668 = vadd.f32 %v1648, %v1660
          %v1669 = vlaneseq
          %v1670 = vshrl.u32 %v1669, 7
          %v1671 = vsub.s32 0, %v1670
          %v1672 = vrot.slane %v1506, %v1671
          %v1673 = vmul.f32 %v1590, %v1672
          %v1674 = vmul.f32 %v1591, %v1672
          %v1675 = vmul.f32 %v1592, %v1672
          %v1676 = vmul.f32 %v1593, %v1672
          %v1677 = vmul.f32 %v1594, %v1672
          %v1678 = vmul.f32 %v1595, %v1672
          %v1679 = vmul.f32 %v1596, %v1672
          %v1680 = vmul.f32 %v1597, %v1672
          %v1681 = vadd.f32 %v1661, %v1673
          %v1682 = vadd.f32 %v1662, %v1674
          %v1683 = vadd.f32 %v1663, %v1675
          %v1684 = vadd.f32 %v1664, %v1676
          %v1685 = vadd.f32 %v1665, %v1677
          %v1686 = vadd.f32 %v1666, %v1678
          %v1687 = vadd.f32 %v1667, %v1679
          %v1688 = vadd.f32 %v1668, %v1680
          %v1689 = vlaneseq
          %v1690 = vshrl.u32 %v1689, 7
          %v1691 = vsub.s32 0, %v1690
          %v1692 = vrot.slane %v1501, %v1691
          %v1693 = vmul.f32 %v1536, %v1692
          %v1694 = vmul.f32 %v1539, %v1692
          %v1695 = vmul.f32 %v1542, %v1692
          %v1696 = vmul.f32 %v1545, %v1692
          %v1697 = vmul.f32 %v1548, %v1692
          %v1698 = vmul.f32 %v1551, %v1692
          %v1699 = vmul.f32 %v1554, %v1692
          %v1700 = vmul.f32 %v1557, %v1692
          %v1701 = vadd.f32 %v1681, %v1693
          %v1702 = vadd.f32 %v1682, %v1694
          %v1703 = vadd.f32 %v1683, %v1695
          %v1704 = vadd.f32 %v1684, %v1696
          %v1705 = vadd.f32 %v1685, %v1697
          %v1706 = vadd.f32 %v1686, %v1698
          %v1707 = vadd.f32 %v1687, %v1699
          %v1708 = vadd.f32 %v1688, %v1700
          %v1709 = vlaneseq
          %v1710 = vshrl.u32 %v1709, 7
          %v1711 = vsub.s32 0, %v1710
          %v1712 = vrot.slane %v1504, %v1711
          %v1713 = vmul.f32 %v1539, %v1712
          %v1714 = vmul.f32 %v1542, %v1712
          %v1715 = vmul.f32 %v1545, %v1712
          %v1716 = vmul.f32 %v1548, %v1712
          %v1717 = vmul.f32 %v1551, %v1712
          %v1718 = vmul.f32 %v1554, %v1712
          %v1719 = vmul.f32 %v1557, %v1712
          %v1720 = vmul.f32 %v1560, %v1712
          %v1721 = vadd.f32 %v1701, %v1713
          %v1722 = vadd.f32 %v1702, %v1714
          %v1723 = vadd.f32 %v1703, %v1715
          %v1724 = vadd.f32 %v1704, %v1716
          %v1725 = vadd.f32 %v1705, %v1717
          %v1726 = vadd.f32 %v1706, %v1718
          %v1727 = vadd.f32 %v1707, %v1719
          %v1728 = vadd.f32 %v1708, %v1720
          %v1729 = vlaneseq
          %v1730 = vshrl.u32 %v1729, 7
          %v1731 = vsub.s32 0, %v1730
          %v1732 = vrot.slane %v1507, %v1731
          %v1733 = vmul.f32 %v1542, %v1732
          %v1734 = vmul.f32 %v1545, %v1732
          %v1735 = vmul.f32 %v1548, %v1732
          %v1736 = vmul.f32 %v1551, %v1732
          %v1737 = vmul.f32 %v1554, %v1732
          %v1738 = vmul.f32 %v1557, %v1732
          %v1739 = vmul.f32 %v1560, %v1732
          %v1740 = vmul.f32 %v1563, %v1732
          %v1741 = vadd.f32 %v1721, %v1733
          %v1742 = vadd.f32 %v1722, %v1734
          %v1743 = vadd.f32 %v1723, %v1735
          %v1744 = vadd.f32 %v1724, %v1736
          %v1745 = vadd.f32 %v1725, %v1737
          %v1746 = vadd.f32 %v1726, %v1738
          %v1747 = vadd.f32 %v1727, %v1739
          %v1748 = vadd.f32 %v1728, %v1740
          %v1749 = vlaneseq
          %v1750 = vshrl.u32 %v1749, 7
          %v1751 = vsub.s32 0, %v1750
          %v1752 = vrot.slane %v1502, %v1751
          %v1753 = vmul.f32 %v1619, %v1752
          %v1754 = vmul.f32 %v1620, %v1752
          %v1755 = vmul.f32 %v1621, %v1752
          %v1756 = vmul.f32 %v1622, %v1752
          %v1757 = vmul.f32 %v1623, %v1752
          %v1758 = vmul.f32 %v1624, %v1752
          %v1759 = vmul.f32 %v1625, %v1752
          %v1760 = vmul.f32 %v1626, %v1752
          %v1761 = vadd.f32 %v1741, %v1753
          %v1762 = vadd.f32 %v1742, %v1754
          %v1763 = vadd.f32 %v1743, %v1755
          %v1764 = vadd.f32 %v1744, %v1756
          %v1765 = vadd.f32 %v1745, %v1757
          %v1766 = vadd.f32 %v1746, %v1758
          %v1767 = vadd.f32 %v1747, %v1759
          %v1768 = vadd.f32 %v1748, %v1760
          %v1769 = vlaneseq
          %v1770 = vshrl.u32 %v1769, 7
          %v1771 = vsub.s32 0, %v1770
          %v1772 = vrot.slane %v1505, %v1771
          %v1773 = vmul.f32 %v1620, %v1772
          %v1774 = vmul.f32 %v1621, %v1772
          %v1775 = vmul.f32 %v1622, %v1772
          %v1776 = vmul.f32 %v1623, %v1772
          %v1777 = vmul.f32 %v1624, %v1772
          %v1778 = vmul.f32 %v1625, %v1772
          %v1779 = vmul.f32 %v1626, %v1772
          %v1780 = vmul.f32 %v1627, %v1772
          %v1781 = vadd.f32 %v1761, %v1773
          %v1782 = vadd.f32 %v1762, %v1774
          %v1783 = vadd.f32 %v1763, %v1775
          %v1784 = vadd.f32 %v1764, %v1776
          %v1785 = vadd.f32 %v1765, %v1777
          %v1786 = vadd.f32 %v1766, %v1778
          %v1787 = vadd.f32 %v1767, %v1779
          %v1788 = vadd.f32 %v1768, %v1780
          %v1789 = vlaneseq
          %v1790 = vshrl.u32 %v1789, 7
          %v1791 = vsub.s32 0, %v1790
          %v1792 = vrot.slane %v1508, %v1791
          %v1793 = vmul.f32 %v1621, %v1792
          %v1794 = vmul.f32 %v1622, %v1792
          %v1795 = vmul.f32 %v1623, %v1792
          %v1796 = vmul.f32 %v1624, %v1792
          %v1797 = vmul.f32 %v1625, %v1792
          %v1798 = vmul.f32 %v1626, %v1792
          %v1799 = vmul.f32 %v1627, %v1792
          %v1800 = vmul.f32 %v1628, %v1792
          %v1801 = vadd.f32 %v1781, %v1793
          %v1802 = vadd.f32 %v1782, %v1794
          %v1803 = vadd.f32 %v1783, %v1795
          %v1804 = vadd.f32 %v1784, %v1796
          %v1805 = vadd.f32 %v1785, %v1797
          %v1806 = vadd.f32 %v1786, %v1798
          %v1807 = vadd.f32 %v1787, %v1799
          %v1808 = vadd.f32 %v1788, %v1800
          %s1809 = sadd.s32 %s1528, 1
          %s1810 = smul.u32 %s1809, 240
          %s1811 = scalar_lea.vmem [#allocation2], %s1810
          %v1812 = vld [vmem:[%s1811] sm:$0xff]
          %v1813 = vld [vmem:[%s1811 + $0x8] sm:$0xff]
          %v1814 = vld [vmem:[%s1811 + $0x10] sm:$0xff]
          %v1815 = vld [vmem:[%s1811 + $0x18] sm:$0xff]
          %v1816 = vld [vmem:[%s1811 + $0x20] sm:$0xff]
          %v1817 = vld [vmem:[%s1811 + $0x28] sm:$0xff]
          %v1818 = vld [vmem:[%s1811 + $0x30] sm:$0xff]
          %v1819 = vld [vmem:[%s1811 + $0x38] sm:$0xff]
          %v1820 = vld [vmem:[%s1811 + $0x40] sm:$0xff]
          %v1821 = vld [vmem:[%s1811 + $0x48] sm:$0xff]
          %v1822 = vld [vmem:[%s1811 + $0x50] sm:$0xff]
          %v1823 = vld [vmem:[%s1811 + $0x58] sm:$0xff]
          %v1824 = vld [vmem:[%s1811 + $0x60] sm:$0xff]
          %v1825 = vld [vmem:[%s1811 + $0x68] sm:$0xff]
          %v1826 = vld [vmem:[%s1811 + $0x70] sm:$0xff]
          %v1827 = vld [vmem:[%s1811 + $0x78] sm:$0xff]
          %v1828 = vld [vmem:[%s1811 + $0x80] sm:$0xff]
          %v1829 = vld [vmem:[%s1811 + $0x88] sm:$0xff]
          %v1830 = vld [vmem:[%s1811 + $0x90] sm:$0xff]
          %v1831 = vld [vmem:[%s1811 + $0x98] sm:$0xff]
          %v1832 = vld [vmem:[%s1811 + $0xa0] sm:$0xff]
          %v1833 = vld [vmem:[%s1811 + $0xa8] sm:$0xff]
          %v1834 = vld [vmem:[%s1811 + $0xb0] sm:$0xff]
          %v1835 = vld [vmem:[%s1811 + $0xb8] sm:$0xff]
          %v1836 = vld [vmem:[%s1811 + $0xc0] sm:$0xff]
          %v1837 = vld [vmem:[%s1811 + $0xc8] sm:$0xff]
          %v1838 = vld [vmem:[%s1811 + $0xd0] sm:$0xff]
          %v1839 = vld [vmem:[%s1811 + $0xd8] sm:$0xff]
          %v1840 = vld [vmem:[%s1811 + $0xe0] sm:$0xff]
          %v1841 = vld [vmem:[%s1811 + $0xe8] sm:$0xff]
          %v1842 = vrot.slane %v1812, 7
          %v1843 = vrot.slane %v1815, 7
          %v1844 = vrot.slane %v1818, 7
          %v1845 = vrot.slane %v1821, 7
          %v1846 = vrot.slane %v1824, 7
          %v1847 = vrot.slane %v1827, 7
          %v1848 = vrot.slane %v1830, 7
          %v1849 = vrot.slane %v1833, 7
          %v1850 = vrot.slane %v1836, 7
          %v1851 = vrot.slane %v1839, 7
          %v1852 = vrot.slane %v1813, 7
          %v1853 = vrot.slane %v1816, 7
          %v1854 = vrot.slane %v1819, 7
          %v1855 = vrot.slane %v1822, 7
          %v1856 = vrot.slane %v1825, 7
          %v1857 = vrot.slane %v1828, 7
          %v1858 = vrot.slane %v1831, 7
          %v1859 = vrot.slane %v1834, 7
          %v1860 = vrot.slane %v1837, 7
          %v1861 = vrot.slane %v1840, 7
          %v1862 = vsel %vm1587, %v1842, %v1852
          %v1863 = vsel %vm1587, %v1843, %v1853
          %v1864 = vsel %vm1587, %v1844, %v1854
          %v1865 = vsel %vm1587, %v1845, %v1855
          %v1866 = vsel %vm1587, %v1846, %v1856
          %v1867 = vsel %vm1587, %v1847, %v1857
          %v1868 = vsel %vm1587, %v1848, %v1858
          %v1869 = vsel %vm1587, %v1849, %v1859
          %v1870 = vsel %vm1587, %v1850, %v1860
          %v1871 = vsel %vm1587, %v1851, %v1861
          %v1872 = vrot.slane %v1813, 1
          %v1873 = vrot.slane %v1816, 1
          %v1874 = vrot.slane %v1819, 1
          %v1875 = vrot.slane %v1822, 1
          %v1876 = vrot.slane %v1825, 1
          %v1877 = vrot.slane %v1828, 1
          %v1878 = vrot.slane %v1831, 1
          %v1879 = vrot.slane %v1834, 1
          %v1880 = vrot.slane %v1837, 1
          %v1881 = vrot.slane %v1840, 1
          %v1882 = vrot.slane %v1814, 1
          %v1883 = vrot.slane %v1817, 1
          %v1884 = vrot.slane %v1820, 1
          %v1885 = vrot.slane %v1823, 1
          %v1886 = vrot.slane %v1826, 1
          %v1887 = vrot.slane %v1829, 1
          %v1888 = vrot.slane %v1832, 1
          %v1889 = vrot.slane %v1835, 1
          %v1890 = vrot.slane %v1838, 1
          %v1891 = vrot.slane %v1841, 1
          %v1892 = vsel %vm1618, %v1872, %v1882
          %v1893 = vsel %vm1618, %v1873, %v1883
          %v1894 = vsel %vm1618, %v1874, %v1884
          %v1895 = vsel %vm1618, %v1875, %v1885
          %v1896 = vsel %vm1618, %v1876, %v1886
          %v1897 = vsel %vm1618, %v1877, %v1887
          %v1898 = vsel %vm1618, %v1878, %v1888
          %v1899 = vsel %vm1618, %v1879, %v1889
          %v1900 = vsel %vm1618, %v1880, %v1890
          %v1901 = vsel %vm1618, %v1881, %v1891
          %v1902 = vlaneseq
          %v1903 = vshrl.u32 %v1902, 7
          %v1904 = vsub.s32 0, %v1903
          %v1905 = vrot.slane %v1509, %v1904
          %v1906 = vmul.f32 %v1862, %v1905
          %v1907 = vmul.f32 %v1863, %v1905
          %v1908 = vmul.f32 %v1864, %v1905
          %v1909 = vmul.f32 %v1865, %v1905
          %v1910 = vmul.f32 %v1866, %v1905
          %v1911 = vmul.f32 %v1867, %v1905
          %v1912 = vmul.f32 %v1868, %v1905
          %v1913 = vmul.f32 %v1869, %v1905
          %v1914 = vadd.f32 %v1801, %v1906
          %v1915 = vadd.f32 %v1802, %v1907
          %v1916 = vadd.f32 %v1803, %v1908
          %v1917 = vadd.f32 %v1804, %v1909
          %v1918 = vadd.f32 %v1805, %v1910
          %v1919 = vadd.f32 %v1806, %v1911
          %v1920 = vadd.f32 %v1807, %v1912
          %v1921 = vadd.f32 %v1808, %v1913
          %v1922 = vlaneseq
          %v1923 = vshrl.u32 %v1922, 7
          %v1924 = vsub.s32 0, %v1923
          %v1925 = vrot.slane %v1512, %v1924
          %v1926 = vmul.f32 %v1863, %v1925
          %v1927 = vmul.f32 %v1864, %v1925
          %v1928 = vmul.f32 %v1865, %v1925
          %v1929 = vmul.f32 %v1866, %v1925
          %v1930 = vmul.f32 %v1867, %v1925
          %v1931 = vmul.f32 %v1868, %v1925
          %v1932 = vmul.f32 %v1869, %v1925
          %v1933 = vmul.f32 %v1870, %v1925
          %v1934 = vadd.f32 %v1914, %v1926
          %v1935 = vadd.f32 %v1915, %v1927
          %v1936 = vadd.f32 %v1916, %v1928
          %v1937 = vadd.f32 %v1917, %v1929
          %v1938 = vadd.f32 %v1918, %v1930
          %v1939 = vadd.f32 %v1919, %v1931
          %v1940 = vadd.f32 %v1920, %v1932
          %v1941 = vadd.f32 %v1921, %v1933
          %v1942 = vlaneseq
          %v1943 = vshrl.u32 %v1942, 7
          %v1944 = vsub.s32 0, %v1943
          %v1945 = vrot.slane %v1515, %v1944
          %v1946 = vmul.f32 %v1864, %v1945
          %v1947 = vmul.f32 %v1865, %v1945
          %v1948 = vmul.f32 %v1866, %v1945
          %v1949 = vmul.f32 %v1867, %v1945
          %v1950 = vmul.f32 %v1868, %v1945
          %v1951 = vmul.f32 %v1869, %v1945
          %v1952 = vmul.f32 %v1870, %v1945
          %v1953 = vmul.f32 %v1871, %v1945
          %v1954 = vadd.f32 %v1934, %v1946
          %v1955 = vadd.f32 %v1935, %v1947
          %v1956 = vadd.f32 %v1936, %v1948
          %v1957 = vadd.f32 %v1937, %v1949
          %v1958 = vadd.f32 %v1938, %v1950
          %v1959 = vadd.f32 %v1939, %v1951
          %v1960 = vadd.f32 %v1940, %v1952
          %v1961 = vadd.f32 %v1941, %v1953
          %v1962 = vlaneseq
          %v1963 = vshrl.u32 %v1962, 7
          %v1964 = vsub.s32 0, %v1963
          %v1965 = vrot.slane %v1510, %v1964
          %v1966 = vmul.f32 %v1813, %v1965
          %v1967 = vmul.f32 %v1816, %v1965
          %v1968 = vmul.f32 %v1819, %v1965
          %v1969 = vmul.f32 %v1822, %v1965
          %v1970 = vmul.f32 %v1825, %v1965
          %v1971 = vmul.f32 %v1828, %v1965
          %v1972 = vmul.f32 %v1831, %v1965
          %v1973 = vmul.f32 %v1834, %v1965
          %v1974 = vadd.f32 %v1954, %v1966
          %v1975 = vadd.f32 %v1955, %v1967
          %v1976 = vadd.f32 %v1956, %v1968
          %v1977 = vadd.f32 %v1957, %v1969
          %v1978 = vadd.f32 %v1958, %v1970
          %v1979 = vadd.f32 %v1959, %v1971
          %v1980 = vadd.f32 %v1960, %v1972
          %v1981 = vadd.f32 %v1961, %v1973
          %v1982 = vlaneseq
          %v1983 = vshrl.u32 %v1982, 7
          %v1984 = vsub.s32 0, %v1983
          %v1985 = vrot.slane %v1513, %v1984
          %v1986 = vmul.f32 %v1816, %v1985
          %v1987 = vmul.f32 %v1819, %v1985
          %v1988 = vmul.f32 %v1822, %v1985
          %v1989 = vmul.f32 %v1825, %v1985
          %v1990 = vmul.f32 %v1828, %v1985
          %v1991 = vmul.f32 %v1831, %v1985
          %v1992 = vmul.f32 %v1834, %v1985
          %v1993 = vmul.f32 %v1837, %v1985
          %v1994 = vadd.f32 %v1974, %v1986
          %v1995 = vadd.f32 %v1975, %v1987
          %v1996 = vadd.f32 %v1976, %v1988
          %v1997 = vadd.f32 %v1977, %v1989
          %v1998 = vadd.f32 %v1978, %v1990
          %v1999 = vadd.f32 %v1979, %v1991
          %v2000 = vadd.f32 %v1980, %v1992
          %v2001 = vadd.f32 %v1981, %v1993
          %v2002 = vlaneseq
          %v2003 = vshrl.u32 %v2002, 7
          %v2004 = vsub.s32 0, %v2003
          %v2005 = vrot.slane %v1516, %v2004
          %v2006 = vmul.f32 %v1819, %v2005
          %v2007 = vmul.f32 %v1822, %v2005
          %v2008 = vmul.f32 %v1825, %v2005
          %v2009 = vmul.f32 %v1828, %v2005
          %v2010 = vmul.f32 %v1831, %v2005
          %v2011 = vmul.f32 %v1834, %v2005
          %v2012 = vmul.f32 %v1837, %v2005
          %v2013 = vmul.f32 %v1840, %v2005
          %v2014 = vadd.f32 %v1994, %v2006
          %v2015 = vadd.f32 %v1995, %v2007
          %v2016 = vadd.f32 %v1996, %v2008
          %v2017 = vadd.f32 %v1997, %v2009
          %v2018 = vadd.f32 %v1998, %v2010
          %v2019 = vadd.f32 %v1999, %v2011
          %v2020 = vadd.f32 %v2000, %v2012
          %v2021 = vadd.f32 %v2001, %v2013
          %v2022 = vlaneseq
          %v2023 = vshrl.u32 %v2022, 7
          %v2024 = vsub.s32 0, %v2023
          %v2025 = vrot.slane %v1511, %v2024
          %v2026 = vmul.f32 %v1892, %v2025
          %v2027 = vmul.f32 %v1893, %v2025
          %v2028 = vmul.f32 %v1894, %v2025
          %v2029 = vmul.f32 %v1895, %v2025
          %v2030 = vmul.f32 %v1896, %v2025
          %v2031 = vmul.f32 %v1897, %v2025
          %v2032 = vmul.f32 %v1898, %v2025
          %v2033 = vmul.f32 %v1899, %v2025
          %v2034 = vadd.f32 %v2014, %v2026
          %v2035 = vadd.f32 %v2015, %v2027
          %v2036 = vadd.f32 %v2016, %v2028
          %v2037 = vadd.f32 %v2017, %v2029
          %v2038 = vadd.f32 %v2018, %v2030
          %v2039 = vadd.f32 %v2019, %v2031
          %v2040 = vadd.f32 %v2020, %v2032
          %v2041 = vadd.f32 %v2021, %v2033
          %v2042 = vlaneseq
          %v2043 = vshrl.u32 %v2042, 7
          %v2044 = vsub.s32 0, %v2043
          %v2045 = vrot.slane %v1514, %v2044
          %v2046 = vmul.f32 %v1893, %v2045
          %v2047 = vmul.f32 %v1894, %v2045
          %v2048 = vmul.f32 %v1895, %v2045
          %v2049 = vmul.f32 %v1896, %v2045
          %v2050 = vmul.f32 %v1897, %v2045
          %v2051 = vmul.f32 %v1898, %v2045
          %v2052 = vmul.f32 %v1899, %v2045
          %v2053 = vmul.f32 %v1900, %v2045
          %v2054 = vadd.f32 %v2034, %v2046
          %v2055 = vadd.f32 %v2035, %v2047
          %v2056 = vadd.f32 %v2036, %v2048
          %v2057 = vadd.f32 %v2037, %v2049
          %v2058 = vadd.f32 %v2038, %v2050
          %v2059 = vadd.f32 %v2039, %v2051
          %v2060 = vadd.f32 %v2040, %v2052
          %v2061 = vadd.f32 %v2041, %v2053
          %v2062 = vlaneseq
          %v2063 = vshrl.u32 %v2062, 7
          %v2064 = vsub.s32 0, %v2063
          %v2065 = vrot.slane %v1517, %v2064
          %v2066 = vmul.f32 %v1894, %v2065
          %v2067 = vmul.f32 %v1895, %v2065
          %v2068 = vmul.f32 %v1896, %v2065
          %v2069 = vmul.f32 %v1897, %v2065
          %v2070 = vmul.f32 %v1898, %v2065
          %v2071 = vmul.f32 %v1899, %v2065
          %v2072 = vmul.f32 %v1900, %v2065
          %v2073 = vmul.f32 %v1901, %v2065
          %v2074 = vadd.f32 %v2054, %v2066
          %v2075 = vadd.f32 %v2055, %v2067
          %v2076 = vadd.f32 %v2056, %v2068
          %v2077 = vadd.f32 %v2057, %v2069
          %v2078 = vadd.f32 %v2058, %v2070
          %v2079 = vadd.f32 %v2059, %v2071
          %v2080 = vadd.f32 %v2060, %v2072
          %v2081 = vadd.f32 %v2061, %v2073
          %s2082 = sadd.s32 %s1528, 2
          %s2083 = smul.u32 %s2082, 240
          %s2084 = scalar_lea.vmem [#allocation2], %s2083
          %v2085 = vld [vmem:[%s2084] sm:$0xff]
          %v2086 = vld [vmem:[%s2084 + $0x8] sm:$0xff]
          %v2087 = vld [vmem:[%s2084 + $0x10] sm:$0xff]
          %v2088 = vld [vmem:[%s2084 + $0x18] sm:$0xff]
          %v2089 = vld [vmem:[%s2084 + $0x20] sm:$0xff]
          %v2090 = vld [vmem:[%s2084 + $0x28] sm:$0xff]
          %v2091 = vld [vmem:[%s2084 + $0x30] sm:$0xff]
          %v2092 = vld [vmem:[%s2084 + $0x38] sm:$0xff]
          %v2093 = vld [vmem:[%s2084 + $0x40] sm:$0xff]
          %v2094 = vld [vmem:[%s2084 + $0x48] sm:$0xff]
          %v2095 = vld [vmem:[%s2084 + $0x50] sm:$0xff]
          %v2096 = vld [vmem:[%s2084 + $0x58] sm:$0xff]
          %v2097 = vld [vmem:[%s2084 + $0x60] sm:$0xff]
          %v2098 = vld [vmem:[%s2084 + $0x68] sm:$0xff]
          %v2099 = vld [vmem:[%s2084 + $0x70] sm:$0xff]
          %v2100 = vld [vmem:[%s2084 + $0x78] sm:$0xff]
          %v2101 = vld [vmem:[%s2084 + $0x80] sm:$0xff]
          %v2102 = vld [vmem:[%s2084 + $0x88] sm:$0xff]
          %v2103 = vld [vmem:[%s2084 + $0x90] sm:$0xff]
          %v2104 = vld [vmem:[%s2084 + $0x98] sm:$0xff]
          %v2105 = vld [vmem:[%s2084 + $0xa0] sm:$0xff]
          %v2106 = vld [vmem:[%s2084 + $0xa8] sm:$0xff]
          %v2107 = vld [vmem:[%s2084 + $0xb0] sm:$0xff]
          %v2108 = vld [vmem:[%s2084 + $0xb8] sm:$0xff]
          %v2109 = vld [vmem:[%s2084 + $0xc0] sm:$0xff]
          %v2110 = vld [vmem:[%s2084 + $0xc8] sm:$0xff]
          %v2111 = vld [vmem:[%s2084 + $0xd0] sm:$0xff]
          %v2112 = vld [vmem:[%s2084 + $0xd8] sm:$0xff]
          %v2113 = vld [vmem:[%s2084 + $0xe0] sm:$0xff]
          %v2114 = vld [vmem:[%s2084 + $0xe8] sm:$0xff]
          %v2115 = vrot.slane %v2085, 7
          %v2116 = vrot.slane %v2088, 7
          %v2117 = vrot.slane %v2091, 7
          %v2118 = vrot.slane %v2094, 7
          %v2119 = vrot.slane %v2097, 7
          %v2120 = vrot.slane %v2100, 7
          %v2121 = vrot.slane %v2103, 7
          %v2122 = vrot.slane %v2106, 7
          %v2123 = vrot.slane %v2109, 7
          %v2124 = vrot.slane %v2112, 7
          %v2125 = vrot.slane %v2086, 7
          %v2126 = vrot.slane %v2089, 7
          %v2127 = vrot.slane %v2092, 7
          %v2128 = vrot.slane %v2095, 7
          %v2129 = vrot.slane %v2098, 7
          %v2130 = vrot.slane %v2101, 7
          %v2131 = vrot.slane %v2104, 7
          %v2132 = vrot.slane %v2107, 7
          %v2133 = vrot.slane %v2110, 7
          %v2134 = vrot.slane %v2113, 7
          %v2135 = vsel %vm1587, %v2115, %v2125
          %v2136 = vsel %vm1587, %v2116, %v2126
          %v2137 = vsel %vm1587, %v2117, %v2127
          %v2138 = vsel %vm1587, %v2118, %v2128
          %v2139 = vsel %vm1587, %v2119, %v2129
          %v2140 = vsel %vm1587, %v2120, %v2130
          %v2141 = vsel %vm1587, %v2121, %v2131
          %v2142 = vsel %vm1587, %v2122, %v2132
          %v2143 = vsel %vm1587, %v2123, %v2133
          %v2144 = vsel %vm1587, %v2124, %v2134
          %v2145 = vrot.slane %v2086, 1
          %v2146 = vrot.slane %v2089, 1
          %v2147 = vrot.slane %v2092, 1
          %v2148 = vrot.slane %v2095, 1
          %v2149 = vrot.slane %v2098, 1
          %v2150 = vrot.slane %v2101, 1
          %v2151 = vrot.slane %v2104, 1
          %v2152 = vrot.slane %v2107, 1
          %v2153 = vrot.slane %v2110, 1
          %v2154 = vrot.slane %v2113, 1
          %v2155 = vrot.slane %v2087, 1
          %v2156 = vrot.slane %v2090, 1
          %v2157 = vrot.slane %v2093, 1
          %v2158 = vrot.slane %v2096, 1
          %v2159 = vrot.slane %v2099, 1
          %v2160 = vrot.slane %v2102, 1
          %v2161 = vrot.slane %v2105, 1
          %v2162 = vrot.slane %v2108, 1
          %v2163 = vrot.slane %v2111, 1
          %v2164 = vrot.slane %v2114, 1
          %v2165 = vsel %vm1618, %v2145, %v2155
          %v2166 = vsel %vm1618, %v2146, %v2156
          %v2167 = vsel %vm1618, %v2147, %v2157
          %v2168 = vsel %vm1618, %v2148, %v2158
          %v2169 = vsel %vm1618, %v2149, %v2159
          %v2170 = vsel %vm1618, %v2150, %v2160
          %v2171 = vsel %vm1618, %v2151, %v2161
          %v2172 = vsel %vm1618, %v2152, %v2162
          %v2173 = vsel %vm1618, %v2153, %v2163
          %v2174 = vsel %vm1618, %v2154, %v2164
          %v2175 = vlaneseq
          %v2176 = vshrl.u32 %v2175, 7
          %v2177 = vsub.s32 0, %v2176
          %v2178 = vrot.slane %v1518, %v2177
          %v2179 = vmul.f32 %v2135, %v2178
          %v2180 = vmul.f32 %v2136, %v2178
          %v2181 = vmul.f32 %v2137, %v2178
          %v2182 = vmul.f32 %v2138, %v2178
          %v2183 = vmul.f32 %v2139, %v2178
          %v2184 = vmul.f32 %v2140, %v2178
          %v2185 = vmul.f32 %v2141, %v2178
          %v2186 = vmul.f32 %v2142, %v2178
          %v2187 = vadd.f32 %v2074, %v2179
          %v2188 = vadd.f32 %v2075, %v2180
          %v2189 = vadd.f32 %v2076, %v2181
          %v2190 = vadd.f32 %v2077, %v2182
          %v2191 = vadd.f32 %v2078, %v2183
          %v2192 = vadd.f32 %v2079, %v2184
          %v2193 = vadd.f32 %v2080, %v2185
          %v2194 = vadd.f32 %v2081, %v2186
          %v2195 = vlaneseq
          %v2196 = vshrl.u32 %v2195, 7
          %v2197 = vsub.s32 0, %v2196
          %v2198 = vrot.slane %v1521, %v2197
          %v2199 = vmul.f32 %v2136, %v2198
          %v2200 = vmul.f32 %v2137, %v2198
          %v2201 = vmul.f32 %v2138, %v2198
          %v2202 = vmul.f32 %v2139, %v2198
          %v2203 = vmul.f32 %v2140, %v2198
          %v2204 = vmul.f32 %v2141, %v2198
          %v2205 = vmul.f32 %v2142, %v2198
          %v2206 = vmul.f32 %v2143, %v2198
          %v2207 = vadd.f32 %v2187, %v2199
          %v2208 = vadd.f32 %v2188, %v2200
          %v2209 = vadd.f32 %v2189, %v2201
          %v2210 = vadd.f32 %v2190, %v2202
          %v2211 = vadd.f32 %v2191, %v2203
          %v2212 = vadd.f32 %v2192, %v2204
          %v2213 = vadd.f32 %v2193, %v2205
          %v2214 = vadd.f32 %v2194, %v2206
          %v2215 = vlaneseq
          %v2216 = vshrl.u32 %v2215, 7
          %v2217 = vsub.s32 0, %v2216
          %v2218 = vrot.slane %v1524, %v2217
          %v2219 = vmul.f32 %v2137, %v2218
          %v2220 = vmul.f32 %v2138, %v2218
          %v2221 = vmul.f32 %v2139, %v2218
          %v2222 = vmul.f32 %v2140, %v2218
          %v2223 = vmul.f32 %v2141, %v2218
          %v2224 = vmul.f32 %v2142, %v2218
          %v2225 = vmul.f32 %v2143, %v2218
          %v2226 = vmul.f32 %v2144, %v2218
          %v2227 = vadd.f32 %v2207, %v2219
          %v2228 = vadd.f32 %v2208, %v2220
          %v2229 = vadd.f32 %v2209, %v2221
          %v2230 = vadd.f32 %v2210, %v2222
          %v2231 = vadd.f32 %v2211, %v2223
          %v2232 = vadd.f32 %v2212, %v2224
          %v2233 = vadd.f32 %v2213, %v2225
          %v2234 = vadd.f32 %v2214, %v2226
          %v2235 = vlaneseq
          %v2236 = vshrl.u32 %v2235, 7
          %v2237 = vsub.s32 0, %v2236
          %v2238 = vrot.slane %v1519, %v2237
          %v2239 = vmul.f32 %v2086, %v2238
          %v2240 = vmul.f32 %v2089, %v2238
          %v2241 = vmul.f32 %v2092, %v2238
          %v2242 = vmul.f32 %v2095, %v2238
          %v2243 = vmul.f32 %v2098, %v2238
          %v2244 = vmul.f32 %v2101, %v2238
          %v2245 = vmul.f32 %v2104, %v2238
          %v2246 = vmul.f32 %v2107, %v2238
          %v2247 = vadd.f32 %v2227, %v2239
          %v2248 = vadd.f32 %v2228, %v2240
          %v2249 = vadd.f32 %v2229, %v2241
          %v2250 = vadd.f32 %v2230, %v2242
          %v2251 = vadd.f32 %v2231, %v2243
          %v2252 = vadd.f32 %v2232, %v2244
          %v2253 = vadd.f32 %v2233, %v2245
          %v2254 = vadd.f32 %v2234, %v2246
          %v2255 = vlaneseq
          %v2256 = vshrl.u32 %v2255, 7
          %v2257 = vsub.s32 0, %v2256
          %v2258 = vrot.slane %v1522, %v2257
          %v2259 = vmul.f32 %v2089, %v2258
          %v2260 = vmul.f32 %v2092, %v2258
          %v2261 = vmul.f32 %v2095, %v2258
          %v2262 = vmul.f32 %v2098, %v2258
          %v2263 = vmul.f32 %v2101, %v2258
          %v2264 = vmul.f32 %v2104, %v2258
          %v2265 = vmul.f32 %v2107, %v2258
          %v2266 = vmul.f32 %v2110, %v2258
          %v2267 = vadd.f32 %v2247, %v2259
          %v2268 = vadd.f32 %v2248, %v2260
          %v2269 = vadd.f32 %v2249, %v2261
          %v2270 = vadd.f32 %v2250, %v2262
          %v2271 = vadd.f32 %v2251, %v2263
          %v2272 = vadd.f32 %v2252, %v2264
          %v2273 = vadd.f32 %v2253, %v2265
          %v2274 = vadd.f32 %v2254, %v2266
          %v2275 = vlaneseq
          %v2276 = vshrl.u32 %v2275, 7
          %v2277 = vsub.s32 0, %v2276
          %v2278 = vrot.slane %v1525, %v2277
          %v2279 = vmul.f32 %v2092, %v2278
          %v2280 = vmul.f32 %v2095, %v2278
          %v2281 = vmul.f32 %v2098, %v2278
          %v2282 = vmul.f32 %v2101, %v2278
          %v2283 = vmul.f32 %v2104, %v2278
          %v2284 = vmul.f32 %v2107, %v2278
          %v2285 = vmul.f32 %v2110, %v2278
          %v2286 = vmul.f32 %v2113, %v2278
          %v2287 = vadd.f32 %v2267, %v2279
          %v2288 = vadd.f32 %v2268, %v2280
          %v2289 = vadd.f32 %v2269, %v2281
          %v2290 = vadd.f32 %v2270, %v2282
          %v2291 = vadd.f32 %v2271, %v2283
          %v2292 = vadd.f32 %v2272, %v2284
          %v2293 = vadd.f32 %v2273, %v2285
          %v2294 = vadd.f32 %v2274, %v2286
          %v2295 = vlaneseq
          %v2296 = vshrl.u32 %v2295, 7
          %v2297 = vsub.s32 0, %v2296
          %v2298 = vrot.slane %v1520, %v2297
          %v2299 = vmul.f32 %v2165, %v2298
          %v2300 = vmul.f32 %v2166, %v2298
          %v2301 = vmul.f32 %v2167, %v2298
          %v2302 = vmul.f32 %v2168, %v2298
          %v2303 = vmul.f32 %v2169, %v2298
          %v2304 = vmul.f32 %v2170, %v2298
          %v2305 = vmul.f32 %v2171, %v2298
          %v2306 = vmul.f32 %v2172, %v2298
          %v2307 = vadd.f32 %v2287, %v2299
          %v2308 = vadd.f32 %v2288, %v2300
          %v2309 = vadd.f32 %v2289, %v2301
          %v2310 = vadd.f32 %v2290, %v2302
          %v2311 = vadd.f32 %v2291, %v2303
          %v2312 = vadd.f32 %v2292, %v2304
          %v2313 = vadd.f32 %v2293, %v2305
          %v2314 = vadd.f32 %v2294, %v2306
          %v2315 = vlaneseq
          %v2316 = vshrl.u32 %v2315, 7
          %v2317 = vsub.s32 0, %v2316
          %v2318 = vrot.slane %v1523, %v2317
          %v2319 = vmul.f32 %v2166, %v2318
          %v2320 = vmul.f32 %v2167, %v2318
          %v2321 = vmul.f32 %v2168, %v2318
          %v2322 = vmul.f32 %v2169, %v2318
          %v2323 = vmul.f32 %v2170, %v2318
          %v2324 = vmul.f32 %v2171, %v2318
          %v2325 = vmul.f32 %v2172, %v2318
          %v2326 = vmul.f32 %v2173, %v2318
          %v2327 = vadd.f32 %v2307, %v2319
          %v2328 = vadd.f32 %v2308, %v2320
          %v2329 = vadd.f32 %v2309, %v2321
          %v2330 = vadd.f32 %v2310, %v2322
          %v2331 = vadd.f32 %v2311, %v2323
          %v2332 = vadd.f32 %v2312, %v2324
          %v2333 = vadd.f32 %v2313, %v2325
          %v2334 = vadd.f32 %v2314, %v2326
          %v2335 = vlaneseq
          %v2336 = vshrl.u32 %v2335, 7
          %v2337 = vsub.s32 0, %v2336
          %v2338 = vrot.slane %v1526, %v2337
          %v2339 = vmul.f32 %v2167, %v2338
          %v2340 = vmul.f32 %v2168, %v2338
          %v2341 = vmul.f32 %v2169, %v2338
          %v2342 = vmul.f32 %v2170, %v2338
          %v2343 = vmul.f32 %v2171, %v2338
          %v2344 = vmul.f32 %v2172, %v2338
          %v2345 = vmul.f32 %v2173, %v2338
          %v2346 = vmul.f32 %v2174, %v2338
          %v2347 = vadd.f32 %v2327, %v2339
          %v2348 = vadd.f32 %v2328, %v2340
          %v2349 = vadd.f32 %v2329, %v2341
          %v2350 = vadd.f32 %v2330, %v2342
          %v2351 = vadd.f32 %v2331, %v2343
          %v2352 = vadd.f32 %v2332, %v2344
          %v2353 = vadd.f32 %v2333, %v2345
          %v2354 = vadd.f32 %v2334, %v2346
          %v2356 = vlaneseq
          %v2357 = vshrl.u32 %v2356, 7
          %v2358 = vsub.s32 0, %v2357
          %v2359 = vrot.slane %v1499, %v2358
          %v2361 = vadd.f32 %v2347, %v2359
          %v2362 = vadd.f32 %v2348, %v2359
          %v2363 = vadd.f32 %v2349, %v2359
          %v2364 = vadd.f32 %v2350, %v2359
          %v2365 = vadd.f32 %v2351, %v2359
          %v2366 = vadd.f32 %v2352, %v2359
          %v2367 = vadd.f32 %v2353, %v2359
          %v2368 = vadd.f32 %v2354, %v2359
          %v2369 = vmax.f32 %v2361, 0.0
          %v2370 = vmax.f32 %v2362, 0.0
          %v2371 = vmax.f32 %v2363, 0.0
          %v2372 = vmax.f32 %v2364, 0.0
          %v2373 = vmax.f32 %v2365, 0.0
          %v2374 = vmax.f32 %v2366, 0.0
          %v2375 = vmax.f32 %v2367, 0.0
          %v2376 = vmax.f32 %v2368, 0.0
          %s2377 = smul.u32 %s1528, 64
          %s2378 = scalar_lea.vmem %s279, %s2377 [#allocation3]
          %2379 = vst [vmem:[%s2378] sm:$0xff] %v2369
          %2380 = vst [vmem:[%s2378 + $0x8] sm:$0xff] %v2370
          %2381 = vst [vmem:[%s2378 + $0x10] sm:$0xff] %v2371
          %2382 = vst [vmem:[%s2378 + $0x18] sm:$0xff] %v2372
          %2383 = vst [vmem:[%s2378 + $0x20] sm:$0xff] %v2373
          %2384 = vst [vmem:[%s2378 + $0x28] sm:$0xff] %v2374
          %2385 = vst [vmem:[%s2378 + $0x30] sm:$0xff] %v2375
          %2386 = vst [vmem:[%s2378 + $0x38] sm:$0xff] %v2376
        $region52: #{tpu_custom_call.1} parent=39 // loop_footer
          %s1532 = sadd.s32 1, %s1528
        $region53: #{tpu_custom_call.1} parent=39 // loop_footer_branch
          %1527 = sbr.rel target = $region49
        $region54: #{tpu_custom_call.1} parent=39 // loop_exit
          _
        %s2387 = sand.u32 %s171, 1
        %s2388 = scalar_lea.sflag [#allocation4], %s2387
        %s2389 = sand.u32 %s171, 1
        %s2390 = smul.addr %s2389, 512
        %s2391 = scalar_lea.vmem [#allocation3], %s2390
        // Predicated region
        $region55: #{tpu_custom_call.1} parent=39 // pred_check
          %p2392 = pneg %p181
        $region56: #{tpu_custom_call.1} parent=39 // pred_check_branch
          %2394 = sbr.rel (%p2392) target = $region58
        $region57: #{tpu_custom_call.1} parent=39 // pred_region
          %s2396 = ssub.s32 8192, 8192
          %2397 = vsyncadd %s2388, %s2396
          %s2398 = smul.addr %s23, 64
          %s2399 = sadd.s32 %s24, %s2398
          %s2400 = smul.addr %s2399, 128
          %s2401 = scalar_lea.hbm %s5, %s2400
          %s2402 = sshll.u32 %s2391, 4
          %s2403 = int_to_ptr.vmem [resolvable:$true] %s2402
          %2408 = dma.vmem_to_hbm [thread:$0]  %s2403, 8192, %s2401, %s2388, 128, 128, 8
        $region58: #{tpu_custom_call.1} parent=39 // pred_fallthru
          _
      $region40: #{tpu_custom_call.1} parent=5 // pred_fallthru
        _
      %p2409 = scmp.le.s32.totalorder 2, %s14
      // Predicated region
      $region59: #{tpu_custom_call.1} parent=5 // pred_check
        %p2410 = pneg %p2409
      $region60: #{tpu_custom_call.1} parent=5 // pred_check_branch
        %2412 = sbr.rel (%p2410) target = $region62
      $region61: #{tpu_custom_call.1} parent=5 // pred_region
        %s2413 = ssub.s32 %s14, 2
        // Predicated region
        $region63: #{tpu_custom_call.1} parent=61 // pred_check
          %p2414 = pneg %p187
        $region64: #{tpu_custom_call.1} parent=61 // pred_check_branch
          %2416 = sbr.rel (%p2414) target = $region66
        $region65: #{tpu_custom_call.1} parent=61 // pred_region
          %s2417 = sand.u32 %s172, 1
          %s2418 = scalar_lea.sflag [#allocation4], %s2417
          %s2419 = sand.u32 %s172, 1
          %s2420 = smul.addr %s2419, 512
          %s2421 = scalar_lea.vmem [#allocation3], %s2420
          %2422 = dma.done %s2418, 8192
        $region66: #{tpu_custom_call.1} parent=61 // pred_fallthru
          _
      $region62: #{tpu_custom_call.1} parent=5 // pred_fallthru
        _
    $region6: #{tpu_custom_call.1} parent=1 // loop_footer
      %s18 = sadd.s32 1, %s14
    $region7: #{tpu_custom_call.1} parent=1 // loop_footer_branch
      %13 = sbr.rel target = $region3
    $region8: #{tpu_custom_call.1} parent=1 // loop_exit
      _
    %2423 = vsyncpa [#allocation4], 1
    %s2424 = scalar_lea.sflag [#allocation4], 1
    %2425 = vsyncpa %s2424, 1

</llo_original>
